<compile_context>
chip_gen: v6e
topology: v6e:2x2x1
jax: 0.10.0
libtpu: 0.0.40
codegen_flags: <defaults>
</compile_context>

<pallas_src>
import jax
import jax.numpy as jnp
from jax import lax
from jax.experimental import pallas as pl
from jax.experimental.pallas import tpu as pltpu

EMB = 32          # emb_dim (kept small; module default is 300)
NUM_LAYERS = 2
DIN = 3           # input_dim from the module
DIN_PAD = 8       # zero-padded input width for clean sublane/lane layout
OUT_W = 128       # lane-dense packed output width (col 0 = reg, col 1 = cls)
BN_EPS = 1e-5

# ---- packed parameter buffer row offsets (shared by pack_params and the kernel) ----
# p32: (P32_ROWS, EMB) float32
OFF_W_IN = 0                            # (DIN_PAD, E)  input Linear weight (rows >= DIN are 0)
OFF_B_IN = DIN_PAD                      # (1, E)
OFF_AL = OFF_B_IN + 1                   # (L, E)  GAT attn_l, one row per layer
OFF_AR = OFF_AL + NUM_LAYERS            # (L, E)  GAT attn_r
OFF_GB = OFF_AR + NUM_LAYERS            # (L, E)  GAT bias
OFF_BV1 = OFF_GB + NUM_LAYERS           # (1, E)  virtual-node MLP bias 1
OFF_WG = OFF_BV1 + 1                    # (L*E, E) GAT fc weights, layer-major
OFF_WV1 = OFF_WG + NUM_LAYERS * EMB     # (E, E)  virtual-node MLP weight 1
OFF_WV2 = OFF_WV1 + EMB                 # (E, E)  virtual-node MLP weight 2
OFF_BV2 = OFF_WV2 + EMB                 # (1, E)
OFF_WP = OFF_BV2 + 1                    # (1, E)  graph_pred_linear weight (transposed)
OFF_BP = OFF_WP + 1                     # (1, E)  graph_pred_linear bias (replicated)
P32_ROWS = ((OFF_BP + 1 + 7) // 8) * 8

# p128: (P128_ROWS, 4*EMB) float32 — LSTM parameters (W_ih rows then W_hh rows per layer)
OFF_WL = 0                              # (L*2E, 4E)
OFF_BL = NUM_LAYERS * 2 * EMB           # (L, 4E)   b_ih + b_hh per layer
P128_ROWS = OFF_BL + NUM_LAYERS


def tess_kernel(x_ref, adjt_ref, pbn_ref, pnb_ref, p32_ref, p128_ref, out_ref):
    E = EMB
    f32 = jnp.float32

    x = x_ref[...]                                  # (N, DIN_PAD) f32
    adj_t = adjt_ref[...].astype(f32)               # (N_dst, N_src), bf16 in HBM -> one f32 cast
    P_bn = pbn_ref[...].astype(f32)                 # (B, N)  sum-pooling matrix
    P_nb = pnb_ref[...].astype(f32)                 # (N, B)  virtual-node broadcast matrix
    N = x.shape[0]
    B = P_bn.shape[0]

    bn_scale = 1.0 / (1.0 + BN_EPS) ** 0.5          # eval-mode BatchNorm1d at init
    # Hoisted loop-invariant mask. NOTE: at realistic N recompute this per layer
    # instead to shrink the live (N,N) set (free at N=128).
    mask = adj_t > 0.0

    # GNN_node_Virtualnode: input linear (input_dim -> emb_dim)
    w_in = p32_ref[OFF_W_IN:OFF_W_IN + DIN_PAD, :]
    b_in = p32_ref[OFF_B_IN:OFF_B_IN + 1, :]
    x0 = jnp.dot(x, w_in, preferred_element_type=f32) + b_in

    h_lstm = jnp.zeros((N, E), f32)                 # GeniePath depth-LSTM hidden state
    c_lstm = jnp.zeros((N, E), f32)                 # GeniePath depth-LSTM cell state
    vn = jnp.zeros((B, E), f32)                     # virtual-node embedding (init 0)

    h_prev = x0
    # JK='sum' in the reference sums h_list[0..num_layers-1] (the in-place modified
    # entries that already include the virtual-node addition); h_list[num_layers]
    # is NOT included — matched exactly below.
    jk_sum = jnp.zeros((N, E), f32)

    for layer in range(NUM_LAYERS):
        # h_list[layer] = h_list[layer] + virtualnode_embedding[batch_id]
        h_in = h_prev + jnp.dot(P_nb, vn, preferred_element_type=f32)    # (N,E)
        jk_sum = jk_sum + h_in

        # ---- GeniePath breadth: GATConv (1 head, no residual, allow_zero_in_degree) ----
        wg = p32_ref[OFF_WG + layer * E:OFF_WG + (layer + 1) * E, :]     # (E,E)
        al = p32_ref[OFF_AL + layer:OFF_AL + layer + 1, :]               # (1,E)
        ar = p32_ref[OFF_AR + layer:OFF_AR + layer + 1, :]               # (1,E)
        gb = p32_ref[OFF_GB + layer:OFF_GB + layer + 1, :]               # (1,E)

        z = jnp.dot(h_in, wg, preferred_element_type=f32)                # (N,E)
        er_col = jnp.sum(z * ar, axis=-1, keepdims=True)                 # (N_dst,1) lane-reduce
        # el as a q·kT contraction (lhs (1,E), rhs (N,E) contracting dim 1):
        # the MXU consumes the transposed RHS directly — no (N,E) transpose copy.
        el_row = lax.dot_general(al, z, (((1,), (1,)), ((), ())),
                                 preferred_element_type=f32)             # (1,N_src)
        # e[v,u] = LeakyReLU(el[u] + er[v], 0.2); broadcast is free on the VPU
        e = er_col + el_row                                              # (N_dst,N_src)
        e = jnp.where(e > 0, e, 0.2 * e)
        e_m = jnp.where(mask, e, f32(-1e30))
        m = jnp.max(e_m, axis=-1, keepdims=True)                         # edge_softmax per dst
        a = jnp.where(mask, jnp.exp(e_m - m), 0.0)
        denom = jnp.sum(a, axis=-1, keepdims=True)
        denom = jnp.where(denom > 0, denom, 1.0)                         # zero-in-degree guard
        alpha = a * pl.reciprocal(denom, approx=True)                    # EUP divide
        rst = jnp.dot(alpha, z, preferred_element_type=f32) + gb         # aggregate + GAT bias
        xg = jnp.tanh(rst)                                               # mean over 1 head = id

        # ---- GeniePath depth: single-step LSTM (gate order i,f,g,o) ----
        base = OFF_WL + layer * 2 * E
        w_ih = p128_ref[base:base + E, :]                                # (E,4E)
        w_hh = p128_ref[base + E:base + 2 * E, :]                        # (E,4E)
        b_l = p128_ref[OFF_BL + layer:OFF_BL + layer + 1, :]             # (1,4E)
        # two accumulated dots instead of a cross-lane concat of [xg, h]
        gates = (jnp.dot(xg, w_ih, preferred_element_type=f32)
                 + jnp.dot(h_lstm, w_hh, preferred_element_type=f32) + b_l)   # (N,4E)
        sig = jax.nn.sigmoid(gates)              # one full-width EUP pass -> i,f,o
        i_g = sig[:, 0:E]
        f_g = sig[:, E:2 * E]
        o_g = sig[:, 3 * E:4 * E]
        g_g = jnp.tanh(gates[:, 2 * E:3 * E])    # tanh only on the 32-lane g slice
        c_lstm = f_g * c_lstm + i_g * g_g
        h_lstm = o_g * jnp.tanh(c_lstm)

        xo = h_lstm * bn_scale                   # BatchNorm1d (eval, default stats)
        if layer < NUM_LAYERS - 1:
            xo = jnp.maximum(xo, 0.0)            # ReLU on non-last layers
            # virtual-node update: SumPooling + MLP(Linear,BN,ReLU,Linear,BN,ReLU)
            wv1 = p32_ref[OFF_WV1:OFF_WV1 + E, :]
            bv1 = p32_ref[OFF_BV1:OFF_BV1 + 1, :]
            wv2 = p32_ref[OFF_WV2:OFF_WV2 + E, :]
            bv2 = p32_ref[OFF_BV2:OFF_BV2 + 1, :]
            vn_t = jnp.dot(P_bn, h_in, preferred_element_type=f32) + vn
            vn_t = jnp.maximum(
                (jnp.dot(vn_t, wv1, preferred_element_type=f32) + bv1) * bn_scale, 0.0)
            vn_t = jnp.maximum(
                (jnp.dot(vn_t, wv2, preferred_element_type=f32) + bv2) * bn_scale, 0.0)
            vn = vn_t
        h_prev = xo

    # JK='sum' node representation, then sum pooling and graph_pred_linear
    h_graph = jnp.dot(P_bn, jk_sum, preferred_element_type=f32)          # (B,E)
    wp_row = p32_ref[OFF_WP:OFF_WP + 1, :]                               # (1,E)
    bp_row = p32_ref[OFF_BP:OFF_BP + 1, :]                               # (1,E), bp replicated
    out = jnp.sum(h_graph * wp_row, axis=-1, keepdims=True) + bp_row[:, :1]   # (B,1)

    # lane-dense packed output: col 0 = output_reg (clamped), col 1 = output_class
    col = lax.broadcasted_iota(jnp.int32, (B, OUT_W), 1)
    reg = jnp.clip(out, 0.0, 5000.0)
    out_ref[...] = jnp.where(col == 0, reg, jnp.where(col == 1, out, 0.0))


def tess_forward(x, adj_t, pool_bn, pool_nb, p32, p128):
    NG, N, dpad = x.shape
    B = pool_bn.shape[1]
    E, L = EMB, NUM_LAYERS

    # rough static cost for XLA scheduling around the custom call
    flops_in = 2 * N * dpad * E
    flops_layer = (2 * N * B * E            # virtual-node broadcast
                   + 2 * N * E * E          # GAT fc
                   + 2 * N * N * E          # alpha @ z
                   + 2 * 2 * N * E * 4 * E)  # LSTM (two dots)
    flops_vn = 2 * B * N * E + 2 * 2 * B * E * E
    flops_tail = 2 * B * N * E + 2 * B * E
    flops = NG * (flops_in + L * flops_layer + (L - 1) * flops_vn + flops_tail)
    transcendentals = NG * L * (N * N + N * (4 * E + 3 * E))
    bytes_accessed = int(
        x.size * x.dtype.itemsize + adj_t.size * adj_t.dtype.itemsize
        + pool_bn.size * pool_bn.dtype.itemsize + pool_nb.size * pool_nb.dtype.itemsize
        + p32.size * p32.dtype.itemsize + p128.size * p128.dtype.itemsize
        + NG * B * OUT_W * 4)

    out = pl.pallas_call(
        tess_kernel,
        out_shape=jax.ShapeDtypeStruct((NG, B, OUT_W), jnp.float32),
        grid=(NG,),
        in_specs=[
            pl.BlockSpec((None, N, dpad), lambda g: (g, 0, 0)),
            pl.BlockSpec((None, N, N), lambda g: (g, 0, 0)),
            pl.BlockSpec((None, B, N), lambda g: (g, 0, 0)),
            pl.BlockSpec((None, N, B), lambda g: (g, 0, 0)),
            pl.BlockSpec((P32_ROWS, EMB), lambda g: (0, 0)),
            pl.BlockSpec((P128_ROWS, 4 * EMB), lambda g: (0, 0)),
        ],
        out_specs=pl.BlockSpec((None, B, OUT_W), lambda g: (g, 0, 0)),
        compiler_params=pltpu.CompilerParams(
            dimension_semantics=("parallel",),
            vmem_limit_bytes=32 * 1024 * 1024),
        cost_estimate=pl.CostEstimate(flops=int(flops),
                                      transcendentals=int(transcendentals),
                                      bytes_accessed=bytes_accessed),
    )(x, adj_t, pool_bn, pool_nb, p32, p128)
    reg = out[:, :, 0].reshape(-1)     # output_reg.squeeze(-1), clamped in-kernel
    cls = out[:, :, 1].reshape(-1)     # output_class.squeeze(-1)
    return reg, cls


def init_params(key, din, emb, num_layers):
    keys = jax.random.split(key, 16)

    def rnd(k, shape, scale=0.1):
        return jax.random.normal(k, shape, dtype=jnp.float32) * scale

    return {
        'w_in': rnd(keys[0], (din, emb)),                  # Linear(input_dim, emb_dim)
        'b_in': rnd(keys[1], (1, emb)),
        'wg':   rnd(keys[2], (num_layers, emb, emb)),      # GATConv.fc (no bias)
        'al':   rnd(keys[3], (num_layers, 1, emb)),        # attn_l
        'ar':   rnd(keys[4], (num_layers, 1, emb)),        # attn_r
        'gb':   rnd(keys[5], (num_layers, 1, emb)),        # GATConv bias
        'wih':  rnd(keys[6], (num_layers, emb, 4 * emb)),  # LSTM W_ih (transposed), order i,f,g,o
        'whh':  rnd(keys[7], (num_layers, emb, 4 * emb)),  # LSTM W_hh (transposed)
        'bih':  rnd(keys[8], (num_layers, 1, 4 * emb)),
        'bhh':  rnd(keys[9], (num_layers, 1, 4 * emb)),
        'wv1':  rnd(keys[10], (emb, emb)),                 # virtual-node MLP
        'bv1':  rnd(keys[11], (1, emb)),
        'wv2':  rnd(keys[12], (emb, emb)),
        'bv2':  rnd(keys[13], (1, emb)),
        'wp':   rnd(keys[14], (emb, 1)),                   # graph_pred_linear
        'bp':   rnd(keys[15], (1, 1)),
    }


def pack_params(params):
    """Pack all small parameter tensors into two lane-friendly VMEM buffers."""
    E, L = EMB, NUM_LAYERS
    p32 = jnp.zeros((P32_ROWS, E), jnp.float32)
    p32 = p32.at[OFF_W_IN:OFF_W_IN + params['w_in'].shape[0], :].set(params['w_in'])
    p32 = p32.at[OFF_B_IN, :].set(params['b_in'][0])
    p32 = p32.at[OFF_AL:OFF_AL + L, :].set(params['al'][:, 0, :])
    p32 = p32.at[OFF_AR:OFF_AR + L, :].set(params['ar'][:, 0, :])
    p32 = p32.at[OFF_GB:OFF_GB + L, :].set(params['gb'][:, 0, :])
    p32 = p32.at[OFF_BV1, :].set(params['bv1'][0])
    p32 = p32.at[OFF_WG:OFF_WG + L * E, :].set(params['wg'].reshape(L * E, E))
    p32 = p32.at[OFF_WV1:OFF_WV1 + E, :].set(params['wv1'])
    p32 = p32.at[OFF_WV2:OFF_WV2 + E, :].set(params['wv2'])
    p32 = p32.at[OFF_BV2, :].set(params['bv2'][0])
    p32 = p32.at[OFF_WP, :].set(params['wp'][:, 0])
    p32 = p32.at[OFF_BP, :].set(jnp.full((E,), params['bp'][0, 0], jnp.float32))

    # per layer: first E rows = W_ih, next E rows = W_hh (sliced separately in-kernel)
    w_stack = jnp.concatenate([params['wih'], params['whh']], axis=1)   # (L, 2E, 4E)
    b_fused = params['bih'][:, 0, :] + params['bhh'][:, 0, :]           # (L, 4E)
    p128 = jnp.zeros((P128_ROWS, 4 * E), jnp.float32)
    p128 = p128.at[OFF_WL:OFF_WL + L * 2 * E, :].set(w_stack.reshape(L * 2 * E, 4 * E))
    p128 = p128.at[OFF_BL:OFF_BL + L, :].set(b_fused)
    return p32, p128


if __name__ == "__main__":
    key = jax.random.PRNGKey(0)
    NG = 2            # grid length (kept even -> both v7x TensorCores busy)
    B = 8             # graphs packed block-diagonally per grid step
    N_PER_G = 16      # nodes per graph
    N = N_PER_G * B   # 128 nodes per grid step -> full sublane/lane fill
    k_x, k_adj, k_p = jax.random.split(key, 3)

    x = jax.random.normal(k_x, (NG, N, DIN), dtype=jnp.float32)
    # zero-pad the 3-wide input to 8 lanes (weight rows beyond DIN are zero) —
    # mathematically identical to the 3-wide matmul.
    x_pad = jnp.zeros((NG, N, DIN_PAD), jnp.float32).at[:, :, :DIN].set(x)

    # block-diagonal random directed adjacency (edges only within each graph)
    gidx = jnp.arange(N) // N_PER_G
    block = (gidx[:, None] == gidx[None, :]).astype(jnp.float32)
    adj = (jax.random.uniform(k_adj, (NG, N, N)) < 0.4).astype(jnp.float32) * block[None]
    adj_t = jnp.swapaxes(adj, 1, 2).astype(jnp.bfloat16)     # (dst, src), bf16 (0/1 exact)

    pool_1 = (jnp.arange(B)[:, None] == gidx[None, :]).astype(jnp.float32)   # (B,N)
    pool_bn = jnp.tile(pool_1[None], (NG, 1, 1)).astype(jnp.bfloat16)        # sum pooling
    pool_nb = jnp.swapaxes(pool_bn, 1, 2)                                    # vnode broadcast

    params = init_params(k_p, DIN, EMB, NUM_LAYERS)
    p32, p128 = pack_params(params)

    out_reg, out_class = jax.jit(tess_forward)(x_pad, adj_t, pool_bn, pool_nb, p32, p128)
    jax.block_until_ready((out_reg, out_class))
    assert out_reg.shape == (NG * B,) and out_class.shape == (NG * B,)
    assert bool(jnp.all(jnp.isfinite(out_reg))) and bool(jnp.all(jnp.isfinite(out_class)))
    # TODO(synk): training-mode BatchNorm statistics / dropout RNG and combo_loss are not
    # part of the eval forward pass and are not implemented in the kernel.
    print("KERNEL_OK")
</pallas_src>

<mosaic_0001>
module attributes {stable_mosaic.version = 11 : i64} {
  func.func @tess_kernel(%arg0: i32, %arg1: memref<1x128x8xf32, #tpu.memory_space<vmem>>, %arg2: memref<1x128x128xbf16, #tpu.memory_space<vmem>>, %arg3: memref<1x8x128xbf16, #tpu.memory_space<vmem>>, %arg4: memref<1x128x8xbf16, #tpu.memory_space<vmem>>, %arg5: memref<152x32xf32, #tpu.memory_space<vmem>>, %arg6: memref<130x128xf32, #tpu.memory_space<vmem>>, %arg7: memref<1x8x128xf32, #tpu.memory_space<vmem>>) attributes {dimension_semantics = [#tpu.dimension_semantics<parallel>], iteration_bounds = array<i64: 2>, scalar_prefetch = 0 : i64, scratch_operands = 0 : i64, tpu.core_type = #tpu.core_type<tc>, window_params = [{transform_indices = @transform_0, window_bounds = array<i64: 1, 128, 8>}, {transform_indices = @transform_1, window_bounds = array<i64: 1, 128, 128>}, {transform_indices = @transform_2, window_bounds = array<i64: 1, 8, 128>}, {transform_indices = @transform_3, window_bounds = array<i64: 1, 128, 8>}, {pipeline_mode = #tpu.pipeline_mode<synchronous>, transform_indices = @transform_4, window_bounds = array<i64: 152, 32>}, {pipeline_mode = #tpu.pipeline_mode<synchronous>, transform_indices = @transform_5, window_bounds = array<i64: 130, 128>}, {transform_indices = @transform_6, window_bounds = array<i64: 1, 8, 128>}]} {
    %c0 = arith.constant 0 : index
    %c0_0 = arith.constant 0 : index
    %c0_1 = arith.constant 0 : index
    %0 = vector.load %arg1[%c0, %c0_0, %c0_1] : memref<1x128x8xf32, #tpu.memory_space<vmem>>, vector<1x128x8xf32>
    %1 = vector.shape_cast %0 : vector<1x128x8xf32> to vector<128x8xf32>
    %c0_2 = arith.constant 0 : index
    %c0_3 = arith.constant 0 : index
    %c0_4 = arith.constant 0 : index
    %2 = vector.load %arg2[%c0_2, %c0_3, %c0_4] : memref<1x128x128xbf16, #tpu.memory_space<vmem>>, vector<1x128x128xbf16>
    %3 = vector.shape_cast %2 : vector<1x128x128xbf16> to vector<128x128xbf16>
    %4 = arith.extf %3 : vector<128x128xbf16> to vector<128x128xf32>
    %c0_5 = arith.constant 0 : index
    %c0_6 = arith.constant 0 : index
    %c0_7 = arith.constant 0 : index
    %5 = vector.load %arg3[%c0_5, %c0_6, %c0_7] : memref<1x8x128xbf16, #tpu.memory_space<vmem>>, vector<1x8x128xbf16>
    %6 = vector.shape_cast %5 : vector<1x8x128xbf16> to vector<8x128xbf16>
    %7 = arith.extf %6 : vector<8x128xbf16> to vector<8x128xf32>
    %c0_8 = arith.constant 0 : index
    %c0_9 = arith.constant 0 : index
    %c0_10 = arith.constant 0 : index
    %8 = vector.load %arg4[%c0_8, %c0_9, %c0_10] : memref<1x128x8xbf16, #tpu.memory_space<vmem>>, vector<1x128x8xbf16>
    %9 = vector.shape_cast %8 : vector<1x128x8xbf16> to vector<128x8xbf16>
    %10 = arith.extf %9 : vector<128x8xbf16> to vector<128x8xf32>
    %cst = arith.constant 0.000000e+00 : f32
    %11 = vector.broadcast %cst : f32 to vector<128x128xf32>
    %12 = arith.cmpf ogt, %4, %11 : vector<128x128xf32>
    %c0_11 = arith.constant 0 : index
    %c0_12 = arith.constant 0 : index
    %13 = vector.load %arg5[%c0_11, %c0_12] : memref<152x32xf32, #tpu.memory_space<vmem>>, vector<8x32xf32>
    %c8 = arith.constant 8 : index
    %c0_13 = arith.constant 0 : index
    %14 = vector.load %arg5[%c8, %c0_13] : memref<152x32xf32, #tpu.memory_space<vmem>>, vector<1x32xf32>
    %cst_14 = arith.constant dense<0.000000e+00> : vector<128x32xf32>
    %15 = tpu.matmul %1, %13, %cst_14 {dimension_numbers = #tpu.dot_dimension_numbers<[1], [0], [0], [1], [0, 0, 1, 1], [], []>} : vector<128x8xf32>, vector<8x32xf32>, vector<128x32xf32> -> vector<128x32xf32>
    %16 = vector.broadcast %14 : vector<1x32xf32> to vector<128x32xf32>
    %17 = arith.addf %15, %16 : vector<128x32xf32>
    %cst_15 = arith.constant 0.000000e+00 : f32
    %18 = vector.broadcast %cst_15 : f32 to vector<128x32xf32>
    %cst_16 = arith.constant 0.000000e+00 : f32
    %19 = vector.broadcast %cst_16 : f32 to vector<128x32xf32>
    %cst_17 = arith.constant 0.000000e+00 : f32
    %20 = vector.broadcast %cst_17 : f32 to vector<8x32xf32>
    %cst_18 = arith.constant 0.000000e+00 : f32
    %21 = vector.broadcast %cst_18 : f32 to vector<128x32xf32>
    %cst_19 = arith.constant dense<0.000000e+00> : vector<128x32xf32>
    %22 = tpu.matmul %10, %20, %cst_19 {dimension_numbers = #tpu.dot_dimension_numbers<[1], [0], [0], [1], [0, 0, 1, 1], [], []>} : vector<128x8xf32>, vector<8x32xf32>, vector<128x32xf32> -> vector<128x32xf32>
    %23 = arith.addf %17, %22 : vector<128x32xf32>
    %24 = arith.addf %21, %23 : vector<128x32xf32>
    %c16 = arith.constant 16 : index
    %c0_20 = arith.constant 0 : index
    %25 = vector.load %arg5[%c16, %c0_20] : memref<152x32xf32, #tpu.memory_space<vmem>>, vector<32x32xf32>
    %c9 = arith.constant 9 : index
    %c0_21 = arith.constant 0 : index
    %26 = vector.load %arg5[%c9, %c0_21] : memref<152x32xf32, #tpu.memory_space<vmem>>, vector<1x32xf32>
    %c11 = arith.constant 11 : index
    %c0_22 = arith.constant 0 : index
    %27 = vector.load %arg5[%c11, %c0_22] : memref<152x32xf32, #tpu.memory_space<vmem>>, vector<1x32xf32>
    %c13 = arith.constant 13 : index
    %c0_23 = arith.constant 0 : index
    %28 = vector.load %arg5[%c13, %c0_23] : memref<152x32xf32, #tpu.memory_space<vmem>>, vector<1x32xf32>
    %cst_24 = arith.constant dense<0.000000e+00> : vector<128x32xf32>
    %29 = tpu.matmul %23, %25, %cst_24 {dimension_numbers = #tpu.dot_dimension_numbers<[1], [0], [0], [1], [0, 0, 1, 1], [], []>} : vector<128x32xf32>, vector<32x32xf32>, vector<128x32xf32> -> vector<128x32xf32>
    %30 = vector.broadcast %27 : vector<1x32xf32> to vector<128x32xf32>
    %31 = arith.mulf %29, %30 : vector<128x32xf32>
    %cst_25 = arith.constant dense<0.000000e+00> : vector<128xf32>
    %32 = vector.multi_reduction <add>, %31, %cst_25 [1] : vector<128x32xf32> to vector<128xf32>
    %33 = vector.shape_cast %32 : vector<128xf32> to vector<128x1xf32>
    %cst_26 = arith.constant dense<0.000000e+00> : vector<1x128xf32>
    %34 = tpu.matmul %26, %29, %cst_26 {dimension_numbers = #tpu.dot_dimension_numbers<[1], [1], [0], [0], [0, 0, 1, 0], [], []>} : vector<1x32xf32>, vector<128x32xf32>, vector<1x128xf32> -> vector<1x128xf32>
    %35 = vector.broadcast %33 : vector<128x1xf32> to vector<128x128xf32>
    %36 = vector.broadcast %34 : vector<1x128xf32> to vector<128x128xf32>
    %37 = arith.addf %35, %36 : vector<128x128xf32>
    %cst_27 = arith.constant 0.000000e+00 : f32
    %38 = vector.broadcast %cst_27 : f32 to vector<128x128xf32>
    %39 = arith.cmpf ogt, %37, %38 : vector<128x128xf32>
    %cst_28 = arith.constant 2.000000e-01 : f32
    %40 = vector.broadcast %cst_28 : f32 to vector<128x128xf32>
    %41 = arith.mulf %40, %37 : vector<128x128xf32>
    %42 = arith.select %39, %37, %41 : vector<128x128xi1>, vector<128x128xf32>
    %cst_29 = arith.constant -1.000000e+30 : f32
    %43 = vector.broadcast %cst_29 : f32 to vector<128x128xf32>
    %44 = arith.select %12, %42, %43 : vector<128x128xi1>, vector<128x128xf32>
    %cst_30 = arith.constant dense<0xFF800000> : vector<128xf32>
    %45 = vector.multi_reduction <maximumf>, %44, %cst_30 [1] : vector<128x128xf32> to vector<128xf32>
    %46 = vector.shape_cast %45 : vector<128xf32> to vector<128x1xf32>
    %47 = vector.broadcast %46 : vector<128x1xf32> to vector<128x128xf32>
    %48 = arith.subf %44, %47 : vector<128x128xf32>
    %49 = math.exp %48 : vector<128x128xf32>
    %cst_31 = arith.constant 0.000000e+00 : f32
    %50 = vector.broadcast %cst_31 : f32 to vector<128x128xf32>
    %51 = arith.select %12, %49, %50 : vector<128x128xi1>, vector<128x128xf32>
    %cst_32 = arith.constant dense<0.000000e+00> : vector<128xf32>
    %52 = vector.multi_reduction <add>, %51, %cst_32 [1] : vector<128x128xf32> to vector<128xf32>
    %53 = vector.shape_cast %52 : vector<128xf32> to vector<128x1xf32>
    %cst_33 = arith.constant 0.000000e+00 : f32
    %54 = vector.broadcast %cst_33 : f32 to vector<128x1xf32>
    %55 = arith.cmpf ogt, %53, %54 : vector<128x1xf32>
    %cst_34 = arith.constant 1.000000e+00 : f32
    %56 = vector.broadcast %cst_34 : f32 to vector<128x1xf32>
    %57 = arith.select %55, %53, %56 : vector<128x1xi1>, vector<128x1xf32>
    %58 = tpu.reciprocal %57 {approx = true} : vector<128x1xf32> -> vector<128x1xf32>
    %59 = vector.broadcast %58 : vector<128x1xf32> to vector<128x128xf32>
    %60 = arith.mulf %51, %59 : vector<128x128xf32>
    %cst_35 = arith.constant dense<0.000000e+00> : vector<128x32xf32>
    %61 = tpu.matmul %60, %29, %cst_35 {dimension_numbers = #tpu.dot_dimension_numbers<[1], [0], [0], [1], [0, 0, 1, 1], [], []>} : vector<128x128xf32>, vector<128x32xf32>, vector<128x32xf32> -> vector<128x32xf32>
    %62 = vector.broadcast %28 : vector<1x32xf32> to vector<128x32xf32>
    %63 = arith.addf %61, %62 : vector<128x32xf32>
    %64 = math.tanh %63 : vector<128x32xf32>
    %c0_36 = arith.constant 0 : index
    %c0_37 = arith.constant 0 : index
    %65 = vector.load %arg6[%c0_36, %c0_37] : memref<130x128xf32, #tpu.memory_space<vmem>>, vector<32x128xf32>
    %c32 = arith.constant 32 : index
    %c0_38 = arith.constant 0 : index
    %66 = vector.load %arg6[%c32, %c0_38] : memref<130x128xf32, #tpu.memory_space<vmem>>, vector<32x128xf32>
    %c128 = arith.constant 128 : index
    %c0_39 = arith.constant 0 : index
    %67 = vector.load %arg6[%c128, %c0_39] : memref<130x128xf32, #tpu.memory_space<vmem>>, vector<1x128xf32>
    %cst_40 = arith.constant dense<0.000000e+00> : vector<128x128xf32>
    %68 = tpu.matmul %64, %65, %cst_40 {dimension_numbers = #tpu.dot_dimension_numbers<[1], [0], [0], [1], [0, 0, 1, 1], [], []>} : vector<128x32xf32>, vector<32x128xf32>, vector<128x128xf32> -> vector<128x128xf32>
    %cst_41 = arith.constant dense<0.000000e+00> : vector<128x128xf32>
    %69 = tpu.matmul %18, %66, %cst_41 {dimension_numbers = #tpu.dot_dimension_numbers<[1], [0], [0], [1], [0, 0, 1, 1], [], []>} : vector<128x32xf32>, vector<32x128xf32>, vector<128x128xf32> -> vector<128x128xf32>
    %70 = arith.addf %68, %69 : vector<128x128xf32>
    %71 = vector.broadcast %67 : vector<1x128xf32> to vector<128x128xf32>
    %72 = arith.addf %70, %71 : vector<128x128xf32>
    %73 = arith.negf %72 : vector<128x128xf32>
    %74 = math.exp %73 : vector<128x128xf32>
    %cst_42 = arith.constant 1.000000e+00 : f32
    %75 = vector.broadcast %cst_42 : f32 to vector<128x128xf32>
    %76 = arith.addf %75, %74 : vector<128x128xf32>
    %77 = arith.divf %75, %76 : vector<128x128xf32>
    %78 = vector.extract_strided_slice %77 {offsets = [0, 0], sizes = [128, 32], strides = [1, 1]} : vector<128x128xf32> to vector<128x32xf32>
    %79 = vector.extract_strided_slice %77 {offsets = [0, 32], sizes = [128, 32], strides = [1, 1]} : vector<128x128xf32> to vector<128x32xf32>
    %80 = vector.extract_strided_slice %77 {offsets = [0, 96], sizes = [128, 32], strides = [1, 1]} : vector<128x128xf32> to vector<128x32xf32>
    %81 = vector.extract_strided_slice %72 {offsets = [0, 64], sizes = [128, 32], strides = [1, 1]} : vector<128x128xf32> to vector<128x32xf32>
    %82 = math.tanh %81 : vector<128x32xf32>
    %83 = arith.mulf %79, %19 : vector<128x32xf32>
    %84 = arith.mulf %78, %82 : vector<128x32xf32>
    %85 = arith.addf %83, %84 : vector<128x32xf32>
    %86 = math.tanh %85 : vector<128x32xf32>
    %87 = arith.mulf %80, %86 : vector<128x32xf32>
    %cst_43 = arith.constant 0.999994993 : f32
    %88 = vector.broadcast %cst_43 : f32 to vector<128x32xf32>
    %89 = arith.mulf %87, %88 : vector<128x32xf32>
    %cst_44 = arith.constant 0.000000e+00 : f32
    %90 = vector.broadcast %cst_44 : f32 to vector<128x32xf32>
    %91 = arith.maximumf %89, %90 : vector<128x32xf32>
    %c80 = arith.constant 80 : index
    %c0_45 = arith.constant 0 : index
    %92 = vector.load %arg5[%c80, %c0_45] : memref<152x32xf32, #tpu.memory_space<vmem>>, vector<32x32xf32>
    %c15 = arith.constant 15 : index
    %c0_46 = arith.constant 0 : index
    %93 = vector.load %arg5[%c15, %c0_46] : memref<152x32xf32, #tpu.memory_space<vmem>>, vector<1x32xf32>
    %c112 = arith.constant 112 : index
    %c0_47 = arith.constant 0 : index
    %94 = vector.load %arg5[%c112, %c0_47] : memref<152x32xf32, #tpu.memory_space<vmem>>, vector<32x32xf32>
    %c144 = arith.constant 144 : index
    %c0_48 = arith.constant 0 : index
    %95 = vector.load %arg5[%c144, %c0_48] : memref<152x32xf32, #tpu.memory_space<vmem>>, vector<1x32xf32>
    %cst_49 = arith.constant dense<0.000000e+00> : vector<8x32xf32>
    %96 = tpu.matmul %7, %23, %cst_49 {dimension_numbers = #tpu.dot_dimension_numbers<[1], [0], [0], [1], [0, 0, 1, 1], [], []>} : vector<8x128xf32>, vector<128x32xf32>, vector<8x32xf32> -> vector<8x32xf32>
    %97 = arith.addf %96, %20 : vector<8x32xf32>
    %cst_50 = arith.constant dense<0.000000e+00> : vector<8x32xf32>
    %98 = tpu.matmul %97, %92, %cst_50 {dimension_numbers = #tpu.dot_dimension_numbers<[1], [0], [0], [1], [0, 0, 1, 1], [], []>} : vector<8x32xf32>, vector<32x32xf32>, vector<8x32xf32> -> vector<8x32xf32>
    %99 = vector.broadcast %93 : vector<1x32xf32> to vector<8x32xf32>
    %100 = arith.addf %98, %99 : vector<8x32xf32>
    %cst_51 = arith.constant 0.999994993 : f32
    %101 = vector.broadcast %cst_51 : f32 to vector<8x32xf32>
    %102 = arith.mulf %100, %101 : vector<8x32xf32>
    %cst_52 = arith.constant 0.000000e+00 : f32
    %103 = vector.broadcast %cst_52 : f32 to vector<8x32xf32>
    %104 = arith.maximumf %102, %103 : vector<8x32xf32>
    %cst_53 = arith.constant dense<0.000000e+00> : vector<8x32xf32>
    %105 = tpu.matmul %104, %94, %cst_53 {dimension_numbers = #tpu.dot_dimension_numbers<[1], [0], [0], [1], [0, 0, 1, 1], [], []>} : vector<8x32xf32>, vector<32x32xf32>, vector<8x32xf32> -> vector<8x32xf32>
    %106 = vector.broadcast %95 : vector<1x32xf32> to vector<8x32xf32>
    %107 = arith.addf %105, %106 : vector<8x32xf32>
    %cst_54 = arith.constant 0.999994993 : f32
    %108 = vector.broadcast %cst_54 : f32 to vector<8x32xf32>
    %109 = arith.mulf %107, %108 : vector<8x32xf32>
    %cst_55 = arith.constant 0.000000e+00 : f32
    %110 = vector.broadcast %cst_55 : f32 to vector<8x32xf32>
    %111 = arith.maximumf %109, %110 : vector<8x32xf32>
    %cst_56 = arith.constant dense<0.000000e+00> : vector<128x32xf32>
    %112 = tpu.matmul %10, %111, %cst_56 {dimension_numbers = #tpu.dot_dimension_numbers<[1], [0], [0], [1], [0, 0, 1, 1], [], []>} : vector<128x8xf32>, vector<8x32xf32>, vector<128x32xf32> -> vector<128x32xf32>
    %113 = arith.addf %91, %112 : vector<128x32xf32>
    %114 = arith.addf %24, %113 : vector<128x32xf32>
    %cst_57 = arith.constant dense<0.000000e+00> : vector<8x32xf32>
    %115 = tpu.matmul %7, %114, %cst_57 {dimension_numbers = #tpu.dot_dimension_numbers<[1], [0], [0], [1], [0, 0, 1, 1], [], []>} : vector<8x128xf32>, vector<128x32xf32>, vector<8x32xf32> -> vector<8x32xf32>
    %c145 = arith.constant 145 : index
    %c0_58 = arith.constant 0 : index
    %116 = vector.load %arg5[%c145, %c0_58] : memref<152x32xf32, #tpu.memory_space<vmem>>, vector<1x32xf32>
    %c146 = arith.constant 146 : index
    %c0_59 = arith.constant 0 : index
    %117 = vector.load %arg5[%c146, %c0_59] : memref<152x32xf32, #tpu.memory_space<vmem>>, vector<1x32xf32>
    %118 = vector.broadcast %116 : vector<1x32xf32> to vector<8x32xf32>
    %119 = arith.mulf %115, %118 : vector<8x32xf32>
    %cst_60 = arith.constant dense<0.000000e+00> : vector<8xf32>
    %120 = vector.multi_reduction <add>, %119, %cst_60 [1] : vector<8x32xf32> to vector<8xf32>
    %121 = vector.shape_cast %120 : vector<8xf32> to vector<8x1xf32>
    %122 = vector.extract_strided_slice %117 {offsets = [0, 0], sizes = [1, 1], strides = [1, 1]} : vector<1x32xf32> to vector<1x1xf32>
    %123 = vector.broadcast %122 : vector<1x1xf32> to vector<8x1xf32>
    %124 = arith.addf %121, %123 : vector<8x1xf32>
    %125 = tpu.iota {dimensions = array<i32: 1>} : vector<8x128xi32>
    %cst_61 = arith.constant 0.000000e+00 : f32
    %cst_62 = arith.constant 5.000000e+03 : f32
    %126 = vector.broadcast %cst_61 : f32 to vector<8x1xf32>
    %127 = arith.maximumf %126, %124 : vector<8x1xf32>
    %128 = vector.broadcast %cst_62 : f32 to vector<8x1xf32>
    %129 = arith.minimumf %128, %127 : vector<8x1xf32>
    %c0_i32 = arith.constant 0 : i32
    %130 = vector.broadcast %c0_i32 : i32 to vector<8x128xi32>
    %131 = arith.cmpi eq, %125, %130 : vector<8x128xi32>
    %c1_i32 = arith.constant 1 : i32
    %132 = vector.broadcast %c1_i32 : i32 to vector<8x128xi32>
    %133 = arith.cmpi eq, %125, %132 : vector<8x128xi32>
    %cst_63 = arith.constant 0.000000e+00 : f32
    %134 = vector.shape_cast %124 : vector<8x1xf32> to vector<8x1xf32>
    %135 = vector.broadcast %134 : vector<8x1xf32> to vector<8x128xf32>
    %136 = vector.broadcast %cst_63 : f32 to vector<8x128xf32>
    %137 = arith.select %133, %135, %136 : vector<8x128xi1>, vector<8x128xf32>
    %138 = vector.shape_cast %129 : vector<8x1xf32> to vector<8x1xf32>
    %139 = vector.broadcast %138 : vector<8x1xf32> to vector<8x128xf32>
    %140 = arith.select %131, %139, %137 : vector<8x128xi1>, vector<8x128xf32>
    %c0_64 = arith.constant 0 : index
    %c0_65 = arith.constant 0 : index
    %c0_66 = arith.constant 0 : index
    %141 = vector.load %arg7[%c0_64, %c0_65, %c0_66] : memref<1x8x128xf32, #tpu.memory_space<vmem>>, vector<1x8x128xf32>
    %142 = vector.shape_cast %141 : vector<1x8x128xf32> to vector<8x128xf32>
    %143 = vector.shape_cast %140 : vector<8x128xf32> to vector<1x8x128xf32>
    tpu.vector_store %arg7[%c0_64, %c0_65, %c0_66], %143 {strides = array<i32>} : memref<1x8x128xf32, #tpu.memory_space<vmem>>, vector<1x8x128xf32>,
    return
  }
  func.func @transform_0(%arg0: i32) -> (i32, i32, i32) {
    %c0_i32 = arith.constant 0 : i32
    %c0_i32_0 = arith.constant 0 : i32
    %c0_i32_1 = arith.constant 0 : i32
    return %arg0, %c0_i32, %c0_i32_0 : i32, i32, i32
  }
  func.func @transform_1(%arg0: i32) -> (i32, i32, i32) {
    %c0_i32 = arith.constant 0 : i32
    %c0_i32_0 = arith.constant 0 : i32
    %c0_i32_1 = arith.constant 0 : i32
    return %arg0, %c0_i32, %c0_i32_0 : i32, i32, i32
  }
  func.func @transform_2(%arg0: i32) -> (i32, i32, i32) {
    %c0_i32 = arith.constant 0 : i32
    %c0_i32_0 = arith.constant 0 : i32
    %c0_i32_1 = arith.constant 0 : i32
    return %arg0, %c0_i32, %c0_i32_0 : i32, i32, i32
  }
  func.func @transform_3(%arg0: i32) -> (i32, i32, i32) {
    %c0_i32 = arith.constant 0 : i32
    %c0_i32_0 = arith.constant 0 : i32
    %c0_i32_1 = arith.constant 0 : i32
    return %arg0, %c0_i32, %c0_i32_0 : i32, i32, i32
  }
  func.func @transform_4(%arg0: i32) -> (i32, i32) {
    %c0_i32 = arith.constant 0 : i32
    %c0_i32_0 = arith.constant 0 : i32
    %c0_i32_1 = arith.constant 0 : i32
    return %c0_i32, %c0_i32_0 : i32, i32
  }
  func.func @transform_5(%arg0: i32) -> (i32, i32) {
    %c0_i32 = arith.constant 0 : i32
    %c0_i32_0 = arith.constant 0 : i32
    %c0_i32_1 = arith.constant 0 : i32
    return %c0_i32, %c0_i32_0 : i32, i32
  }
  func.func @transform_6(%arg0: i32) -> (i32, i32, i32) {
    %c0_i32 = arith.constant 0 : i32
    %c0_i32_0 = arith.constant 0 : i32
    %c0_i32_1 = arith.constant 0 : i32
    return %arg0, %c0_i32, %c0_i32_0 : i32, i32, i32
  }
}

</mosaic_0001>

<llo_original>
// kernel: squeeze.3
$region0: #{squeeze.3}
  %s0 = inlined_call_operand.vmem [shape: f32[2,8], index: 0, kind: input, shape index: {}]
  %s1 = inlined_call_operand.hbm [shape: f32[16], index: 1, kind: output, shape index: {}]
  $region1: #{squeeze.3} parent=0
    #allocation0 [shape = 'u8[512]{0}', space=vmem, size = 0x400, scoped, tag = 'operand span for operand 1']
    #allocation1 [shape = 's32[1]{0}', space=sflag, size = 0x4, scoped, tag = 'scoped memory for squeeze.3']
    #allocation2 [shape = 'u8[4096]{0}', space=vmem, size = 0x1000, scoped, tag = 'scoped mem for output reshape']
    #allocation3 [shape = 'u8[4096]{0}', space=vmem, size = 0x1000, scoped, tag = 'scoped mem for input reshape']
    %2 = vsyncpa [#allocation1], 0
    %s4 = sshll.u32 1, 2
    %s5 = ssub.s32 %s4, 1
    %v6 = vld [vmem:[%s0] sm:%s5]
    %7 = vst [vmem:[#allocation3] sm:%s5] %v6
    %v8 = vld [vmem:[#allocation3] sm:$0x1]
    %vm9 = vcmask 64512
    %10 = vst.msk [vmem:[#allocation2] sm:$0x1] %vm9, %v8
    %s11 = scalar_lea.vmem [#allocation3], 1
    %v12 = vld [vmem:[%s11] sm:$0x1]
    %13 = vrot.lane.b32.xlu0 %v12, 8
    %v14 = vpop.permute.xlu0 %13
    %vm15 = vcmask 130112
    %16 = vst.msk [vmem:[#allocation2] sm:$0x1] %vm15, %v14
    %s18 = sshll.u32 1, 1
    %s19 = ssub.s32 %s18, 1
    %v21 = vld [vmem:[#allocation2] sm:%s19]
    %s22 = sshll.u32 1, 1
    %s23 = ssub.s32 %s22, 1
    %24 = vst [vmem:[#allocation0] sm:%s23] %v21
    %s26 = ssub.s32 16, 16
    %27 = vsyncadd [#allocation1], %s26
    %s29 = sshll.u32 [#allocation0], 4
    %s30 = int_to_ptr.vmem [resolvable:$true] %s29
    %32 = dma.vmem_to_hbm [thread:$0]  %s30, 16, %s1, [#allocation1]
    %33 = dma.done [#allocation1], 16
    %34 = vsyncpa [#allocation1], 1

// kernel: tess_forward.1
$region0: #{tess_forward.1}
  #allocation0 [shape = 'u32[]', space=smem, size = 0x4, offset = 0x4, fixed_abs, tag = 'smem constant byte address 0x4 - core index']
  #allocation1 [shape = 'u32[144,128]{1,0:T(1,128)}', space=vmem, size = 0x12000, scoped, tag = 'internal scratch']
  %s0 = inlined_call_operand.vmem [shape: f32[2,128,8], index: 0, kind: input, shape index: {}]
  %s1 = inlined_call_operand.vmem [shape: bf16[2,128,128], index: 1, kind: input, shape index: {}]
  %s2 = inlined_call_operand.vmem [shape: bf16[2,8,128], index: 2, kind: input, shape index: {}]
  %s3 = inlined_call_operand.vmem [shape: bf16[2,128,8], index: 3, kind: input, shape index: {}]
  %s4 = inlined_call_operand.vmem [shape: f32[152,32], index: 4, kind: input, shape index: {}]
  %s5 = inlined_call_operand.vmem [shape: f32[130,128], index: 5, kind: input, shape index: {}]
  %s6 = inlined_call_operand.vmem [shape: f32[2,8,128], index: 6, kind: output, shape index: {}]
  %s7 = sld [smem:[#allocation0]]
  $region57: #{tess_forward.1} parent=0
    _
  %s9 = ssub.s32 1, %s7
  %s10 = scalar_select 0, %s9, %s7
  loop: start=0, step=1, limit=4
  $region2: #{tess_forward.1} parent=0 // loop_pre_header
    _
  $region3: #{tess_forward.1} parent=0 // loop_header
    %s12 = sphi 0, %s16
    %p13 = scmp.ge.s32.totalorder %s12, 4
    %s22 = sphi 0, %s24
    %s25 = sphi 0, %s22
    %s26 = sphi 0, %s25
    %s42 = sphi 0, %s26
    %s48 = sphi 0, %s50
    %s51 = sphi 0, %s48
    %s52 = sphi 0, %s51
    %s68 = sphi 0, %s52
    %s74 = sphi 0, %s76
    %s77 = sphi 0, %s74
    %s78 = sphi 0, %s77
    %s94 = sphi 0, %s78
    %s100 = sphi 0, %s102
    %s103 = sphi 0, %s100
    %s104 = sphi 0, %s103
    %s120 = sphi 0, %s104
    %s124 = sphi 0, %s124
    %s126 = sphi 0, %s124
    %s127 = sphi 0, %s126
    %s141 = sphi 0, %s127
    %s145 = sphi 0, %s145
    %s147 = sphi 0, %s145
    %s148 = sphi 0, %s147
    %s162 = sphi 0, %s148
    %s168 = sphi 0, %s170
    %s171 = sphi 0, %s168
    %s172 = sphi 0, %s171
    %s188 = sphi 0, %s172
  $region4: #{tess_forward.1} parent=0 // loop_header_branch
    %15 = sbr.rel (%p13) target = $region8
  $region5: #{tess_forward.1} parent=0 // loop_body
    %s17 = ssub.s32 %s12, 1
    %s18 = ssub.s32 %s12, 2
    %s19 = sadd.s32 %s12, 1
    %s20 = ssub.s32 %s12, %s19
    %p21 = scmp.eq.s32.totalorder %s20, 0
    %s23 = sadd.s32 %s22, 1
    %s24 = scalar_select %p21, %s22, %s23
    %p27 = pneg %p21
    %p28 = scmp.eq.s32.totalorder %s12, 1
    %p29 = por %p27, %p28
    %p30 = scmp.ne.s32.totalorder %s22, %s25
    %p31 = scmp.eq.s32.totalorder %s12, 0
    %p32 = por %p30, %p31
    %p33 = scmp.ne.s32.totalorder %s22, %s25
    %p34 = scmp.eq.s32.totalorder %s17, 1
    %p35 = por %p33, %p34
    %p36 = scmp.ne.s32.totalorder %s25, %s26
    %p37 = scmp.eq.s32.totalorder %s17, 0
    %p38 = por %p36, %p37
    %p39 = scmp.ne.s32.totalorder %s25, %s26
    %p40 = scmp.eq.s32.totalorder %s18, 1
    %p41 = por %p39, %p40
    %p43 = scmp.ne.s32.totalorder %s26, %s42
    %p44 = scmp.eq.s32.totalorder %s18, 0
    %p45 = por %p43, %p44
    %s46 = ssub.s32 %s12, %s19
    %p47 = scmp.eq.s32.totalorder %s46, 0
    %s49 = sadd.s32 %s48, 1
    %s50 = scalar_select %p47, %s48, %s49
    %p53 = pneg %p47
    %p54 = scmp.eq.s32.totalorder %s12, 1
    %p55 = por %p53, %p54
    %p56 = scmp.ne.s32.totalorder %s48, %s51
    %p57 = scmp.eq.s32.totalorder %s12, 0
    %p58 = por %p56, %p57
    %p59 = scmp.ne.s32.totalorder %s48, %s51
    %p60 = scmp.eq.s32.totalorder %s17, 1
    %p61 = por %p59, %p60
    %p62 = scmp.ne.s32.totalorder %s51, %s52
    %p63 = scmp.eq.s32.totalorder %s17, 0
    %p64 = por %p62, %p63
    %p65 = scmp.ne.s32.totalorder %s51, %s52
    %p66 = scmp.eq.s32.totalorder %s18, 1
    %p67 = por %p65, %p66
    %p69 = scmp.ne.s32.totalorder %s52, %s68
    %p70 = scmp.eq.s32.totalorder %s18, 0
    %p71 = por %p69, %p70
    %s72 = ssub.s32 %s12, %s19
    %p73 = scmp.eq.s32.totalorder %s72, 0
    %s75 = sadd.s32 %s74, 1
    %s76 = scalar_select %p73, %s74, %s75
    %p79 = pneg %p73
    %p80 = scmp.eq.s32.totalorder %s12, 1
    %p81 = por %p79, %p80
    %p82 = scmp.ne.s32.totalorder %s74, %s77
    %p83 = scmp.eq.s32.totalorder %s12, 0
    %p84 = por %p82, %p83
    %p85 = scmp.ne.s32.totalorder %s74, %s77
    %p86 = scmp.eq.s32.totalorder %s17, 1
    %p87 = por %p85, %p86
    %p88 = scmp.ne.s32.totalorder %s77, %s78
    %p89 = scmp.eq.s32.totalorder %s17, 0
    %p90 = por %p88, %p89
    %p91 = scmp.ne.s32.totalorder %s77, %s78
    %p92 = scmp.eq.s32.totalorder %s18, 1
    %p93 = por %p91, %p92
    %p95 = scmp.ne.s32.totalorder %s78, %s94
    %p96 = scmp.eq.s32.totalorder %s18, 0
    %p97 = por %p95, %p96
    %s98 = ssub.s32 %s12, %s19
    %p99 = scmp.eq.s32.totalorder %s98, 0
    %s101 = sadd.s32 %s100, 1
    %s102 = scalar_select %p99, %s100, %s101
    %p105 = pneg %p99
    %p106 = scmp.eq.s32.totalorder %s12, 1
    %p107 = por %p105, %p106
    %p108 = scmp.ne.s32.totalorder %s100, %s103
    %p109 = scmp.eq.s32.totalorder %s12, 0
    %p110 = por %p108, %p109
    %p111 = scmp.ne.s32.totalorder %s100, %s103
    %p112 = scmp.eq.s32.totalorder %s17, 1
    %p113 = por %p111, %p112
    %p114 = scmp.ne.s32.totalorder %s103, %s104
    %p115 = scmp.eq.s32.totalorder %s17, 0
    %p116 = por %p114, %p115
    %p117 = scmp.ne.s32.totalorder %s103, %s104
    %p118 = scmp.eq.s32.totalorder %s18, 1
    %p119 = por %p117, %p118
    %p121 = scmp.ne.s32.totalorder %s104, %s120
    %p122 = scmp.eq.s32.totalorder %s18, 0
    %p123 = por %p121, %p122
    %s125 = sadd.s32 %s124, 1
    %p128 = scmp.eq.s32.totalorder %s12, 1
    %p129 = scmp.ne.s32.totalorder %s124, %s126
    %p130 = scmp.eq.s32.totalorder %s12, 0
    %p131 = por %p129, %p130
    %p132 = scmp.ne.s32.totalorder %s124, %s126
    %p133 = scmp.eq.s32.totalorder %s17, 1
    %p134 = por %p132, %p133
    %p135 = scmp.ne.s32.totalorder %s126, %s127
    %p136 = scmp.eq.s32.totalorder %s17, 0
    %p137 = por %p135, %p136
    %p138 = scmp.ne.s32.totalorder %s126, %s127
    %p139 = scmp.eq.s32.totalorder %s18, 1
    %p140 = por %p138, %p139
    %p142 = scmp.ne.s32.totalorder %s127, %s141
    %p143 = scmp.eq.s32.totalorder %s18, 0
    %p144 = por %p142, %p143
    %s146 = sadd.s32 %s145, 1
    %p149 = scmp.eq.s32.totalorder %s12, 1
    %p150 = scmp.ne.s32.totalorder %s145, %s147
    %p151 = scmp.eq.s32.totalorder %s12, 0
    %p152 = por %p150, %p151
    %p153 = scmp.ne.s32.totalorder %s145, %s147
    %p154 = scmp.eq.s32.totalorder %s17, 1
    %p155 = por %p153, %p154
    %p156 = scmp.ne.s32.totalorder %s147, %s148
    %p157 = scmp.eq.s32.totalorder %s17, 0
    %p158 = por %p156, %p157
    %p159 = scmp.ne.s32.totalorder %s147, %s148
    %p160 = scmp.eq.s32.totalorder %s18, 1
    %p161 = por %p159, %p160
    %p163 = scmp.ne.s32.totalorder %s148, %s162
    %p164 = scmp.eq.s32.totalorder %s18, 0
    %p165 = por %p163, %p164
    %s166 = ssub.s32 %s12, %s19
    %p167 = scmp.eq.s32.totalorder %s166, 0
    %s169 = sadd.s32 %s168, 1
    %s170 = scalar_select %p167, %s168, %s169
    %p173 = pneg %p167
    %p174 = scmp.eq.s32.totalorder %s12, 1
    %p175 = por %p173, %p174
    %p176 = scmp.ne.s32.totalorder %s168, %s171
    %p177 = scmp.eq.s32.totalorder %s12, 0
    %p178 = por %p176, %p177
    %p179 = scmp.ne.s32.totalorder %s168, %s171
    %p180 = scmp.eq.s32.totalorder %s17, 1
    %p181 = por %p179, %p180
    %p182 = scmp.ne.s32.totalorder %s171, %s172
    %p183 = scmp.eq.s32.totalorder %s17, 0
    %p184 = por %p182, %p183
    %p185 = scmp.ne.s32.totalorder %s171, %s172
    %p186 = scmp.eq.s32.totalorder %s18, 1
    %p187 = por %p185, %p186
    %p189 = scmp.ne.s32.totalorder %s172, %s188
    %p190 = scmp.eq.s32.totalorder %s18, 0
    %p191 = por %p189, %p190
    %p192 = scmp.le.s32.totalorder 1, %s12
    %p193 = scmp.lt.s32.totalorder %s12, 3
    %p194 = pnand %p192, %p193
    %p195 = pneg %p194
    // Predicated region
    $region9: #{tess_forward.1} parent=5 // pred_check
      _
    $region10: #{tess_forward.1} parent=5 // pred_check_branch
      %197 = sbr.rel (%p194) target = $region12
    $region11: #{tess_forward.1} parent=5 // pred_region
      %s198 = ssub.s32 %s12, 1
      // Predicated region
      $region13: #{tess_forward.1} parent=11 // pred_check
        %p199 = pneg %p137
      $region14: #{tess_forward.1} parent=11 // pred_check_branch
        %201 = sbr.rel (%p199) target = $region16
      $region15: #{tess_forward.1} parent=11 // pred_region
        _
      $region16: #{tess_forward.1} parent=11 // pred_fallthru
        _
      // Predicated region
      $region17: #{tess_forward.1} parent=11 // pred_check
        %p202 = pneg %p158
      $region18: #{tess_forward.1} parent=11 // pred_check_branch
        %204 = sbr.rel (%p202) target = $region20
      $region19: #{tess_forward.1} parent=11 // pred_region
        _
      $region20: #{tess_forward.1} parent=11 // pred_fallthru
        _
    $region12: #{tess_forward.1} parent=5 // pred_fallthru
      _
    %p205 = scmp.lt.s32.totalorder %s12, 2
    // Predicated region
    $region21: #{tess_forward.1} parent=5 // pred_check
      %p206 = pneg %p205
    $region22: #{tess_forward.1} parent=5 // pred_check_branch
      %208 = sbr.rel (%p206) target = $region24
    $region23: #{tess_forward.1} parent=5 // pred_region
      // Predicated region
      $region25: #{tess_forward.1} parent=23 // pred_check
        %p209 = pneg %p32
      $region26: #{tess_forward.1} parent=23 // pred_check_branch
        %211 = sbr.rel (%p209) target = $region28
      $region27: #{tess_forward.1} parent=23 // pred_region
        %p212 = scmp.lt.s32.totalorder %s12, 1
        %s213 = scalar_select %p212, %s12, 1
        %s214 = smul.addr %s213, 16
        %s215 = smul.addr %s214, 8
        %s216 = scalar_lea.vmem %s0, %s215
      $region28: #{tess_forward.1} parent=23 // pred_fallthru
        _
      // Predicated region
      $region29: #{tess_forward.1} parent=23 // pred_check
        %p217 = pneg %p58
      $region30: #{tess_forward.1} parent=23 // pred_check_branch
        %219 = sbr.rel (%p217) target = $region32
      $region31: #{tess_forward.1} parent=23 // pred_region
        %p220 = scmp.lt.s32.totalorder %s12, 1
        %s221 = scalar_select %p220, %s12, 1
        %s222 = smul.addr %s221, 16
        %s223 = smul.addr %s222, 4
        %s224 = scalar_lea.vmem %s1, %s223
      $region32: #{tess_forward.1} parent=23 // pred_fallthru
        _
      // Predicated region
      $region33: #{tess_forward.1} parent=23 // pred_check
        %p225 = pneg %p84
      $region34: #{tess_forward.1} parent=23 // pred_check_branch
        %227 = sbr.rel (%p225) target = $region36
      $region35: #{tess_forward.1} parent=23 // pred_region
        %p228 = scmp.lt.s32.totalorder %s12, 1
        %s229 = scalar_select %p228, %s12, 1
        %s230 = smul.addr %s229, 4
        %s231 = scalar_lea.vmem %s2, %s230
      $region36: #{tess_forward.1} parent=23 // pred_fallthru
        _
      // Predicated region
      $region37: #{tess_forward.1} parent=23 // pred_check
        %p232 = pneg %p110
      $region38: #{tess_forward.1} parent=23 // pred_check_branch
        %234 = sbr.rel (%p232) target = $region40
      $region39: #{tess_forward.1} parent=23 // pred_region
        %p235 = scmp.lt.s32.totalorder %s12, 1
        %s236 = scalar_select %p235, %s12, 1
        %s237 = smul.addr %s236, 16
        %s238 = smul.addr %s237, 4
        %s239 = scalar_lea.vmem %s3, %s238
      $region40: #{tess_forward.1} parent=23 // pred_fallthru
        _
    $region24: #{tess_forward.1} parent=5 // pred_fallthru
      _
    %p240 = scmp.le.s32.totalorder 1, %s12
    %p241 = scmp.lt.s32.totalorder %s12, 3
    %p242 = pnand %p240, %p241
    %p243 = pneg %p242
    // Predicated region
    $region41: #{tess_forward.1} parent=5 // pred_check
      _
    $region42: #{tess_forward.1} parent=5 // pred_check_branch
      %245 = sbr.rel (%p242) target = $region44
    $region43: #{tess_forward.1} parent=5 // pred_region
      %s246 = ssub.s32 %s12, 1
      %p247 = scmp.lt.s32.totalorder %s17, 1
      %s248 = scalar_select %p247, %s17, 1
      %s249 = smul.addr %s248, 16
      %s250 = smul.addr %s249, 8
      %s251 = scalar_lea.vmem %s0, %s250
      %p252 = pneg %p38
      %p253 = pneg %p35
      %p254 = scmp.lt.s32.totalorder %s17, 1
      %s255 = scalar_select %p254, %s17, 1
      %s256 = smul.addr %s255, 16
      %s257 = smul.addr %s256, 4
      %s258 = scalar_lea.vmem %s1, %s257
      %p259 = pneg %p64
      %p260 = pneg %p61
      %p261 = scmp.lt.s32.totalorder %s17, 1
      %s262 = scalar_select %p261, %s17, 1
      %s263 = smul.addr %s262, 4
      %s264 = scalar_lea.vmem %s2, %s263
      %p265 = pneg %p90
      %p266 = pneg %p87
      %p267 = scmp.lt.s32.totalorder %s17, 1
      %s268 = scalar_select %p267, %s17, 1
      %s269 = smul.addr %s268, 16
      %s270 = smul.addr %s269, 4
      %s271 = scalar_lea.vmem %s3, %s270
      %p272 = pneg %p116
      %p273 = pneg %p113
      %p274 = pneg %p137
      %p275 = pneg %p134
      %p276 = pneg %p158
      %p277 = pneg %p155
      %p278 = pneg %p184
      %p279 = pneg %p181
      %p280 = scmp.lt.s32.totalorder %s17, 1
      %s281 = scalar_select %p280, %s17, 1
      %s282 = smul.addr %s281, 8
      %s283 = scalar_lea.vmem %s6, %s282
      %p284 = scmp.lt.s32.totalorder %s17, 1
      %s285 = scalar_select %p284, %s17, 1
      %s286 = smul.addr %s285, 16
      %s287 = smul.addr %s286, 8
      %s288 = scalar_lea.vmem %s0, %s287
      %p289 = scmp.lt.s32.totalorder %s17, 1
      %s290 = scalar_select %p289, %s17, 1
      %s291 = smul.addr %s290, 16
      %s292 = smul.addr %s291, 4
      %s293 = scalar_lea.vmem %s1, %s292
      %p294 = scmp.lt.s32.totalorder %s17, 1
      %s295 = scalar_select %p294, %s17, 1
      %s296 = smul.addr %s295, 4
      %s297 = scalar_lea.vmem %s2, %s296
      %p298 = scmp.lt.s32.totalorder %s17, 1
      %s299 = scalar_select %p298, %s17, 1
      %s300 = smul.addr %s299, 16
      %s301 = smul.addr %s300, 4
      %s302 = scalar_lea.vmem %s3, %s301
      %p303 = scmp.lt.s32.totalorder %s17, 1
      %s304 = scalar_select %p303, %s17, 1
      %s305 = smul.addr %s304, 8
      %s306 = scalar_lea.vmem %s6, %s305
      %v307 = vld [vmem:[%s288] sm:$0xff]
      %v308 = vld [vmem:[%s288 + $0x8] sm:$0xff]
      %v309 = vld [vmem:[%s288 + $0x10] sm:$0xff]
      %v310 = vld [vmem:[%s288 + $0x18] sm:$0xff]
      %v311 = vld [vmem:[%s288 + $0x20] sm:$0xff]
      %v312 = vld [vmem:[%s288 + $0x28] sm:$0xff]
      %v313 = vld [vmem:[%s288 + $0x30] sm:$0xff]
      %v314 = vld [vmem:[%s288 + $0x38] sm:$0xff]
      %v315 = vld [vmem:[%s288 + $0x40] sm:$0xff]
      %v316 = vld [vmem:[%s288 + $0x48] sm:$0xff]
      %v317 = vld [vmem:[%s288 + $0x50] sm:$0xff]
      %v318 = vld [vmem:[%s288 + $0x58] sm:$0xff]
      %v319 = vld [vmem:[%s288 + $0x60] sm:$0xff]
      %v320 = vld [vmem:[%s288 + $0x68] sm:$0xff]
      %v321 = vld [vmem:[%s288 + $0x70] sm:$0xff]
      %v322 = vld [vmem:[%s288 + $0x78] sm:$0xff]
      %v323 = vld [vmem:[%s293] sm:$0xf]
      %v324 = vld [vmem:[%s293 + $0x4] sm:$0xf]
      %v325 = vld [vmem:[%s293 + $0x8] sm:$0xf]
      %v326 = vld [vmem:[%s293 + $0xc] sm:$0xf]
      %v327 = vld [vmem:[%s293 + $0x10] sm:$0xf]
      %v328 = vld [vmem:[%s293 + $0x14] sm:$0xf]
      %v329 = vld [vmem:[%s293 + $0x18] sm:$0xf]
      %v330 = vld [vmem:[%s293 + $0x1c] sm:$0xf]
      %v331 = vld [vmem:[%s293 + $0x20] sm:$0xf]
      %v332 = vld [vmem:[%s293 + $0x24] sm:$0xf]
      %v333 = vld [vmem:[%s293 + $0x28] sm:$0xf]
      %v334 = vld [vmem:[%s293 + $0x2c] sm:$0xf]
      %v335 = vld [vmem:[%s293 + $0x30] sm:$0xf]
      %v336 = vld [vmem:[%s293 + $0x34] sm:$0xf]
      %v337 = vld [vmem:[%s293 + $0x38] sm:$0xf]
      %v338 = vld [vmem:[%s293 + $0x3c] sm:$0xf]
      %v339 = vunpack.c.l.bf16 %v323
      %v340 = vunpack.c.l.bf16 %v324
      %v341 = vunpack.c.l.bf16 %v325
      %v342 = vunpack.c.l.bf16 %v326
      %v343 = vunpack.c.l.bf16 %v327
      %v344 = vunpack.c.l.bf16 %v328
      %v345 = vunpack.c.l.bf16 %v329
      %v346 = vunpack.c.l.bf16 %v330
      %v347 = vunpack.c.l.bf16 %v331
      %v348 = vunpack.c.l.bf16 %v332
      %v349 = vunpack.c.l.bf16 %v333
      %v350 = vunpack.c.l.bf16 %v334
      %v351 = vunpack.c.l.bf16 %v335
      %v352 = vunpack.c.l.bf16 %v336
      %v353 = vunpack.c.l.bf16 %v337
      %v354 = vunpack.c.l.bf16 %v338
      %v355 = vld [vmem:[%s297] sm:$0xf]
      %v356 = vunpack.c.l.bf16 %v355
      %v357 = vld [vmem:[%s302] sm:$0xf]
      %v358 = vld [vmem:[%s302 + $0x4] sm:$0xf]
      %v359 = vld [vmem:[%s302 + $0x8] sm:$0xf]
      %v360 = vld [vmem:[%s302 + $0xc] sm:$0xf]
      %v361 = vld [vmem:[%s302 + $0x10] sm:$0xf]
      %v362 = vld [vmem:[%s302 + $0x14] sm:$0xf]
      %v363 = vld [vmem:[%s302 + $0x18] sm:$0xf]
      %v364 = vld [vmem:[%s302 + $0x1c] sm:$0xf]
      %v365 = vld [vmem:[%s302 + $0x20] sm:$0xf]
      %v366 = vld [vmem:[%s302 + $0x24] sm:$0xf]
      %v367 = vld [vmem:[%s302 + $0x28] sm:$0xf]
      %v368 = vld [vmem:[%s302 + $0x2c] sm:$0xf]
      %v369 = vld [vmem:[%s302 + $0x30] sm:$0xf]
      %v370 = vld [vmem:[%s302 + $0x34] sm:$0xf]
      %v371 = vld [vmem:[%s302 + $0x38] sm:$0xf]
      %v372 = vld [vmem:[%s302 + $0x3c] sm:$0xf]
      %v373 = vunpack.c.l.bf16 %v357
      %v374 = vunpack.c.l.bf16 %v358
      %v375 = vunpack.c.l.bf16 %v359
      %v376 = vunpack.c.l.bf16 %v360
      %v377 = vunpack.c.l.bf16 %v361
      %v378 = vunpack.c.l.bf16 %v362
      %v379 = vunpack.c.l.bf16 %v363
      %v380 = vunpack.c.l.bf16 %v364
      %v381 = vunpack.c.l.bf16 %v365
      %v382 = vunpack.c.l.bf16 %v366
      %v383 = vunpack.c.l.bf16 %v367
      %v384 = vunpack.c.l.bf16 %v368
      %v385 = vunpack.c.l.bf16 %v369
      %v386 = vunpack.c.l.bf16 %v370
      %v387 = vunpack.c.l.bf16 %v371
      %v388 = vunpack.c.l.bf16 %v372
      %vm389 = vcmp.gt.f32.partialorder %v339, 0.0
      %vm390 = vcmp.gt.f32.partialorder %v340, 0.0
      %vm391 = vcmp.gt.f32.partialorder %v341, 0.0
      %vm392 = vcmp.gt.f32.partialorder %v342, 0.0
      %vm393 = vcmp.gt.f32.partialorder %v343, 0.0
      %vm394 = vcmp.gt.f32.partialorder %v344, 0.0
      %vm395 = vcmp.gt.f32.partialorder %v345, 0.0
      %vm396 = vcmp.gt.f32.partialorder %v346, 0.0
      %vm397 = vcmp.gt.f32.partialorder %v347, 0.0
      %vm398 = vcmp.gt.f32.partialorder %v348, 0.0
      %vm399 = vcmp.gt.f32.partialorder %v349, 0.0
      %vm400 = vcmp.gt.f32.partialorder %v350, 0.0
      %vm401 = vcmp.gt.f32.partialorder %v351, 0.0
      %vm402 = vcmp.gt.f32.partialorder %v352, 0.0
      %vm403 = vcmp.gt.f32.partialorder %v353, 0.0
      %vm404 = vcmp.gt.f32.partialorder %v354, 0.0
      %v405 = vld [vmem:[%s4] sm:$0xff]
      %v406 = vld [vmem:[%s4 + $0x8] sm:$0x1]
      %v407 = vlaneseq
      %v408 = vshrl.u32 %v407, 7
      %v409 = vsub.s32 0, %v408
      %v410 = vrot.slane %v406, %v409
      %vm411 = vcmask 64512
      %v413 = vsel %vm411, %v307, 0
      %v416 = vsel %vm411, %v308, 0
      %v419 = vsel %vm411, %v309, 0
      %v422 = vsel %vm411, %v310, 0
      %v425 = vsel %vm411, %v311, 0
      %v428 = vsel %vm411, %v312, 0
      %v431 = vsel %vm411, %v313, 0
      %v434 = vsel %vm411, %v314, 0
      %v437 = vsel %vm411, %v315, 0
      %v440 = vsel %vm411, %v316, 0
      %v443 = vsel %vm411, %v317, 0
      %v446 = vsel %vm411, %v318, 0
      %v449 = vsel %vm411, %v319, 0
      %v452 = vsel %vm411, %v320, 0
      %v455 = vsel %vm411, %v321, 0
      %v458 = vsel %vm411, %v322, 0
      %460 = vmatprep.subr.mxu0 0.0
      %461 = vmatpush1.msra.mxu0 0.0
      %462 = vmatprep.subr.mxu0 0.0
      %463 = vmatpush1.msra.mxu0 0.0
      %464 = vmatprep.subr.mxu0 0.0
      %465 = vmatpush1.msra.mxu0 0.0
      %466 = vmatprep.subr.mxu0 0.0
      %467 = vmatpush1.msra.mxu0 0.0
      %468 = vmatprep.subr.mxu0 0.0
      %469 = vmatpush1.msra.mxu0 0.0
      %470 = vmatprep.subr.mxu0 0.0
      %471 = vmatpush1.msra.mxu0 0.0
      %472 = vmatprep.subr.mxu0 0.0
      %473 = vmatpush1.msra.mxu0 0.0
      %474 = vmatprep.subr.mxu0 0.0
      %475 = vmatpush1.msra.mxu0 0.0
      %476 = vmatprep.subr.mxu0 0.0
      %477 = vmatpush1.msra.mxu0 0.0
      %478 = vmatprep.subr.mxu0 0.0
      %479 = vmatpush1.msra.mxu0 0.0
      %480 = vmatprep.subr.mxu0 0.0
      %481 = vmatpush1.msra.mxu0 0.0
      %482 = vmatprep.subr.mxu0 0.0
      %483 = vmatpush1.msra.mxu0 0.0
      %484 = vmatprep.subr.mxu0 0.0
      %485 = vmatpush1.msra.mxu0 0.0
      %486 = vmatprep.subr.mxu0 0.0
      %487 = vmatpush1.msra.mxu0 0.0
      %488 = vmatprep.subr.mxu0 0.0
      %489 = vmatpush1.msra.mxu0 0.0
      %490 = vmatprep.subr.mxu0 0.0
      %491 = vmatpush1.msra.mxu0 %v405
      %492 = vmatprep.subr.mxu0 0.0
      %493 = vmatpush2.msra.mxu0 0.0
      %494 = vmatprep.subr.mxu0 0.0
      %495 = vmatpush2.msra.mxu0 0.0
      %496 = vmatprep.subr.mxu0 0.0
      %497 = vmatpush2.msra.mxu0 0.0
      %498 = vmatprep.subr.mxu0 0.0
      %499 = vmatpush2.msra.mxu0 0.0
      %500 = vmatprep.subr.mxu0 0.0
      %501 = vmatpush2.msra.mxu0 0.0
      %502 = vmatprep.subr.mxu0 0.0
      %503 = vmatpush2.msra.mxu0 0.0
      %504 = vmatprep.subr.mxu0 0.0
      %505 = vmatpush2.msra.mxu0 0.0
      %506 = vmatprep.subr.mxu0 0.0
      %507 = vmatpush2.msra.mxu0 0.0
      %508 = vmatprep.subr.mxu0 0.0
      %509 = vmatpush2.msra.mxu0 0.0
      %510 = vmatprep.subr.mxu0 0.0
      %511 = vmatpush2.msra.mxu0 0.0
      %512 = vmatprep.subr.mxu0 0.0
      %513 = vmatpush2.msra.mxu0 0.0
      %514 = vmatprep.subr.mxu0 0.0
      %515 = vmatpush2.msra.mxu0 0.0
      %516 = vmatprep.subr.mxu0 0.0
      %517 = vmatpush2.msra.mxu0 0.0
      %518 = vmatprep.subr.mxu0 0.0
      %519 = vmatpush2.msra.mxu0 0.0
      %520 = vmatprep.subr.mxu0 0.0
      %521 = vmatpush2.msra.mxu0 0.0
      %522 = vmatprep.subr.mxu0 0.0
      %523 = vmatpush2.msra.mxu0 0.0
      %524 = vmatprep.mubr.f32.mxu0 0.0
      %525 = vmatmul.mubr.f32.gmra.mxu0 %v413
      %v526 = vpop.f32.mrf.mxu0
      %v527 = vadd.f32 %v410, %v526
      %v528 = vpop.f32.mrf.mxu0
      %529 = vmatprep.mubr.f32.mxu0 0.0
      %530 = vmatmul.mubr.f32.gmra.mxu0 %v416
      %v531 = vpop.f32.mrf.mxu0
      %v532 = vadd.f32 %v410, %v531
      %v533 = vpop.f32.mrf.mxu0
      %534 = vmatprep.mubr.f32.mxu0 0.0
      %535 = vmatmul.mubr.f32.gmra.mxu0 %v419
      %v536 = vpop.f32.mrf.mxu0
      %v537 = vadd.f32 %v410, %v536
      %v538 = vpop.f32.mrf.mxu0
      %539 = vmatprep.mubr.f32.mxu0 0.0
      %540 = vmatmul.mubr.f32.gmra.mxu0 %v422
      %v541 = vpop.f32.mrf.mxu0
      %v542 = vadd.f32 %v410, %v541
      %v543 = vpop.f32.mrf.mxu0
      %544 = vmatprep.mubr.f32.mxu0 0.0
      %545 = vmatmul.mubr.f32.gmra.mxu0 %v425
      %v546 = vpop.f32.mrf.mxu0
      %v547 = vadd.f32 %v410, %v546
      %v548 = vpop.f32.mrf.mxu0
      %549 = vmatprep.mubr.f32.mxu0 0.0
      %550 = vmatmul.mubr.f32.gmra.mxu0 %v428
      %v551 = vpop.f32.mrf.mxu0
      %v552 = vadd.f32 %v410, %v551
      %v553 = vpop.f32.mrf.mxu0
      %554 = vmatprep.mubr.f32.mxu0 0.0
      %555 = vmatmul.mubr.f32.gmra.mxu0 %v431
      %v556 = vpop.f32.mrf.mxu0
      %v557 = vadd.f32 %v410, %v556
      %v558 = vpop.f32.mrf.mxu0
      %559 = vmatprep.mubr.f32.mxu0 0.0
      %560 = vmatmul.mubr.f32.gmra.mxu0 %v434
      %v561 = vpop.f32.mrf.mxu0
      %v562 = vadd.f32 %v410, %v561
      %v563 = vpop.f32.mrf.mxu0
      %564 = vmatprep.mubr.f32.mxu0 0.0
      %565 = vmatmul.mubr.f32.gmra.mxu0 %v437
      %v566 = vpop.f32.mrf.mxu0
      %v567 = vadd.f32 %v410, %v566
      %v568 = vpop.f32.mrf.mxu0
      %569 = vmatprep.mubr.f32.mxu0 0.0
      %570 = vmatmul.mubr.f32.gmra.mxu0 %v440
      %v571 = vpop.f32.mrf.mxu0
      %v572 = vadd.f32 %v410, %v571
      %v573 = vpop.f32.mrf.mxu0
      %574 = vmatprep.mubr.f32.mxu0 0.0
      %575 = vmatmul.mubr.f32.gmra.mxu0 %v443
      %v576 = vpop.f32.mrf.mxu0
      %v577 = vadd.f32 %v410, %v576
      %v578 = vpop.f32.mrf.mxu0
      %579 = vmatprep.mubr.f32.mxu0 0.0
      %580 = vmatmul.mubr.f32.gmra.mxu0 %v446
      %v581 = vpop.f32.mrf.mxu0
      %v582 = vadd.f32 %v410, %v581
      %v583 = vpop.f32.mrf.mxu0
      %584 = vmatprep.mubr.f32.mxu0 0.0
      %585 = vmatmul.mubr.f32.gmra.mxu0 %v449
      %v586 = vpop.f32.mrf.mxu0
      %v587 = vadd.f32 %v410, %v586
      %v588 = vpop.f32.mrf.mxu0
      %589 = vmatprep.mubr.f32.mxu0 0.0
      %590 = vmatmul.mubr.f32.gmra.mxu0 %v452
      %v591 = vpop.f32.mrf.mxu0
      %v592 = vadd.f32 %v410, %v591
      %v593 = vpop.f32.mrf.mxu0
      %594 = vmatprep.mubr.f32.mxu0 0.0
      %595 = vmatmul.mubr.f32.gmra.mxu0 %v455
      %v596 = vpop.f32.mrf.mxu0
      %v597 = vadd.f32 %v410, %v596
      %v598 = vpop.f32.mrf.mxu0
      %599 = vmatprep.mubr.f32.mxu0 0.0
      %600 = vmatmul.mubr.f32.gmra.mxu0 %v458
      %v601 = vpop.f32.mrf.mxu0
      %v602 = vadd.f32 %v410, %v601
      %v603 = vpop.f32.mrf.mxu0
      %604 = vdwg.mxu0
      %v606 = vsel %vm411, %v373, 0
      %v609 = vsel %vm411, %v374, 0
      %v612 = vsel %vm411, %v375, 0
      %v615 = vsel %vm411, %v376, 0
      %v618 = vsel %vm411, %v377, 0
      %v621 = vsel %vm411, %v378, 0
      %v624 = vsel %vm411, %v379, 0
      %v627 = vsel %vm411, %v380, 0
      %v630 = vsel %vm411, %v381, 0
      %v633 = vsel %vm411, %v382, 0
      %v636 = vsel %vm411, %v383, 0
      %v639 = vsel %vm411, %v384, 0
      %v642 = vsel %vm411, %v385, 0
      %v645 = vsel %vm411, %v386, 0
      %v648 = vsel %vm411, %v387, 0
      %v651 = vsel %vm411, %v388, 0
      %653 = vmatprep.subr.mxu0 0.0
      %654 = vmatpush1.msra.mxu0 0.0
      %655 = vmatprep.subr.mxu0 0.0
      %656 = vmatpush1.msra.mxu0 0.0
      %657 = vmatprep.subr.mxu0 0.0
      %658 = vmatpush1.msra.mxu0 0.0
      %659 = vmatprep.subr.mxu0 0.0
      %660 = vmatpush1.msra.mxu0 0.0
      %661 = vmatprep.subr.mxu0 0.0
      %662 = vmatpush1.msra.mxu0 0.0
      %663 = vmatprep.subr.mxu0 0.0
      %664 = vmatpush1.msra.mxu0 0.0
      %665 = vmatprep.subr.mxu0 0.0
      %666 = vmatpush1.msra.mxu0 0.0
      %667 = vmatprep.subr.mxu0 0.0
      %668 = vmatpush1.msra.mxu0 0.0
      %669 = vmatprep.subr.mxu0 0.0
      %670 = vmatpush1.msra.mxu0 0.0
      %671 = vmatprep.subr.mxu0 0.0
      %672 = vmatpush1.msra.mxu0 0.0
      %673 = vmatprep.subr.mxu0 0.0
      %674 = vmatpush1.msra.mxu0 0.0
      %675 = vmatprep.subr.mxu0 0.0
      %676 = vmatpush1.msra.mxu0 0.0
      %677 = vmatprep.subr.mxu0 0.0
      %678 = vmatpush1.msra.mxu0 0.0
      %679 = vmatprep.subr.mxu0 0.0
      %680 = vmatpush1.msra.mxu0 0.0
      %681 = vmatprep.subr.mxu0 0.0
      %682 = vmatpush1.msra.mxu0 0.0
      %683 = vmatprep.subr.mxu0 0.0
      %684 = vmatpush1.msra.mxu0 0.0
      %685 = vmatprep.subr.mxu0 0.0
      %686 = vmatpush2.msra.mxu0 0.0
      %687 = vmatprep.subr.mxu0 0.0
      %688 = vmatpush2.msra.mxu0 0.0
      %689 = vmatprep.subr.mxu0 0.0
      %690 = vmatpush2.msra.mxu0 0.0
      %691 = vmatprep.subr.mxu0 0.0
      %692 = vmatpush2.msra.mxu0 0.0
      %693 = vmatprep.subr.mxu0 0.0
      %694 = vmatpush2.msra.mxu0 0.0
      %695 = vmatprep.subr.mxu0 0.0
      %696 = vmatpush2.msra.mxu0 0.0
      %697 = vmatprep.subr.mxu0 0.0
      %698 = vmatpush2.msra.mxu0 0.0
      %699 = vmatprep.subr.mxu0 0.0
      %700 = vmatpush2.msra.mxu0 0.0
      %701 = vmatprep.subr.mxu0 0.0
      %702 = vmatpush2.msra.mxu0 0.0
      %703 = vmatprep.subr.mxu0 0.0
      %704 = vmatpush2.msra.mxu0 0.0
      %705 = vmatprep.subr.mxu0 0.0
      %706 = vmatpush2.msra.mxu0 0.0
      %707 = vmatprep.subr.mxu0 0.0
      %708 = vmatpush2.msra.mxu0 0.0
      %709 = vmatprep.subr.mxu0 0.0
      %710 = vmatpush2.msra.mxu0 0.0
      %711 = vmatprep.subr.mxu0 0.0
      %712 = vmatpush2.msra.mxu0 0.0
      %713 = vmatprep.subr.mxu0 0.0
      %714 = vmatpush2.msra.mxu0 0.0
      %715 = vmatprep.subr.mxu0 0.0
      %716 = vmatpush2.msra.mxu0 0.0
      %717 = vmatprep.mubr.f32.mxu0 0.0
      %718 = vmatmul.mubr.f32.gmra.mxu0 %v606
      %v719 = vpop.f32.mrf.mxu0
      %v720 = vadd.f32 0.0, %v719
      %v721 = vpop.f32.mrf.mxu0
      %722 = vmatprep.mubr.f32.mxu0 0.0
      %723 = vmatmul.mubr.f32.gmra.mxu0 %v609
      %v724 = vpop.f32.mrf.mxu0
      %v725 = vadd.f32 0.0, %v724
      %v726 = vpop.f32.mrf.mxu0
      %727 = vmatprep.mubr.f32.mxu0 0.0
      %728 = vmatmul.mubr.f32.gmra.mxu0 %v612
      %v729 = vpop.f32.mrf.mxu0
      %v730 = vadd.f32 0.0, %v729
      %v731 = vpop.f32.mrf.mxu0
      %732 = vmatprep.mubr.f32.mxu0 0.0
      %733 = vmatmul.mubr.f32.gmra.mxu0 %v615
      %v734 = vpop.f32.mrf.mxu0
      %v735 = vadd.f32 0.0, %v734
      %v736 = vpop.f32.mrf.mxu0
      %737 = vmatprep.mubr.f32.mxu0 0.0
      %738 = vmatmul.mubr.f32.gmra.mxu0 %v618
      %v739 = vpop.f32.mrf.mxu0
      %v740 = vadd.f32 0.0, %v739
      %v741 = vpop.f32.mrf.mxu0
      %742 = vmatprep.mubr.f32.mxu0 0.0
      %743 = vmatmul.mubr.f32.gmra.mxu0 %v621
      %v744 = vpop.f32.mrf.mxu0
      %v745 = vadd.f32 0.0, %v744
      %v746 = vpop.f32.mrf.mxu0
      %747 = vmatprep.mubr.f32.mxu0 0.0
      %748 = vmatmul.mubr.f32.gmra.mxu0 %v624
      %v749 = vpop.f32.mrf.mxu0
      %v750 = vadd.f32 0.0, %v749
      %v751 = vpop.f32.mrf.mxu0
      %752 = vmatprep.mubr.f32.mxu0 0.0
      %753 = vmatmul.mubr.f32.gmra.mxu0 %v627
      %v754 = vpop.f32.mrf.mxu0
      %v755 = vadd.f32 0.0, %v754
      %v756 = vpop.f32.mrf.mxu0
      %757 = vmatprep.mubr.f32.mxu0 0.0
      %758 = vmatmul.mubr.f32.gmra.mxu0 %v630
      %v759 = vpop.f32.mrf.mxu0
      %v760 = vadd.f32 0.0, %v759
      %v761 = vpop.f32.mrf.mxu0
      %762 = vmatprep.mubr.f32.mxu0 0.0
      %763 = vmatmul.mubr.f32.gmra.mxu0 %v633
      %v764 = vpop.f32.mrf.mxu0
      %v765 = vadd.f32 0.0, %v764
      %v766 = vpop.f32.mrf.mxu0
      %767 = vmatprep.mubr.f32.mxu0 0.0
      %768 = vmatmul.mubr.f32.gmra.mxu0 %v636
      %v769 = vpop.f32.mrf.mxu0
      %v770 = vadd.f32 0.0, %v769
      %v771 = vpop.f32.mrf.mxu0
      %772 = vmatprep.mubr.f32.mxu0 0.0
      %773 = vmatmul.mubr.f32.gmra.mxu0 %v639
      %v774 = vpop.f32.mrf.mxu0
      %v775 = vadd.f32 0.0, %v774
      %v776 = vpop.f32.mrf.mxu0
      %777 = vmatprep.mubr.f32.mxu0 0.0
      %778 = vmatmul.mubr.f32.gmra.mxu0 %v642
      %v779 = vpop.f32.mrf.mxu0
      %v780 = vadd.f32 0.0, %v779
      %v781 = vpop.f32.mrf.mxu0
      %782 = vmatprep.mubr.f32.mxu0 0.0
      %783 = vmatmul.mubr.f32.gmra.mxu0 %v645
      %v784 = vpop.f32.mrf.mxu0
      %v785 = vadd.f32 0.0, %v784
      %v786 = vpop.f32.mrf.mxu0
      %787 = vmatprep.mubr.f32.mxu0 0.0
      %788 = vmatmul.mubr.f32.gmra.mxu0 %v648
      %v789 = vpop.f32.mrf.mxu0
      %v790 = vadd.f32 0.0, %v789
      %v791 = vpop.f32.mrf.mxu0
      %792 = vmatprep.mubr.f32.mxu0 0.0
      %793 = vmatmul.mubr.f32.gmra.mxu0 %v651
      %v794 = vpop.f32.mrf.mxu0
      %v795 = vadd.f32 0.0, %v794
      %v796 = vpop.f32.mrf.mxu0
      %797 = vdwg.mxu0
      %v798 = vadd.f32 %v527, %v720
      %v799 = vadd.f32 %v532, %v725
      %v800 = vadd.f32 %v537, %v730
      %v801 = vadd.f32 %v542, %v735
      %v802 = vadd.f32 %v547, %v740
      %v803 = vadd.f32 %v552, %v745
      %v804 = vadd.f32 %v557, %v750
      %v805 = vadd.f32 %v562, %v755
      %v806 = vadd.f32 %v567, %v760
      %v807 = vadd.f32 %v572, %v765
      %v808 = vadd.f32 %v577, %v770
      %v809 = vadd.f32 %v582, %v775
      %v810 = vadd.f32 %v587, %v780
      %v811 = vadd.f32 %v592, %v785
      %v812 = vadd.f32 %v597, %v790
      %v813 = vadd.f32 %v602, %v795
      %v814 = vadd.f32 %v798, 0.0
      %v815 = vadd.f32 %v799, 0.0
      %v816 = vadd.f32 %v800, 0.0
      %v817 = vadd.f32 %v801, 0.0
      %v818 = vadd.f32 %v802, 0.0
      %v819 = vadd.f32 %v803, 0.0
      %v820 = vadd.f32 %v804, 0.0
      %v821 = vadd.f32 %v805, 0.0
      %v822 = vadd.f32 %v806, 0.0
      %v823 = vadd.f32 %v807, 0.0
      %v824 = vadd.f32 %v808, 0.0
      %v825 = vadd.f32 %v809, 0.0
      %v826 = vadd.f32 %v810, 0.0
      %v827 = vadd.f32 %v811, 0.0
      %v828 = vadd.f32 %v812, 0.0
      %v829 = vadd.f32 %v813, 0.0
      %v830 = vld [vmem:[%s4 + $0x10] sm:$0xff]
      %v831 = vld [vmem:[%s4 + $0x18] sm:$0xff]
      %v832 = vld [vmem:[%s4 + $0x20] sm:$0xff]
      %v833 = vld [vmem:[%s4 + $0x28] sm:$0xff]
      %v834 = vld [vmem:[%s4 + $0x9] sm:$0x1]
      %v835 = vld [vmem:[%s4 + $0xb] sm:$0x1]
      %v836 = vld [vmem:[%s4 + $0xd] sm:$0x1]
      %vm837 = vcmask 261120
      %v839 = vsel %vm837, %v798, 0
      %v842 = vsel %vm837, %v799, 0
      %v845 = vsel %vm837, %v800, 0
      %v848 = vsel %vm837, %v801, 0
      %v851 = vsel %vm837, %v802, 0
      %v854 = vsel %vm837, %v803, 0
      %v857 = vsel %vm837, %v804, 0
      %v860 = vsel %vm837, %v805, 0
      %v863 = vsel %vm837, %v806, 0
      %v866 = vsel %vm837, %v807, 0
      %v869 = vsel %vm837, %v808, 0
      %v872 = vsel %vm837, %v809, 0
      %v875 = vsel %vm837, %v810, 0
      %v878 = vsel %vm837, %v811, 0
      %v881 = vsel %vm837, %v812, 0
      %v884 = vsel %vm837, %v813, 0
      %886 = vmatprep.subr.mxu0 0.0
      %887 = vmatpush1.msra.mxu0 0.0
      %888 = vmatprep.subr.mxu0 0.0
      %889 = vmatpush1.msra.mxu0 0.0
      %890 = vmatprep.subr.mxu0 0.0
      %891 = vmatpush1.msra.mxu0 0.0
      %892 = vmatprep.subr.mxu0 0.0
      %893 = vmatpush1.msra.mxu0 0.0
      %894 = vmatprep.subr.mxu0 0.0
      %895 = vmatpush1.msra.mxu0 0.0
      %896 = vmatprep.subr.mxu0 0.0
      %897 = vmatpush1.msra.mxu0 0.0
      %898 = vmatprep.subr.mxu0 0.0
      %899 = vmatpush1.msra.mxu0 0.0
      %900 = vmatprep.subr.mxu0 0.0
      %901 = vmatpush1.msra.mxu0 0.0
      %902 = vmatprep.subr.mxu0 0.0
      %903 = vmatpush1.msra.mxu0 0.0
      %904 = vmatprep.subr.mxu0 0.0
      %905 = vmatpush1.msra.mxu0 0.0
      %906 = vmatprep.subr.mxu0 0.0
      %907 = vmatpush1.msra.mxu0 0.0
      %908 = vmatprep.subr.mxu0 0.0
      %909 = vmatpush1.msra.mxu0 0.0
      %910 = vmatprep.subr.mxu0 0.0
      %911 = vmatpush1.msra.mxu0 %v833
      %912 = vmatprep.subr.mxu0 0.0
      %913 = vmatpush1.msra.mxu0 %v832
      %914 = vmatprep.subr.mxu0 0.0
      %915 = vmatpush1.msra.mxu0 %v831
      %916 = vmatprep.subr.mxu0 0.0
      %917 = vmatpush1.msra.mxu0 %v830
      %918 = vmatprep.subr.mxu0 0.0
      %919 = vmatpush2.msra.mxu0 0.0
      %920 = vmatprep.subr.mxu0 0.0
      %921 = vmatpush2.msra.mxu0 0.0
      %922 = vmatprep.subr.mxu0 0.0
      %923 = vmatpush2.msra.mxu0 0.0
      %924 = vmatprep.subr.mxu0 0.0
      %925 = vmatpush2.msra.mxu0 0.0
      %926 = vmatprep.subr.mxu0 0.0
      %927 = vmatpush2.msra.mxu0 0.0
      %928 = vmatprep.subr.mxu0 0.0
      %929 = vmatpush2.msra.mxu0 0.0
      %930 = vmatprep.subr.mxu0 0.0
      %931 = vmatpush2.msra.mxu0 0.0
      %932 = vmatprep.subr.mxu0 0.0
      %933 = vmatpush2.msra.mxu0 0.0
      %934 = vmatprep.subr.mxu0 0.0
      %935 = vmatpush2.msra.mxu0 0.0
      %936 = vmatprep.subr.mxu0 0.0
      %937 = vmatpush2.msra.mxu0 0.0
      %938 = vmatprep.subr.mxu0 0.0
      %939 = vmatpush2.msra.mxu0 0.0
      %940 = vmatprep.subr.mxu0 0.0
      %941 = vmatpush2.msra.mxu0 0.0
      %942 = vmatprep.subr.mxu0 0.0
      %943 = vmatpush2.msra.mxu0 0.0
      %944 = vmatprep.subr.mxu0 0.0
      %945 = vmatpush2.msra.mxu0 0.0
      %946 = vmatprep.subr.mxu0 0.0
      %947 = vmatpush2.msra.mxu0 0.0
      %948 = vmatprep.subr.mxu0 0.0
      %949 = vmatpush2.msra.mxu0 0.0
      %950 = vmatprep.mubr.f32.mxu0 0.0
      %951 = vmatmul.mubr.f32.gmra.mxu0 %v839
      %v952 = vpop.f32.mrf.mxu0
      %v953 = vadd.f32 0.0, %v952
      %v954 = vpop.f32.mrf.mxu0
      %955 = vmatprep.mubr.f32.mxu0 0.0
      %956 = vmatmul.mubr.f32.gmra.mxu0 %v842
      %v957 = vpop.f32.mrf.mxu0
      %v958 = vadd.f32 0.0, %v957
      %v959 = vpop.f32.mrf.mxu0
      %960 = vmatprep.mubr.f32.mxu0 0.0
      %961 = vmatmul.mubr.f32.gmra.mxu0 %v845
      %v962 = vpop.f32.mrf.mxu0
      %v963 = vadd.f32 0.0, %v962
      %v964 = vpop.f32.mrf.mxu0
      %965 = vmatprep.mubr.f32.mxu0 0.0
      %966 = vmatmul.mubr.f32.gmra.mxu0 %v848
      %v967 = vpop.f32.mrf.mxu0
      %v968 = vadd.f32 0.0, %v967
      %v969 = vpop.f32.mrf.mxu0
      %970 = vmatprep.mubr.f32.mxu0 0.0
      %971 = vmatmul.mubr.f32.gmra.mxu0 %v851
      %v972 = vpop.f32.mrf.mxu0
      %v973 = vadd.f32 0.0, %v972
      %v974 = vpop.f32.mrf.mxu0
      %975 = vmatprep.mubr.f32.mxu0 0.0
      %976 = vmatmul.mubr.f32.gmra.mxu0 %v854
      %v977 = vpop.f32.mrf.mxu0
      %v978 = vadd.f32 0.0, %v977
      %v979 = vpop.f32.mrf.mxu0
      %980 = vmatprep.mubr.f32.mxu0 0.0
      %981 = vmatmul.mubr.f32.gmra.mxu0 %v857
      %v982 = vpop.f32.mrf.mxu0
      %v983 = vadd.f32 0.0, %v982
      %v984 = vpop.f32.mrf.mxu0
      %985 = vmatprep.mubr.f32.mxu0 0.0
      %986 = vmatmul.mubr.f32.gmra.mxu0 %v860
      %v987 = vpop.f32.mrf.mxu0
      %v988 = vadd.f32 0.0, %v987
      %v989 = vpop.f32.mrf.mxu0
      %990 = vmatprep.mubr.f32.mxu0 0.0
      %991 = vmatmul.mubr.f32.gmra.mxu0 %v863
      %v992 = vpop.f32.mrf.mxu0
      %v993 = vadd.f32 0.0, %v992
      %v994 = vpop.f32.mrf.mxu0
      %995 = vmatprep.mubr.f32.mxu0 0.0
      %996 = vmatmul.mubr.f32.gmra.mxu0 %v866
      %v997 = vpop.f32.mrf.mxu0
      %v998 = vadd.f32 0.0, %v997
      %v999 = vpop.f32.mrf.mxu0
      %1000 = vmatprep.mubr.f32.mxu0 0.0
      %1001 = vmatmul.mubr.f32.gmra.mxu0 %v869
      %v1002 = vpop.f32.mrf.mxu0
      %v1003 = vadd.f32 0.0, %v1002
      %v1004 = vpop.f32.mrf.mxu0
      %1005 = vmatprep.mubr.f32.mxu0 0.0
      %1006 = vmatmul.mubr.f32.gmra.mxu0 %v872
      %v1007 = vpop.f32.mrf.mxu0
      %v1008 = vadd.f32 0.0, %v1007
      %v1009 = vpop.f32.mrf.mxu0
      %1010 = vmatprep.mubr.f32.mxu0 0.0
      %1011 = vmatmul.mubr.f32.gmra.mxu0 %v875
      %v1012 = vpop.f32.mrf.mxu0
      %v1013 = vadd.f32 0.0, %v1012
      %v1014 = vpop.f32.mrf.mxu0
      %1015 = vmatprep.mubr.f32.mxu0 0.0
      %1016 = vmatmul.mubr.f32.gmra.mxu0 %v878
      %v1017 = vpop.f32.mrf.mxu0
      %v1018 = vadd.f32 0.0, %v1017
      %v1019 = vpop.f32.mrf.mxu0
      %1020 = vmatprep.mubr.f32.mxu0 0.0
      %1021 = vmatmul.mubr.f32.gmra.mxu0 %v881
      %v1022 = vpop.f32.mrf.mxu0
      %v1023 = vadd.f32 0.0, %v1022
      %v1024 = vpop.f32.mrf.mxu0
      %1025 = vmatprep.mubr.f32.mxu0 0.0
      %1026 = vmatmul.mubr.f32.gmra.mxu0 %v884
      %v1027 = vpop.f32.mrf.mxu0
      %v1028 = vadd.f32 0.0, %v1027
      %v1029 = vpop.f32.mrf.mxu0
      %1030 = vdwg.mxu0
      %v1031 = vlaneseq
      %v1032 = vshrl.u32 %v1031, 7
      %v1033 = vsub.s32 0, %v1032
      %v1034 = vrot.slane %v835, %v1033
      %v1035 = vmul.f32 %v953, %v1034
      %v1036 = vmul.f32 %v958, %v1034
      %v1037 = vmul.f32 %v963, %v1034
      %v1038 = vmul.f32 %v968, %v1034
      %v1039 = vmul.f32 %v973, %v1034
      %v1040 = vmul.f32 %v978, %v1034
      %v1041 = vmul.f32 %v983, %v1034
      %v1042 = vmul.f32 %v988, %v1034
      %v1043 = vmul.f32 %v993, %v1034
      %v1044 = vmul.f32 %v998, %v1034
      %v1045 = vmul.f32 %v1003, %v1034
      %v1046 = vmul.f32 %v1008, %v1034
      %v1047 = vmul.f32 %v1013, %v1034
      %v1048 = vmul.f32 %v1018, %v1034
      %v1049 = vmul.f32 %v1023, %v1034
      %v1050 = vmul.f32 %v1028, %v1034
      %v1051 = vsel %vm837, %v1035, 0.0
      %1052 = vadd.xlane.f32.xlu0 %v1051
      %v1053 = vpop.xlane.xlu0 %1052
      %v1054 = vsel %vm837, %v1036, 0.0
      %1055 = vadd.xlane.f32.xlu0 %v1054
      %v1056 = vpop.xlane.xlu0 %1055
      %v1057 = vsel %vm837, %v1037, 0.0
      %1058 = vadd.xlane.f32.xlu0 %v1057
      %v1059 = vpop.xlane.xlu0 %1058
      %v1060 = vsel %vm837, %v1038, 0.0
      %1061 = vadd.xlane.f32.xlu0 %v1060
      %v1062 = vpop.xlane.xlu0 %1061
      %v1063 = vsel %vm837, %v1039, 0.0
      %1064 = vadd.xlane.f32.xlu0 %v1063
      %v1065 = vpop.xlane.xlu0 %1064
      %v1066 = vsel %vm837, %v1040, 0.0
      %1067 = vadd.xlane.f32.xlu0 %v1066
      %v1068 = vpop.xlane.xlu0 %1067
      %v1069 = vsel %vm837, %v1041, 0.0
      %1070 = vadd.xlane.f32.xlu0 %v1069
      %v1071 = vpop.xlane.xlu0 %1070
      %v1072 = vsel %vm837, %v1042, 0.0
      %1073 = vadd.xlane.f32.xlu0 %v1072
      %v1074 = vpop.xlane.xlu0 %1073
      %v1075 = vsel %vm837, %v1043, 0.0
      %1076 = vadd.xlane.f32.xlu0 %v1075
      %v1077 = vpop.xlane.xlu0 %1076
      %v1078 = vsel %vm837, %v1044, 0.0
      %1079 = vadd.xlane.f32.xlu0 %v1078
      %v1080 = vpop.xlane.xlu0 %1079
      %v1081 = vsel %vm837, %v1045, 0.0
      %1082 = vadd.xlane.f32.xlu0 %v1081
      %v1083 = vpop.xlane.xlu0 %1082
      %v1084 = vsel %vm837, %v1046, 0.0
      %1085 = vadd.xlane.f32.xlu0 %v1084
      %v1086 = vpop.xlane.xlu0 %1085
      %v1087 = vsel %vm837, %v1047, 0.0
      %1088 = vadd.xlane.f32.xlu0 %v1087
      %v1089 = vpop.xlane.xlu0 %1088
      %v1090 = vsel %vm837, %v1048, 0.0
      %1091 = vadd.xlane.f32.xlu0 %v1090
      %v1092 = vpop.xlane.xlu0 %1091
      %v1093 = vsel %vm837, %v1049, 0.0
      %1094 = vadd.xlane.f32.xlu0 %v1093
      %v1095 = vpop.xlane.xlu0 %1094
      %v1096 = vsel %vm837, %v1050, 0.0
      %1097 = vadd.xlane.f32.xlu0 %v1096
      %v1098 = vpop.xlane.xlu0 %1097
      %v1100 = vsel %vm837, %v834, 0
      %v1103 = vsel %vm837, %v953, 0
      %v1106 = vsel %vm837, %v958, 0
      %v1109 = vsel %vm837, %v963, 0
      %v1112 = vsel %vm837, %v968, 0
      %v1115 = vsel %vm837, %v973, 0
      %v1118 = vsel %vm837, %v978, 0
      %v1121 = vsel %vm837, %v983, 0
      %v1124 = vsel %vm837, %v988, 0
      %v1127 = vsel %vm837, %v993, 0
      %v1130 = vsel %vm837, %v998, 0
      %v1133 = vsel %vm837, %v1003, 0
      %v1136 = vsel %vm837, %v1008, 0
      %v1139 = vsel %vm837, %v1013, 0
      %v1142 = vsel %vm837, %v1018, 0
      %v1145 = vsel %vm837, %v1023, 0
      %v1148 = vsel %vm837, %v1028, 0
      %1150 = vmatprep.subr.mxu0 0.0
      %1151 = vmatpush1.xpose.msra.mxu0 %v1148
      %1152 = vmatprep.subr.mxu0 0.0
      %1153 = vmatpush1.xpose.msra.mxu0 %v1145
      %1154 = vmatprep.subr.mxu0 0.0
      %1155 = vmatpush1.xpose.msra.mxu0 %v1142
      %1156 = vmatprep.subr.mxu0 0.0
      %1157 = vmatpush1.xpose.msra.mxu0 %v1139
      %1158 = vmatprep.subr.mxu0 0.0
      %1159 = vmatpush1.xpose.msra.mxu0 %v1136
      %1160 = vmatprep.subr.mxu0 0.0
      %1161 = vmatpush1.xpose.msra.mxu0 %v1133
      %1162 = vmatprep.subr.mxu0 0.0
      %1163 = vmatpush1.xpose.msra.mxu0 %v1130
      %1164 = vmatprep.subr.mxu0 0.0
      %1165 = vmatpush1.xpose.msra.mxu0 %v1127
      %1166 = vmatprep.subr.mxu0 0.0
      %1167 = vmatpush1.xpose.msra.mxu0 %v1124
      %1168 = vmatprep.subr.mxu0 0.0
      %1169 = vmatpush1.xpose.msra.mxu0 %v1121
      %1170 = vmatprep.subr.mxu0 0.0
      %1171 = vmatpush1.xpose.msra.mxu0 %v1118
      %1172 = vmatprep.subr.mxu0 0.0
      %1173 = vmatpush1.xpose.msra.mxu0 %v1115
      %1174 = vmatprep.subr.mxu0 0.0
      %1175 = vmatpush1.xpose.msra.mxu0 %v1112
      %1176 = vmatprep.subr.mxu0 0.0
      %1177 = vmatpush1.xpose.msra.mxu0 %v1109
      %1178 = vmatprep.subr.mxu0 0.0
      %1179 = vmatpush1.xpose.msra.mxu0 %v1106
      %1180 = vmatprep.subr.mxu0 0.0
      %1181 = vmatpush1.xpose.msra.mxu0 %v1103
      %1182 = vmatprep.subr.mxu0 0.0
      %1183 = vmatpush2.xpose.msra.mxu0 0.0
      %1184 = vmatprep.subr.mxu0 0.0
      %1185 = vmatpush2.xpose.msra.mxu0 0.0
      %1186 = vmatprep.subr.mxu0 0.0
      %1187 = vmatpush2.xpose.msra.mxu0 0.0
      %1188 = vmatprep.subr.mxu0 0.0
      %1189 = vmatpush2.xpose.msra.mxu0 0.0
      %1190 = vmatprep.subr.mxu0 0.0
      %1191 = vmatpush2.xpose.msra.mxu0 0.0
      %1192 = vmatprep.subr.mxu0 0.0
      %1193 = vmatpush2.xpose.msra.mxu0 0.0
      %1194 = vmatprep.subr.mxu0 0.0
      %1195 = vmatpush2.xpose.msra.mxu0 0.0
      %1196 = vmatprep.subr.mxu0 0.0
      %1197 = vmatpush2.xpose.msra.mxu0 0.0
      %1198 = vmatprep.subr.mxu0 0.0
      %1199 = vmatpush2.xpose.msra.mxu0 0.0
      %1200 = vmatprep.subr.mxu0 0.0
      %1201 = vmatpush2.xpose.msra.mxu0 0.0
      %1202 = vmatprep.subr.mxu0 0.0
      %1203 = vmatpush2.xpose.msra.mxu0 0.0
      %1204 = vmatprep.subr.mxu0 0.0
      %1205 = vmatpush2.xpose.msra.mxu0 0.0
      %1206 = vmatprep.subr.mxu0 0.0
      %1207 = vmatpush2.xpose.msra.mxu0 0.0
      %1208 = vmatprep.subr.mxu0 0.0
      %1209 = vmatpush2.xpose.msra.mxu0 0.0
      %1210 = vmatprep.subr.mxu0 0.0
      %1211 = vmatpush2.xpose.msra.mxu0 0.0
      %1212 = vmatprep.subr.mxu0 0.0
      %1213 = vmatpush2.xpose.msra.mxu0 0.0
      %1214 = vmatprep.mubr.f32.mxu0 0.0
      %1215 = vmatmul.mubr.f32.gmra.mxu0 %v1100
      %v1216 = vpop.f32.mrf.mxu0
      %v1217 = vadd.f32 0.0, %v1216
      %v1218 = vpop.f32.mrf.mxu0
      %1219 = vdwg.mxu0
      %v1220 = vlaneseq
      %v1221 = vshrl.u32 %v1220, 7
      %v1222 = vsub.s32 0, %v1221
      %v1223 = vrot.slane %v1217, %v1222
      %v1224 = vadd.f32 %v1053, %v1223
      %v1225 = vadd.f32 %v1056, %v1223
      %v1226 = vadd.f32 %v1059, %v1223
      %v1227 = vadd.f32 %v1062, %v1223
      %v1228 = vadd.f32 %v1065, %v1223
      %v1229 = vadd.f32 %v1068, %v1223
      %v1230 = vadd.f32 %v1071, %v1223
      %v1231 = vadd.f32 %v1074, %v1223
      %v1232 = vadd.f32 %v1077, %v1223
      %v1233 = vadd.f32 %v1080, %v1223
      %v1234 = vadd.f32 %v1083, %v1223
      %v1235 = vadd.f32 %v1086, %v1223
      %v1236 = vadd.f32 %v1089, %v1223
      %v1237 = vadd.f32 %v1092, %v1223
      %v1238 = vadd.f32 %v1095, %v1223
      %v1239 = vadd.f32 %v1098, %v1223
      %vm1240 = vcmp.gt.f32.partialorder %v1224, 0.0
      %vm1241 = vcmp.gt.f32.partialorder %v1225, 0.0
      %vm1242 = vcmp.gt.f32.partialorder %v1226, 0.0
      %vm1243 = vcmp.gt.f32.partialorder %v1227, 0.0
      %vm1244 = vcmp.gt.f32.partialorder %v1228, 0.0
      %vm1245 = vcmp.gt.f32.partialorder %v1229, 0.0
      %vm1246 = vcmp.gt.f32.partialorder %v1230, 0.0
      %vm1247 = vcmp.gt.f32.partialorder %v1231, 0.0
      %vm1248 = vcmp.gt.f32.partialorder %v1232, 0.0
      %vm1249 = vcmp.gt.f32.partialorder %v1233, 0.0
      %vm1250 = vcmp.gt.f32.partialorder %v1234, 0.0
      %vm1251 = vcmp.gt.f32.partialorder %v1235, 0.0
      %vm1252 = vcmp.gt.f32.partialorder %v1236, 0.0
      %vm1253 = vcmp.gt.f32.partialorder %v1237, 0.0
      %vm1254 = vcmp.gt.f32.partialorder %v1238, 0.0
      %vm1255 = vcmp.gt.f32.partialorder %v1239, 0.0
      %v1256 = vmul.f32 %v1224, 0.2
      %v1257 = vmul.f32 %v1225, 0.2
      %v1258 = vmul.f32 %v1226, 0.2
      %v1259 = vmul.f32 %v1227, 0.2
      %v1260 = vmul.f32 %v1228, 0.2
      %v1261 = vmul.f32 %v1229, 0.2
      %v1262 = vmul.f32 %v1230, 0.2
      %v1263 = vmul.f32 %v1231, 0.2
      %v1264 = vmul.f32 %v1232, 0.2
      %v1265 = vmul.f32 %v1233, 0.2
      %v1266 = vmul.f32 %v1234, 0.2
      %v1267 = vmul.f32 %v1235, 0.2
      %v1268 = vmul.f32 %v1236, 0.2
      %v1269 = vmul.f32 %v1237, 0.2
      %v1270 = vmul.f32 %v1238, 0.2
      %v1271 = vmul.f32 %v1239, 0.2
      %v1272 = vsel %vm1240, %v1224, %v1256
      %v1273 = vsel %vm1241, %v1225, %v1257
      %v1274 = vsel %vm1242, %v1226, %v1258
      %v1275 = vsel %vm1243, %v1227, %v1259
      %v1276 = vsel %vm1244, %v1228, %v1260
      %v1277 = vsel %vm1245, %v1229, %v1261
      %v1278 = vsel %vm1246, %v1230, %v1262
      %v1279 = vsel %vm1247, %v1231, %v1263
      %v1280 = vsel %vm1248, %v1232, %v1264
      %v1281 = vsel %vm1249, %v1233, %v1265
      %v1282 = vsel %vm1250, %v1234, %v1266
      %v1283 = vsel %vm1251, %v1235, %v1267
      %v1284 = vsel %vm1252, %v1236, %v1268
      %v1285 = vsel %vm1253, %v1237, %v1269
      %v1286 = vsel %vm1254, %v1238, %v1270
      %v1287 = vsel %vm1255, %v1239, %v1271
      %v1288 = vsel %vm389, %v1272, -1e+30
      %v1289 = vsel %vm390, %v1273, -1e+30
      %v1290 = vsel %vm391, %v1274, -1e+30
      %v1291 = vsel %vm392, %v1275, -1e+30
      %v1292 = vsel %vm393, %v1276, -1e+30
      %v1293 = vsel %vm394, %v1277, -1e+30
      %v1294 = vsel %vm395, %v1278, -1e+30
      %v1295 = vsel %vm396, %v1279, -1e+30
      %v1296 = vsel %vm397, %v1280, -1e+30
      %v1297 = vsel %vm398, %v1281, -1e+30
      %v1298 = vsel %vm399, %v1282, -1e+30
      %v1299 = vsel %vm400, %v1283, -1e+30
      %v1300 = vsel %vm401, %v1284, -1e+30
      %v1301 = vsel %vm402, %v1285, -1e+30
      %v1302 = vsel %vm403, %v1286, -1e+30
      %v1303 = vsel %vm404, %v1287, -1e+30
      %1304 = vmax.xlane.f32.xlu0 %v1288
      %v1305 = vpop.xlane.xlu0 %1304
      %1306 = vmax.xlane.f32.xlu0 %v1289
      %v1307 = vpop.xlane.xlu0 %1306
      %1308 = vmax.xlane.f32.xlu0 %v1290
      %v1309 = vpop.xlane.xlu0 %1308
      %1310 = vmax.xlane.f32.xlu0 %v1291
      %v1311 = vpop.xlane.xlu0 %1310
      %1312 = vmax.xlane.f32.xlu0 %v1292
      %v1313 = vpop.xlane.xlu0 %1312
      %1314 = vmax.xlane.f32.xlu0 %v1293
      %v1315 = vpop.xlane.xlu0 %1314
      %1316 = vmax.xlane.f32.xlu0 %v1294
      %v1317 = vpop.xlane.xlu0 %1316
      %1318 = vmax.xlane.f32.xlu0 %v1295
      %v1319 = vpop.xlane.xlu0 %1318
      %1320 = vmax.xlane.f32.xlu0 %v1296
      %v1321 = vpop.xlane.xlu0 %1320
      %1322 = vmax.xlane.f32.xlu0 %v1297
      %v1323 = vpop.xlane.xlu0 %1322
      %1324 = vmax.xlane.f32.xlu0 %v1298
      %v1325 = vpop.xlane.xlu0 %1324
      %1326 = vmax.xlane.f32.xlu0 %v1299
      %v1327 = vpop.xlane.xlu0 %1326
      %1328 = vmax.xlane.f32.xlu0 %v1300
      %v1329 = vpop.xlane.xlu0 %1328
      %1330 = vmax.xlane.f32.xlu0 %v1301
      %v1331 = vpop.xlane.xlu0 %1330
      %1332 = vmax.xlane.f32.xlu0 %v1302
      %v1333 = vpop.xlane.xlu0 %1332
      %1334 = vmax.xlane.f32.xlu0 %v1303
      %v1335 = vpop.xlane.xlu0 %1334
      %v1336 = vsub.f32 %v1288, %v1305
      %v1337 = vsub.f32 %v1289, %v1307
      %v1338 = vsub.f32 %v1290, %v1309
      %v1339 = vsub.f32 %v1291, %v1311
      %v1340 = vsub.f32 %v1292, %v1313
      %v1341 = vsub.f32 %v1293, %v1315
      %v1342 = vsub.f32 %v1294, %v1317
      %v1343 = vsub.f32 %v1295, %v1319
      %v1344 = vsub.f32 %v1296, %v1321
      %v1345 = vsub.f32 %v1297, %v1323
      %v1346 = vsub.f32 %v1298, %v1325
      %v1347 = vsub.f32 %v1299, %v1327
      %v1348 = vsub.f32 %v1300, %v1329
      %v1349 = vsub.f32 %v1301, %v1331
      %v1350 = vsub.f32 %v1302, %v1333
      %v1351 = vsub.f32 %v1303, %v1335
      %v1352 = vmul.f32 %v1336, 1.442695
      %v1353 = vpow.pop %v1352
      %v1354 = vmul.f32 %v1337, 1.442695
      %v1355 = vpow.pop %v1354
      %v1356 = vmul.f32 %v1338, 1.442695
      %v1357 = vpow.pop %v1356
      %v1358 = vmul.f32 %v1339, 1.442695
      %v1359 = vpow.pop %v1358
      %v1360 = vmul.f32 %v1340, 1.442695
      %v1361 = vpow.pop %v1360
      %v1362 = vmul.f32 %v1341, 1.442695
      %v1363 = vpow.pop %v1362
      %v1364 = vmul.f32 %v1342, 1.442695
      %v1365 = vpow.pop %v1364
      %v1366 = vmul.f32 %v1343, 1.442695
      %v1367 = vpow.pop %v1366
      %v1368 = vmul.f32 %v1344, 1.442695
      %v1369 = vpow.pop %v1368
      %v1370 = vmul.f32 %v1345, 1.442695
      %v1371 = vpow.pop %v1370
      %v1372 = vmul.f32 %v1346, 1.442695
      %v1373 = vpow.pop %v1372
      %v1374 = vmul.f32 %v1347, 1.442695
      %v1375 = vpow.pop %v1374
      %v1376 = vmul.f32 %v1348, 1.442695
      %v1377 = vpow.pop %v1376
      %v1378 = vmul.f32 %v1349, 1.442695
      %v1379 = vpow.pop %v1378
      %v1380 = vmul.f32 %v1350, 1.442695
      %v1381 = vpow.pop %v1380
      %v1382 = vmul.f32 %v1351, 1.442695
      %v1383 = vpow.pop %v1382
      %v1384 = vsel %vm389, %v1353, 0.0
      %v1385 = vsel %vm390, %v1355, 0.0
      %v1386 = vsel %vm391, %v1357, 0.0
      %v1387 = vsel %vm392, %v1359, 0.0
      %v1388 = vsel %vm393, %v1361, 0.0
      %v1389 = vsel %vm394, %v1363, 0.0
      %v1390 = vsel %vm395, %v1365, 0.0
      %v1391 = vsel %vm396, %v1367, 0.0
      %v1392 = vsel %vm397, %v1369, 0.0
      %v1393 = vsel %vm398, %v1371, 0.0
      %v1394 = vsel %vm399, %v1373, 0.0
      %v1395 = vsel %vm400, %v1375, 0.0
      %v1396 = vsel %vm401, %v1377, 0.0
      %v1397 = vsel %vm402, %v1379, 0.0
      %v1398 = vsel %vm403, %v1381, 0.0
      %v1399 = vsel %vm404, %v1383, 0.0
      %1400 = vadd.xlane.f32.xlu0 %v1384
      %v1401 = vpop.xlane.xlu0 %1400
      %1402 = vadd.xlane.f32.xlu0 %v1385
      %v1403 = vpop.xlane.xlu0 %1402
      %1404 = vadd.xlane.f32.xlu0 %v1386
      %v1405 = vpop.xlane.xlu0 %1404
      %1406 = vadd.xlane.f32.xlu0 %v1387
      %v1407 = vpop.xlane.xlu0 %1406
      %1408 = vadd.xlane.f32.xlu0 %v1388
      %v1409 = vpop.xlane.xlu0 %1408
      %1410 = vadd.xlane.f32.xlu0 %v1389
      %v1411 = vpop.xlane.xlu0 %1410
      %1412 = vadd.xlane.f32.xlu0 %v1390
      %v1413 = vpop.xlane.xlu0 %1412
      %1414 = vadd.xlane.f32.xlu0 %v1391
      %v1415 = vpop.xlane.xlu0 %1414
      %1416 = vadd.xlane.f32.xlu0 %v1392
      %v1417 = vpop.xlane.xlu0 %1416
      %1418 = vadd.xlane.f32.xlu0 %v1393
      %v1419 = vpop.xlane.xlu0 %1418
      %1420 = vadd.xlane.f32.xlu0 %v1394
      %v1421 = vpop.xlane.xlu0 %1420
      %1422 = vadd.xlane.f32.xlu0 %v1395
      %v1423 = vpop.xlane.xlu0 %1422
      %1424 = vadd.xlane.f32.xlu0 %v1396
      %v1425 = vpop.xlane.xlu0 %1424
      %1426 = vadd.xlane.f32.xlu0 %v1397
      %v1427 = vpop.xlane.xlu0 %1426
      %1428 = vadd.xlane.f32.xlu0 %v1398
      %v1429 = vpop.xlane.xlu0 %1428
      %1430 = vadd.xlane.f32.xlu0 %v1399
      %v1431 = vpop.xlane.xlu0 %1430
      %vm1432 = vcmp.gt.f32.partialorder %v1401, 0.0
      %vm1433 = vcmp.gt.f32.partialorder %v1403, 0.0
      %vm1434 = vcmp.gt.f32.partialorder %v1405, 0.0
      %vm1435 = vcmp.gt.f32.partialorder %v1407, 0.0
      %vm1436 = vcmp.gt.f32.partialorder %v1409, 0.0
      %vm1437 = vcmp.gt.f32.partialorder %v1411, 0.0
      %vm1438 = vcmp.gt.f32.partialorder %v1413, 0.0
      %vm1439 = vcmp.gt.f32.partialorder %v1415, 0.0
      %vm1440 = vcmp.gt.f32.partialorder %v1417, 0.0
      %vm1441 = vcmp.gt.f32.partialorder %v1419, 0.0
      %vm1442 = vcmp.gt.f32.partialorder %v1421, 0.0
      %vm1443 = vcmp.gt.f32.partialorder %v1423, 0.0
      %vm1444 = vcmp.gt.f32.partialorder %v1425, 0.0
      %vm1445 = vcmp.gt.f32.partialorder %v1427, 0.0
      %vm1446 = vcmp.gt.f32.partialorder %v1429, 0.0
      %vm1447 = vcmp.gt.f32.partialorder %v1431, 0.0
      %v1448 = vsel %vm1432, %v1401, 1.0
      %v1449 = vsel %vm1433, %v1403, 1.0
      %v1450 = vsel %vm1434, %v1405, 1.0
      %v1451 = vsel %vm1435, %v1407, 1.0
      %v1452 = vsel %vm1436, %v1409, 1.0
      %v1453 = vsel %vm1437, %v1411, 1.0
      %v1454 = vsel %vm1438, %v1413, 1.0
      %v1455 = vsel %vm1439, %v1415, 1.0
      %v1456 = vsel %vm1440, %v1417, 1.0
      %v1457 = vsel %vm1441, %v1419, 1.0
      %v1458 = vsel %vm1442, %v1421, 1.0
      %v1459 = vsel %vm1443, %v1423, 1.0
      %v1460 = vsel %vm1444, %v1425, 1.0
      %v1461 = vsel %vm1445, %v1427, 1.0
      %v1462 = vsel %vm1446, %v1429, 1.0
      %v1463 = vsel %vm1447, %v1431, 1.0
      %v1464 = vrcp.pop %v1448
      %v1465 = vrcp.pop %v1449
      %v1466 = vrcp.pop %v1450
      %v1467 = vrcp.pop %v1451
      %v1468 = vrcp.pop %v1452
      %v1469 = vrcp.pop %v1453
      %v1470 = vrcp.pop %v1454
      %v1471 = vrcp.pop %v1455
      %v1472 = vrcp.pop %v1456
      %v1473 = vrcp.pop %v1457
      %v1474 = vrcp.pop %v1458
      %v1475 = vrcp.pop %v1459
      %v1476 = vrcp.pop %v1460
      %v1477 = vrcp.pop %v1461
      %v1478 = vrcp.pop %v1462
      %v1479 = vrcp.pop %v1463
      %v1480 = vmul.f32 %v1384, %v1464
      %v1481 = vmul.f32 %v1385, %v1465
      %v1482 = vmul.f32 %v1386, %v1466
      %v1483 = vmul.f32 %v1387, %v1467
      %v1484 = vmul.f32 %v1388, %v1468
      %v1485 = vmul.f32 %v1389, %v1469
      %v1486 = vmul.f32 %v1390, %v1470
      %v1487 = vmul.f32 %v1391, %v1471
      %v1488 = vmul.f32 %v1392, %v1472
      %v1489 = vmul.f32 %v1393, %v1473
      %v1490 = vmul.f32 %v1394, %v1474
      %v1491 = vmul.f32 %v1395, %v1475
      %v1492 = vmul.f32 %v1396, %v1476
      %v1493 = vmul.f32 %v1397, %v1477
      %v1494 = vmul.f32 %v1398, %v1478
      %v1495 = vmul.f32 %v1399, %v1479
      %v1496 = vlaneseq
      %v1497 = vshrl.u32 %v1496, 7
      %v1498 = vsub.s32 0, %v1497
      %v1499 = vrot.slane %v836, %v1498
      %1500 = vmatprep.subr.mxu0 0.0
      %1501 = vmatpush1.msra.mxu0 %v1028
      %1502 = vmatprep.subr.mxu0 0.0
      %1503 = vmatpush1.msra.mxu0 %v1023
      %1504 = vmatprep.subr.mxu0 0.0
      %1505 = vmatpush1.msra.mxu0 %v1018
      %1506 = vmatprep.subr.mxu0 0.0
      %1507 = vmatpush1.msra.mxu0 %v1013
      %1508 = vmatprep.subr.mxu0 0.0
      %1509 = vmatpush1.msra.mxu0 %v1008
      %1510 = vmatprep.subr.mxu0 0.0
      %1511 = vmatpush1.msra.mxu0 %v1003
      %1512 = vmatprep.subr.mxu0 0.0
      %1513 = vmatpush1.msra.mxu0 %v998
      %1514 = vmatprep.subr.mxu0 0.0
      %1515 = vmatpush1.msra.mxu0 %v993
      %1516 = vmatprep.subr.mxu0 0.0
      %1517 = vmatpush1.msra.mxu0 %v988
      %1518 = vmatprep.subr.mxu0 0.0
      %1519 = vmatpush1.msra.mxu0 %v983
      %1520 = vmatprep.subr.mxu0 0.0
      %1521 = vmatpush1.msra.mxu0 %v978
      %1522 = vmatprep.subr.mxu0 0.0
      %1523 = vmatpush1.msra.mxu0 %v973
      %1524 = vmatprep.subr.mxu0 0.0
      %1525 = vmatpush1.msra.mxu0 %v968
      %1526 = vmatprep.subr.mxu0 0.0
      %1527 = vmatpush1.msra.mxu0 %v963
      %1528 = vmatprep.subr.mxu0 0.0
      %1529 = vmatpush1.msra.mxu0 %v958
      %1530 = vmatprep.subr.mxu0 0.0
      %1531 = vmatpush1.msra.mxu0 %v953
      %1532 = vmatprep.subr.mxu0 0.0
      %1533 = vmatpush2.msra.mxu0 0.0
      %1534 = vmatprep.subr.mxu0 0.0
      %1535 = vmatpush2.msra.mxu0 0.0
      %1536 = vmatprep.subr.mxu0 0.0
      %1537 = vmatpush2.msra.mxu0 0.0
      %1538 = vmatprep.subr.mxu0 0.0
      %1539 = vmatpush2.msra.mxu0 0.0
      %1540 = vmatprep.subr.mxu0 0.0
      %1541 = vmatpush2.msra.mxu0 0.0
      %1542 = vmatprep.subr.mxu0 0.0
      %1543 = vmatpush2.msra.mxu0 0.0
      %1544 = vmatprep.subr.mxu0 0.0
      %1545 = vmatpush2.msra.mxu0 0.0
      %1546 = vmatprep.subr.mxu0 0.0
      %1547 = vmatpush2.msra.mxu0 0.0
      %1548 = vmatprep.subr.mxu0 0.0
      %1549 = vmatpush2.msra.mxu0 0.0
      %1550 = vmatprep.subr.mxu0 0.0
      %1551 = vmatpush2.msra.mxu0 0.0
      %1552 = vmatprep.subr.mxu0 0.0
      %1553 = vmatpush2.msra.mxu0 0.0
      %1554 = vmatprep.subr.mxu0 0.0
      %1555 = vmatpush2.msra.mxu0 0.0
      %1556 = vmatprep.subr.mxu0 0.0
      %1557 = vmatpush2.msra.mxu0 0.0
      %1558 = vmatprep.subr.mxu0 0.0
      %1559 = vmatpush2.msra.mxu0 0.0
      %1560 = vmatprep.subr.mxu0 0.0
      %1561 = vmatpush2.msra.mxu0 0.0
      %1562 = vmatprep.subr.mxu0 0.0
      %1563 = vmatpush2.msra.mxu0 0.0
      %1564 = vmatprep.mubr.f32.mxu0 0.0
      %1565 = vmatmul.mubr.f32.gmra.mxu0 %v1480
      %v1566 = vpop.f32.mrf.mxu0
      %v1567 = vadd.f32 %v1499, %v1566
      %v1568 = vpop.f32.mrf.mxu0
      %1569 = vmatprep.mubr.f32.mxu0 0.0
      %1570 = vmatmul.mubr.f32.gmra.mxu0 %v1481
      %v1571 = vpop.f32.mrf.mxu0
      %v1572 = vadd.f32 %v1499, %v1571
      %v1573 = vpop.f32.mrf.mxu0
      %1574 = vmatprep.mubr.f32.mxu0 0.0
      %1575 = vmatmul.mubr.f32.gmra.mxu0 %v1482
      %v1576 = vpop.f32.mrf.mxu0
      %v1577 = vadd.f32 %v1499, %v1576
      %v1578 = vpop.f32.mrf.mxu0
      %1579 = vmatprep.mubr.f32.mxu0 0.0
      %1580 = vmatmul.mubr.f32.gmra.mxu0 %v1483
      %v1581 = vpop.f32.mrf.mxu0
      %v1582 = vadd.f32 %v1499, %v1581
      %v1583 = vpop.f32.mrf.mxu0
      %1584 = vmatprep.mubr.f32.mxu0 0.0
      %1585 = vmatmul.mubr.f32.gmra.mxu0 %v1484
      %v1586 = vpop.f32.mrf.mxu0
      %v1587 = vadd.f32 %v1499, %v1586
      %v1588 = vpop.f32.mrf.mxu0
      %1589 = vmatprep.mubr.f32.mxu0 0.0
      %1590 = vmatmul.mubr.f32.gmra.mxu0 %v1485
      %v1591 = vpop.f32.mrf.mxu0
      %v1592 = vadd.f32 %v1499, %v1591
      %v1593 = vpop.f32.mrf.mxu0
      %1594 = vmatprep.mubr.f32.mxu0 0.0
      %1595 = vmatmul.mubr.f32.gmra.mxu0 %v1486
      %v1596 = vpop.f32.mrf.mxu0
      %v1597 = vadd.f32 %v1499, %v1596
      %v1598 = vpop.f32.mrf.mxu0
      %1599 = vmatprep.mubr.f32.mxu0 0.0
      %1600 = vmatmul.mubr.f32.gmra.mxu0 %v1487
      %v1601 = vpop.f32.mrf.mxu0
      %v1602 = vadd.f32 %v1499, %v1601
      %v1603 = vpop.f32.mrf.mxu0
      %1604 = vmatprep.mubr.f32.mxu0 0.0
      %1605 = vmatmul.mubr.f32.gmra.mxu0 %v1488
      %v1606 = vpop.f32.mrf.mxu0
      %v1607 = vadd.f32 %v1499, %v1606
      %v1608 = vpop.f32.mrf.mxu0
      %1609 = vmatprep.mubr.f32.mxu0 0.0
      %1610 = vmatmul.mubr.f32.gmra.mxu0 %v1489
      %v1611 = vpop.f32.mrf.mxu0
      %v1612 = vadd.f32 %v1499, %v1611
      %v1613 = vpop.f32.mrf.mxu0
      %1614 = vmatprep.mubr.f32.mxu0 0.0
      %1615 = vmatmul.mubr.f32.gmra.mxu0 %v1490
      %v1616 = vpop.f32.mrf.mxu0
      %v1617 = vadd.f32 %v1499, %v1616
      %v1618 = vpop.f32.mrf.mxu0
      %1619 = vmatprep.mubr.f32.mxu0 0.0
      %1620 = vmatmul.mubr.f32.gmra.mxu0 %v1491
      %v1621 = vpop.f32.mrf.mxu0
      %v1622 = vadd.f32 %v1499, %v1621
      %v1623 = vpop.f32.mrf.mxu0
      %1624 = vmatprep.mubr.f32.mxu0 0.0
      %1625 = vmatmul.mubr.f32.gmra.mxu0 %v1492
      %v1626 = vpop.f32.mrf.mxu0
      %v1627 = vadd.f32 %v1499, %v1626
      %v1628 = vpop.f32.mrf.mxu0
      %1629 = vmatprep.mubr.f32.mxu0 0.0
      %1630 = vmatmul.mubr.f32.gmra.mxu0 %v1493
      %v1631 = vpop.f32.mrf.mxu0
      %v1632 = vadd.f32 %v1499, %v1631
      %v1633 = vpop.f32.mrf.mxu0
      %1634 = vmatprep.mubr.f32.mxu0 0.0
      %1635 = vmatmul.mubr.f32.gmra.mxu0 %v1494
      %v1636 = vpop.f32.mrf.mxu0
      %v1637 = vadd.f32 %v1499, %v1636
      %v1638 = vpop.f32.mrf.mxu0
      %1639 = vmatprep.mubr.f32.mxu0 0.0
      %1640 = vmatmul.mubr.f32.gmra.mxu0 %v1495
      %v1641 = vpop.f32.mrf.mxu0
      %v1642 = vadd.f32 %v1499, %v1641
      %v1643 = vpop.f32.mrf.mxu0
      %1644 = vdwg.mxu0
      %v1645 = vtanh.pop %v1567
      %v1646 = vtanh.pop %v1572
      %v1647 = vtanh.pop %v1577
      %v1648 = vtanh.pop %v1582
      %v1649 = vtanh.pop %v1587
      %v1650 = vtanh.pop %v1592
      %v1651 = vtanh.pop %v1597
      %v1652 = vtanh.pop %v1602
      %v1653 = vtanh.pop %v1607
      %v1654 = vtanh.pop %v1612
      %v1655 = vtanh.pop %v1617
      %v1656 = vtanh.pop %v1622
      %v1657 = vtanh.pop %v1627
      %v1658 = vtanh.pop %v1632
      %v1659 = vtanh.pop %v1637
      %v1660 = vtanh.pop %v1642
      %v1661 = vld [vmem:[%s5] sm:$0xff]
      %v1662 = vld [vmem:[%s5 + $0x8] sm:$0xff]
      %v1663 = vld [vmem:[%s5 + $0x10] sm:$0xff]
      %v1664 = vld [vmem:[%s5 + $0x18] sm:$0xff]
      %v1665 = vld [vmem:[%s5 + $0x20] sm:$0xff]
      %v1666 = vld [vmem:[%s5 + $0x28] sm:$0xff]
      %v1667 = vld [vmem:[%s5 + $0x30] sm:$0xff]
      %v1668 = vld [vmem:[%s5 + $0x38] sm:$0xff]
      %v1669 = vld [vmem:[%s5 + $0x80] sm:$0x1]
      %v1671 = vsel %vm837, 0.0, 0
      %1673 = vmatprep.subr.mxu0 0.0
      %1674 = vmatpush1.msra.mxu0 0.0
      %1675 = vmatprep.subr.mxu0 0.0
      %1676 = vmatpush1.msra.mxu0 0.0
      %1677 = vmatprep.subr.mxu0 0.0
      %1678 = vmatpush1.msra.mxu0 0.0
      %1679 = vmatprep.subr.mxu0 0.0
      %1680 = vmatpush1.msra.mxu0 0.0
      %1681 = vmatprep.subr.mxu0 0.0
      %1682 = vmatpush1.msra.mxu0 0.0
      %1683 = vmatprep.subr.mxu0 0.0
      %1684 = vmatpush1.msra.mxu0 0.0
      %1685 = vmatprep.subr.mxu0 0.0
      %1686 = vmatpush1.msra.mxu0 0.0
      %1687 = vmatprep.subr.mxu0 0.0
      %1688 = vmatpush1.msra.mxu0 0.0
      %1689 = vmatprep.subr.mxu0 0.0
      %1690 = vmatpush1.msra.mxu0 0.0
      %1691 = vmatprep.subr.mxu0 0.0
      %1692 = vmatpush1.msra.mxu0 0.0
      %1693 = vmatprep.subr.mxu0 0.0
      %1694 = vmatpush1.msra.mxu0 0.0
      %1695 = vmatprep.subr.mxu0 0.0
      %1696 = vmatpush1.msra.mxu0 0.0
      %1697 = vmatprep.subr.mxu0 0.0
      %1698 = vmatpush1.msra.mxu0 %v1668
      %1699 = vmatprep.subr.mxu0 0.0
      %1700 = vmatpush1.msra.mxu0 %v1667
      %1701 = vmatprep.subr.mxu0 0.0
      %1702 = vmatpush1.msra.mxu0 %v1666
      %1703 = vmatprep.subr.mxu0 0.0
      %1704 = vmatpush1.msra.mxu0 %v1665
      %1705 = vmatprep.subr.mxu0 0.0
      %1706 = vmatpush2.msra.mxu0 0.0
      %1707 = vmatprep.subr.mxu0 0.0
      %1708 = vmatpush2.msra.mxu0 0.0
      %1709 = vmatprep.subr.mxu0 0.0
      %1710 = vmatpush2.msra.mxu0 0.0
      %1711 = vmatprep.subr.mxu0 0.0
      %1712 = vmatpush2.msra.mxu0 0.0
      %1713 = vmatprep.subr.mxu0 0.0
      %1714 = vmatpush2.msra.mxu0 0.0
      %1715 = vmatprep.subr.mxu0 0.0
      %1716 = vmatpush2.msra.mxu0 0.0
      %1717 = vmatprep.subr.mxu0 0.0
      %1718 = vmatpush2.msra.mxu0 0.0
      %1719 = vmatprep.subr.mxu0 0.0
      %1720 = vmatpush2.msra.mxu0 0.0
      %1721 = vmatprep.subr.mxu0 0.0
      %1722 = vmatpush2.msra.mxu0 0.0
      %1723 = vmatprep.subr.mxu0 0.0
      %1724 = vmatpush2.msra.mxu0 0.0
      %1725 = vmatprep.subr.mxu0 0.0
      %1726 = vmatpush2.msra.mxu0 0.0
      %1727 = vmatprep.subr.mxu0 0.0
      %1728 = vmatpush2.msra.mxu0 0.0
      %1729 = vmatprep.subr.mxu0 0.0
      %1730 = vmatpush2.msra.mxu0 0.0
      %1731 = vmatprep.subr.mxu0 0.0
      %1732 = vmatpush2.msra.mxu0 0.0
      %1733 = vmatprep.subr.mxu0 0.0
      %1734 = vmatpush2.msra.mxu0 0.0
      %1735 = vmatprep.subr.mxu0 0.0
      %1736 = vmatpush2.msra.mxu0 0.0
      %1737 = vmatprep.mubr.f32.mxu0 0.0
      %1738 = vmatmul.mubr.f32.gmra.mxu0 %v1671
      %v1739 = vpop.f32.mrf.mxu0
      %v1740 = vadd.f32 0.0, %v1739
      %v1741 = vpop.f32.mrf.mxu0
      %1742 = vmatprep.mubr.f32.mxu0 0.0
      %1743 = vmatmul.mubr.f32.gmra.mxu0 %v1671
      %v1744 = vpop.f32.mrf.mxu0
      %v1745 = vadd.f32 0.0, %v1744
      %v1746 = vpop.f32.mrf.mxu0
      %1747 = vmatprep.mubr.f32.mxu0 0.0
      %1748 = vmatmul.mubr.f32.gmra.mxu0 %v1671
      %v1749 = vpop.f32.mrf.mxu0
      %v1750 = vadd.f32 0.0, %v1749
      %v1751 = vpop.f32.mrf.mxu0
      %1752 = vmatprep.mubr.f32.mxu0 0.0
      %1753 = vmatmul.mubr.f32.gmra.mxu0 %v1671
      %v1754 = vpop.f32.mrf.mxu0
      %v1755 = vadd.f32 0.0, %v1754
      %v1756 = vpop.f32.mrf.mxu0
      %1757 = vmatprep.mubr.f32.mxu0 0.0
      %1758 = vmatmul.mubr.f32.gmra.mxu0 %v1671
      %v1759 = vpop.f32.mrf.mxu0
      %v1760 = vadd.f32 0.0, %v1759
      %v1761 = vpop.f32.mrf.mxu0
      %1762 = vmatprep.mubr.f32.mxu0 0.0
      %1763 = vmatmul.mubr.f32.gmra.mxu0 %v1671
      %v1764 = vpop.f32.mrf.mxu0
      %v1765 = vadd.f32 0.0, %v1764
      %v1766 = vpop.f32.mrf.mxu0
      %1767 = vmatprep.mubr.f32.mxu0 0.0
      %1768 = vmatmul.mubr.f32.gmra.mxu0 %v1671
      %v1769 = vpop.f32.mrf.mxu0
      %v1770 = vadd.f32 0.0, %v1769
      %v1771 = vpop.f32.mrf.mxu0
      %1772 = vmatprep.mubr.f32.mxu0 0.0
      %1773 = vmatmul.mubr.f32.gmra.mxu0 %v1671
      %v1774 = vpop.f32.mrf.mxu0
      %v1775 = vadd.f32 0.0, %v1774
      %v1776 = vpop.f32.mrf.mxu0
      %1777 = vmatprep.mubr.f32.mxu0 0.0
      %1778 = vmatmul.mubr.f32.gmra.mxu0 %v1671
      %v1779 = vpop.f32.mrf.mxu0
      %v1780 = vadd.f32 0.0, %v1779
      %v1781 = vpop.f32.mrf.mxu0
      %1782 = vmatprep.mubr.f32.mxu0 0.0
      %1783 = vmatmul.mubr.f32.gmra.mxu0 %v1671
      %v1784 = vpop.f32.mrf.mxu0
      %v1785 = vadd.f32 0.0, %v1784
      %v1786 = vpop.f32.mrf.mxu0
      %1787 = vmatprep.mubr.f32.mxu0 0.0
      %1788 = vmatmul.mubr.f32.gmra.mxu0 %v1671
      %v1789 = vpop.f32.mrf.mxu0
      %v1790 = vadd.f32 0.0, %v1789
      %v1791 = vpop.f32.mrf.mxu0
      %1792 = vmatprep.mubr.f32.mxu0 0.0
      %1793 = vmatmul.mubr.f32.gmra.mxu0 %v1671
      %v1794 = vpop.f32.mrf.mxu0
      %v1795 = vadd.f32 0.0, %v1794
      %v1796 = vpop.f32.mrf.mxu0
      %1797 = vmatprep.mubr.f32.mxu0 0.0
      %1798 = vmatmul.mubr.f32.gmra.mxu0 %v1671
      %v1799 = vpop.f32.mrf.mxu0
      %v1800 = vadd.f32 0.0, %v1799
      %v1801 = vpop.f32.mrf.mxu0
      %1802 = vmatprep.mubr.f32.mxu0 0.0
      %1803 = vmatmul.mubr.f32.gmra.mxu0 %v1671
      %v1804 = vpop.f32.mrf.mxu0
      %v1805 = vadd.f32 0.0, %v1804
      %v1806 = vpop.f32.mrf.mxu0
      %1807 = vmatprep.mubr.f32.mxu0 0.0
      %1808 = vmatmul.mubr.f32.gmra.mxu0 %v1671
      %v1809 = vpop.f32.mrf.mxu0
      %v1810 = vadd.f32 0.0, %v1809
      %v1811 = vpop.f32.mrf.mxu0
      %1812 = vmatprep.mubr.f32.mxu0 0.0
      %1813 = vmatmul.mubr.f32.gmra.mxu0 %v1671
      %v1814 = vpop.f32.mrf.mxu0
      %v1815 = vadd.f32 0.0, %v1814
      %v1816 = vpop.f32.mrf.mxu0
      %1817 = vdwg.mxu0
      %v1819 = vsel %vm837, %v1645, 0
      %v1822 = vsel %vm837, %v1646, 0
      %v1825 = vsel %vm837, %v1647, 0
      %v1828 = vsel %vm837, %v1648, 0
      %v1831 = vsel %vm837, %v1649, 0
      %v1834 = vsel %vm837, %v1650, 0
      %v1837 = vsel %vm837, %v1651, 0
      %v1840 = vsel %vm837, %v1652, 0
      %v1843 = vsel %vm837, %v1653, 0
      %v1846 = vsel %vm837, %v1654, 0
      %v1849 = vsel %vm837, %v1655, 0
      %v1852 = vsel %vm837, %v1656, 0
      %v1855 = vsel %vm837, %v1657, 0
      %v1858 = vsel %vm837, %v1658, 0
      %v1861 = vsel %vm837, %v1659, 0
      %v1864 = vsel %vm837, %v1660, 0
      %1866 = vmatprep.subr.mxu0 0.0
      %1867 = vmatpush1.msra.mxu0 0.0
      %1868 = vmatprep.subr.mxu0 0.0
      %1869 = vmatpush1.msra.mxu0 0.0
      %1870 = vmatprep.subr.mxu0 0.0
      %1871 = vmatpush1.msra.mxu0 0.0
      %1872 = vmatprep.subr.mxu0 0.0
      %1873 = vmatpush1.msra.mxu0 0.0
      %1874 = vmatprep.subr.mxu0 0.0
      %1875 = vmatpush1.msra.mxu0 0.0
      %1876 = vmatprep.subr.mxu0 0.0
      %1877 = vmatpush1.msra.mxu0 0.0
      %1878 = vmatprep.subr.mxu0 0.0
      %1879 = vmatpush1.msra.mxu0 0.0
      %1880 = vmatprep.subr.mxu0 0.0
      %1881 = vmatpush1.msra.mxu0 0.0
      %1882 = vmatprep.subr.mxu0 0.0
      %1883 = vmatpush1.msra.mxu0 0.0
      %1884 = vmatprep.subr.mxu0 0.0
      %1885 = vmatpush1.msra.mxu0 0.0
      %1886 = vmatprep.subr.mxu0 0.0
      %1887 = vmatpush1.msra.mxu0 0.0
      %1888 = vmatprep.subr.mxu0 0.0
      %1889 = vmatpush1.msra.mxu0 0.0
      %1890 = vmatprep.subr.mxu0 0.0
      %1891 = vmatpush1.msra.mxu0 %v1664
      %1892 = vmatprep.subr.mxu0 0.0
      %1893 = vmatpush1.msra.mxu0 %v1663
      %1894 = vmatprep.subr.mxu0 0.0
      %1895 = vmatpush1.msra.mxu0 %v1662
      %1896 = vmatprep.subr.mxu0 0.0
      %1897 = vmatpush1.msra.mxu0 %v1661
      %1898 = vmatprep.subr.mxu0 0.0
      %1899 = vmatpush2.msra.mxu0 0.0
      %1900 = vmatprep.subr.mxu0 0.0
      %1901 = vmatpush2.msra.mxu0 0.0
      %1902 = vmatprep.subr.mxu0 0.0
      %1903 = vmatpush2.msra.mxu0 0.0
      %1904 = vmatprep.subr.mxu0 0.0
      %1905 = vmatpush2.msra.mxu0 0.0
      %1906 = vmatprep.subr.mxu0 0.0
      %1907 = vmatpush2.msra.mxu0 0.0
      %1908 = vmatprep.subr.mxu0 0.0
      %1909 = vmatpush2.msra.mxu0 0.0
      %1910 = vmatprep.subr.mxu0 0.0
      %1911 = vmatpush2.msra.mxu0 0.0
      %1912 = vmatprep.subr.mxu0 0.0
      %1913 = vmatpush2.msra.mxu0 0.0
      %1914 = vmatprep.subr.mxu0 0.0
      %1915 = vmatpush2.msra.mxu0 0.0
      %1916 = vmatprep.subr.mxu0 0.0
      %1917 = vmatpush2.msra.mxu0 0.0
      %1918 = vmatprep.subr.mxu0 0.0
      %1919 = vmatpush2.msra.mxu0 0.0
      %1920 = vmatprep.subr.mxu0 0.0
      %1921 = vmatpush2.msra.mxu0 0.0
      %1922 = vmatprep.subr.mxu0 0.0
      %1923 = vmatpush2.msra.mxu0 0.0
      %1924 = vmatprep.subr.mxu0 0.0
      %1925 = vmatpush2.msra.mxu0 0.0
      %1926 = vmatprep.subr.mxu0 0.0
      %1927 = vmatpush2.msra.mxu0 0.0
      %1928 = vmatprep.subr.mxu0 0.0
      %1929 = vmatpush2.msra.mxu0 0.0
      %1930 = vmatprep.mubr.f32.mxu0 0.0
      %1931 = vmatmul.mubr.f32.gmra.mxu0 %v1819
      %v1932 = vpop.f32.mrf.mxu0
      %v1933 = vadd.f32 %v1740, %v1932
      %v1934 = vpop.f32.mrf.mxu0
      %1935 = vmatprep.mubr.f32.mxu0 0.0
      %1936 = vmatmul.mubr.f32.gmra.mxu0 %v1822
      %v1937 = vpop.f32.mrf.mxu0
      %v1938 = vadd.f32 %v1745, %v1937
      %v1939 = vpop.f32.mrf.mxu0
      %1940 = vmatprep.mubr.f32.mxu0 0.0
      %1941 = vmatmul.mubr.f32.gmra.mxu0 %v1825
      %v1942 = vpop.f32.mrf.mxu0
      %v1943 = vadd.f32 %v1750, %v1942
      %v1944 = vpop.f32.mrf.mxu0
      %1945 = vmatprep.mubr.f32.mxu0 0.0
      %1946 = vmatmul.mubr.f32.gmra.mxu0 %v1828
      %v1947 = vpop.f32.mrf.mxu0
      %v1948 = vadd.f32 %v1755, %v1947
      %v1949 = vpop.f32.mrf.mxu0
      %1950 = vmatprep.mubr.f32.mxu0 0.0
      %1951 = vmatmul.mubr.f32.gmra.mxu0 %v1831
      %v1952 = vpop.f32.mrf.mxu0
      %v1953 = vadd.f32 %v1760, %v1952
      %v1954 = vpop.f32.mrf.mxu0
      %1955 = vmatprep.mubr.f32.mxu0 0.0
      %1956 = vmatmul.mubr.f32.gmra.mxu0 %v1834
      %v1957 = vpop.f32.mrf.mxu0
      %v1958 = vadd.f32 %v1765, %v1957
      %v1959 = vpop.f32.mrf.mxu0
      %1960 = vmatprep.mubr.f32.mxu0 0.0
      %1961 = vmatmul.mubr.f32.gmra.mxu0 %v1837
      %v1962 = vpop.f32.mrf.mxu0
      %v1963 = vadd.f32 %v1770, %v1962
      %v1964 = vpop.f32.mrf.mxu0
      %1965 = vmatprep.mubr.f32.mxu0 0.0
      %1966 = vmatmul.mubr.f32.gmra.mxu0 %v1840
      %v1967 = vpop.f32.mrf.mxu0
      %v1968 = vadd.f32 %v1775, %v1967
      %v1969 = vpop.f32.mrf.mxu0
      %1970 = vmatprep.mubr.f32.mxu0 0.0
      %1971 = vmatmul.mubr.f32.gmra.mxu0 %v1843
      %v1972 = vpop.f32.mrf.mxu0
      %v1973 = vadd.f32 %v1780, %v1972
      %v1974 = vpop.f32.mrf.mxu0
      %1975 = vmatprep.mubr.f32.mxu0 0.0
      %1976 = vmatmul.mubr.f32.gmra.mxu0 %v1846
      %v1977 = vpop.f32.mrf.mxu0
      %v1978 = vadd.f32 %v1785, %v1977
      %v1979 = vpop.f32.mrf.mxu0
      %1980 = vmatprep.mubr.f32.mxu0 0.0
      %1981 = vmatmul.mubr.f32.gmra.mxu0 %v1849
      %v1982 = vpop.f32.mrf.mxu0
      %v1983 = vadd.f32 %v1790, %v1982
      %v1984 = vpop.f32.mrf.mxu0
      %1985 = vmatprep.mubr.f32.mxu0 0.0
      %1986 = vmatmul.mubr.f32.gmra.mxu0 %v1852
      %v1987 = vpop.f32.mrf.mxu0
      %v1988 = vadd.f32 %v1795, %v1987
      %v1989 = vpop.f32.mrf.mxu0
      %1990 = vmatprep.mubr.f32.mxu0 0.0
      %1991 = vmatmul.mubr.f32.gmra.mxu0 %v1855
      %v1992 = vpop.f32.mrf.mxu0
      %v1993 = vadd.f32 %v1800, %v1992
      %v1994 = vpop.f32.mrf.mxu0
      %1995 = vmatprep.mubr.f32.mxu0 0.0
      %1996 = vmatmul.mubr.f32.gmra.mxu0 %v1858
      %v1997 = vpop.f32.mrf.mxu0
      %v1998 = vadd.f32 %v1805, %v1997
      %v1999 = vpop.f32.mrf.mxu0
      %2000 = vmatprep.mubr.f32.mxu0 0.0
      %2001 = vmatmul.mubr.f32.gmra.mxu0 %v1861
      %v2002 = vpop.f32.mrf.mxu0
      %v2003 = vadd.f32 %v1810, %v2002
      %v2004 = vpop.f32.mrf.mxu0
      %2005 = vmatprep.mubr.f32.mxu0 0.0
      %2006 = vmatmul.mubr.f32.gmra.mxu0 %v1864
      %v2007 = vpop.f32.mrf.mxu0
      %v2008 = vadd.f32 %v1815, %v2007
      %v2009 = vpop.f32.mrf.mxu0
      %2010 = vdwg.mxu0
      %v2011 = vlaneseq
      %v2012 = vshrl.u32 %v2011, 7
      %v2013 = vsub.s32 0, %v2012
      %v2014 = vrot.slane %v1669, %v2013
      %v2015 = vadd.f32 %v1933, %v2014
      %v2016 = vadd.f32 %v1938, %v2014
      %v2017 = vadd.f32 %v1943, %v2014
      %v2018 = vadd.f32 %v1948, %v2014
      %v2019 = vadd.f32 %v1953, %v2014
      %v2020 = vadd.f32 %v1958, %v2014
      %v2021 = vadd.f32 %v1963, %v2014
      %v2022 = vadd.f32 %v1968, %v2014
      %v2023 = vadd.f32 %v1973, %v2014
      %v2024 = vadd.f32 %v1978, %v2014
      %v2025 = vadd.f32 %v1983, %v2014
      %v2026 = vadd.f32 %v1988, %v2014
      %v2027 = vadd.f32 %v1993, %v2014
      %v2028 = vadd.f32 %v1998, %v2014
      %v2029 = vadd.f32 %v2003, %v2014
      %v2030 = vadd.f32 %v2008, %v2014
      %v2031 = vxor.u32 %v2015, 2147483648
      %v2032 = vxor.u32 %v2016, 2147483648
      %v2033 = vxor.u32 %v2017, 2147483648
      %v2034 = vxor.u32 %v2018, 2147483648
      %v2035 = vxor.u32 %v2019, 2147483648
      %v2036 = vxor.u32 %v2020, 2147483648
      %v2037 = vxor.u32 %v2021, 2147483648
      %v2038 = vxor.u32 %v2022, 2147483648
      %v2039 = vxor.u32 %v2023, 2147483648
      %v2040 = vxor.u32 %v2024, 2147483648
      %v2041 = vxor.u32 %v2025, 2147483648
      %v2042 = vxor.u32 %v2026, 2147483648
      %v2043 = vxor.u32 %v2027, 2147483648
      %v2044 = vxor.u32 %v2028, 2147483648
      %v2045 = vxor.u32 %v2029, 2147483648
      %v2046 = vxor.u32 %v2030, 2147483648
      %v2047 = vmul.f32 %v2031, 1.442695
      %v2048 = vpow.pop %v2047
      %v2049 = vmul.f32 %v2032, 1.442695
      %v2050 = vpow.pop %v2049
      %v2051 = vmul.f32 %v2033, 1.442695
      %v2052 = vpow.pop %v2051
      %v2053 = vmul.f32 %v2034, 1.442695
      %v2054 = vpow.pop %v2053
      %v2055 = vmul.f32 %v2035, 1.442695
      %v2056 = vpow.pop %v2055
      %v2057 = vmul.f32 %v2036, 1.442695
      %v2058 = vpow.pop %v2057
      %v2059 = vmul.f32 %v2037, 1.442695
      %v2060 = vpow.pop %v2059
      %v2061 = vmul.f32 %v2038, 1.442695
      %v2062 = vpow.pop %v2061
      %v2063 = vmul.f32 %v2039, 1.442695
      %v2064 = vpow.pop %v2063
      %v2065 = vmul.f32 %v2040, 1.442695
      %v2066 = vpow.pop %v2065
      %v2067 = vmul.f32 %v2041, 1.442695
      %v2068 = vpow.pop %v2067
      %v2069 = vmul.f32 %v2042, 1.442695
      %v2070 = vpow.pop %v2069
      %v2071 = vmul.f32 %v2043, 1.442695
      %v2072 = vpow.pop %v2071
      %v2073 = vmul.f32 %v2044, 1.442695
      %v2074 = vpow.pop %v2073
      %v2075 = vmul.f32 %v2045, 1.442695
      %v2076 = vpow.pop %v2075
      %v2077 = vmul.f32 %v2046, 1.442695
      %v2078 = vpow.pop %v2077
      %v2079 = vadd.f32 %v2048, 1.0
      %v2080 = vadd.f32 %v2050, 1.0
      %v2081 = vadd.f32 %v2052, 1.0
      %v2082 = vadd.f32 %v2054, 1.0
      %v2083 = vadd.f32 %v2056, 1.0
      %v2084 = vadd.f32 %v2058, 1.0
      %v2085 = vadd.f32 %v2060, 1.0
      %v2086 = vadd.f32 %v2062, 1.0
      %v2087 = vadd.f32 %v2064, 1.0
      %v2088 = vadd.f32 %v2066, 1.0
      %v2089 = vadd.f32 %v2068, 1.0
      %v2090 = vadd.f32 %v2070, 1.0
      %v2091 = vadd.f32 %v2072, 1.0
      %v2092 = vadd.f32 %v2074, 1.0
      %v2093 = vadd.f32 %v2076, 1.0
      %v2094 = vadd.f32 %v2078, 1.0
      %v2095 = vrcp.pop %v2079
      %v2096 = vmul.f32 1.0, %v2095
      %v2097 = vrcp.pop %v2080
      %v2098 = vmul.f32 1.0, %v2097
      %v2099 = vrcp.pop %v2081
      %v2100 = vmul.f32 1.0, %v2099
      %v2101 = vrcp.pop %v2082
      %v2102 = vmul.f32 1.0, %v2101
      %v2103 = vrcp.pop %v2083
      %v2104 = vmul.f32 1.0, %v2103
      %v2105 = vrcp.pop %v2084
      %v2106 = vmul.f32 1.0, %v2105
      %v2107 = vrcp.pop %v2085
      %v2108 = vmul.f32 1.0, %v2107
      %v2109 = vrcp.pop %v2086
      %v2110 = vmul.f32 1.0, %v2109
      %v2111 = vrcp.pop %v2087
      %v2112 = vmul.f32 1.0, %v2111
      %v2113 = vrcp.pop %v2088
      %v2114 = vmul.f32 1.0, %v2113
      %v2115 = vrcp.pop %v2089
      %v2116 = vmul.f32 1.0, %v2115
      %v2117 = vrcp.pop %v2090
      %v2118 = vmul.f32 1.0, %v2117
      %v2119 = vrcp.pop %v2091
      %v2120 = vmul.f32 1.0, %v2119
      %v2121 = vrcp.pop %v2092
      %v2122 = vmul.f32 1.0, %v2121
      %v2123 = vrcp.pop %v2093
      %v2124 = vmul.f32 1.0, %v2123
      %v2125 = vrcp.pop %v2094
      %v2126 = vmul.f32 1.0, %v2125
      %v2127 = vtanh.pop %v2015
      %v2128 = vtanh.pop %v2016
      %v2129 = vtanh.pop %v2017
      %v2130 = vtanh.pop %v2018
      %v2131 = vtanh.pop %v2019
      %v2132 = vtanh.pop %v2020
      %v2133 = vtanh.pop %v2021
      %v2134 = vtanh.pop %v2022
      %v2135 = vtanh.pop %v2023
      %v2136 = vtanh.pop %v2024
      %v2137 = vtanh.pop %v2025
      %v2138 = vtanh.pop %v2026
      %v2139 = vtanh.pop %v2027
      %v2140 = vtanh.pop %v2028
      %v2141 = vtanh.pop %v2029
      %v2142 = vtanh.pop %v2030
      %v2143 = vmul.f32 %v2096, 0.0
      %v2144 = vmul.f32 %v2098, 0.0
      %v2145 = vmul.f32 %v2100, 0.0
      %v2146 = vmul.f32 %v2102, 0.0
      %v2147 = vmul.f32 %v2104, 0.0
      %v2148 = vmul.f32 %v2106, 0.0
      %v2149 = vmul.f32 %v2108, 0.0
      %v2150 = vmul.f32 %v2110, 0.0
      %v2151 = vmul.f32 %v2112, 0.0
      %v2152 = vmul.f32 %v2114, 0.0
      %v2153 = vmul.f32 %v2116, 0.0
      %v2154 = vmul.f32 %v2118, 0.0
      %v2155 = vmul.f32 %v2120, 0.0
      %v2156 = vmul.f32 %v2122, 0.0
      %v2157 = vmul.f32 %v2124, 0.0
      %v2158 = vmul.f32 %v2126, 0.0
      %2175 = vrot.lane.b32.xlu0 %v2127, 64
      %v2176 = vpop.permute.xlu0 %2175
      %2177 = vrot.lane.b32.xlu0 %v2128, 64
      %v2178 = vpop.permute.xlu0 %2177
      %2179 = vrot.lane.b32.xlu0 %v2129, 64
      %v2180 = vpop.permute.xlu0 %2179
      %2181 = vrot.lane.b32.xlu0 %v2130, 64
      %v2182 = vpop.permute.xlu0 %2181
      %2183 = vrot.lane.b32.xlu0 %v2131, 64
      %v2184 = vpop.permute.xlu0 %2183
      %2185 = vrot.lane.b32.xlu0 %v2132, 64
      %v2186 = vpop.permute.xlu0 %2185
      %2187 = vrot.lane.b32.xlu0 %v2133, 64
      %v2188 = vpop.permute.xlu0 %2187
      %2189 = vrot.lane.b32.xlu0 %v2134, 64
      %v2190 = vpop.permute.xlu0 %2189
      %2191 = vrot.lane.b32.xlu0 %v2135, 64
      %v2192 = vpop.permute.xlu0 %2191
      %2193 = vrot.lane.b32.xlu0 %v2136, 64
      %v2194 = vpop.permute.xlu0 %2193
      %2195 = vrot.lane.b32.xlu0 %v2137, 64
      %v2196 = vpop.permute.xlu0 %2195
      %2197 = vrot.lane.b32.xlu0 %v2138, 64
      %v2198 = vpop.permute.xlu0 %2197
      %2199 = vrot.lane.b32.xlu0 %v2139, 64
      %v2200 = vpop.permute.xlu0 %2199
      %2201 = vrot.lane.b32.xlu0 %v2140, 64
      %v2202 = vpop.permute.xlu0 %2201
      %2203 = vrot.lane.b32.xlu0 %v2141, 64
      %v2204 = vpop.permute.xlu0 %2203
      %2205 = vrot.lane.b32.xlu0 %v2142, 64
      %v2206 = vpop.permute.xlu0 %2205
      %v2223 = vmul.f32 %v2096, %v2176
      %v2224 = vmul.f32 %v2098, %v2178
      %v2225 = vmul.f32 %v2100, %v2180
      %v2226 = vmul.f32 %v2102, %v2182
      %v2227 = vmul.f32 %v2104, %v2184
      %v2228 = vmul.f32 %v2106, %v2186
      %v2229 = vmul.f32 %v2108, %v2188
      %v2230 = vmul.f32 %v2110, %v2190
      %v2231 = vmul.f32 %v2112, %v2192
      %v2232 = vmul.f32 %v2114, %v2194
      %v2233 = vmul.f32 %v2116, %v2196
      %v2234 = vmul.f32 %v2118, %v2198
      %v2235 = vmul.f32 %v2120, %v2200
      %v2236 = vmul.f32 %v2122, %v2202
      %v2237 = vmul.f32 %v2124, %v2204
      %v2238 = vmul.f32 %v2126, %v2206
      %2255 = vrot.lane.b32.xlu0 %v2223, 32
      %v2256 = vpop.permute.xlu0 %2255
      %2257 = vrot.lane.b32.xlu0 %v2224, 32
      %v2258 = vpop.permute.xlu0 %2257
      %2259 = vrot.lane.b32.xlu0 %v2225, 32
      %v2260 = vpop.permute.xlu0 %2259
      %2261 = vrot.lane.b32.xlu0 %v2226, 32
      %v2262 = vpop.permute.xlu0 %2261
      %2263 = vrot.lane.b32.xlu0 %v2227, 32
      %v2264 = vpop.permute.xlu0 %2263
      %2265 = vrot.lane.b32.xlu0 %v2228, 32
      %v2266 = vpop.permute.xlu0 %2265
      %2267 = vrot.lane.b32.xlu0 %v2229, 32
      %v2268 = vpop.permute.xlu0 %2267
      %2269 = vrot.lane.b32.xlu0 %v2230, 32
      %v2270 = vpop.permute.xlu0 %2269
      %2271 = vrot.lane.b32.xlu0 %v2231, 32
      %v2272 = vpop.permute.xlu0 %2271
      %2273 = vrot.lane.b32.xlu0 %v2232, 32
      %v2274 = vpop.permute.xlu0 %2273
      %2275 = vrot.lane.b32.xlu0 %v2233, 32
      %v2276 = vpop.permute.xlu0 %2275
      %2277 = vrot.lane.b32.xlu0 %v2234, 32
      %v2278 = vpop.permute.xlu0 %2277
      %2279 = vrot.lane.b32.xlu0 %v2235, 32
      %v2280 = vpop.permute.xlu0 %2279
      %2281 = vrot.lane.b32.xlu0 %v2236, 32
      %v2282 = vpop.permute.xlu0 %2281
      %2283 = vrot.lane.b32.xlu0 %v2237, 32
      %v2284 = vpop.permute.xlu0 %2283
      %2285 = vrot.lane.b32.xlu0 %v2238, 32
      %v2286 = vpop.permute.xlu0 %2285
      %v2303 = vadd.f32 %v2143, %v2256
      %v2304 = vadd.f32 %v2144, %v2258
      %v2305 = vadd.f32 %v2145, %v2260
      %v2306 = vadd.f32 %v2146, %v2262
      %v2307 = vadd.f32 %v2147, %v2264
      %v2308 = vadd.f32 %v2148, %v2266
      %v2309 = vadd.f32 %v2149, %v2268
      %v2310 = vadd.f32 %v2150, %v2270
      %v2311 = vadd.f32 %v2151, %v2272
      %v2312 = vadd.f32 %v2152, %v2274
      %v2313 = vadd.f32 %v2153, %v2276
      %v2314 = vadd.f32 %v2154, %v2278
      %v2315 = vadd.f32 %v2155, %v2280
      %v2316 = vadd.f32 %v2156, %v2282
      %v2317 = vadd.f32 %v2157, %v2284
      %v2318 = vadd.f32 %v2158, %v2286
      %v2319 = vtanh.pop %v2303
      %v2320 = vtanh.pop %v2304
      %v2321 = vtanh.pop %v2305
      %v2322 = vtanh.pop %v2306
      %v2323 = vtanh.pop %v2307
      %v2324 = vtanh.pop %v2308
      %v2325 = vtanh.pop %v2309
      %v2326 = vtanh.pop %v2310
      %v2327 = vtanh.pop %v2311
      %v2328 = vtanh.pop %v2312
      %v2329 = vtanh.pop %v2313
      %v2330 = vtanh.pop %v2314
      %v2331 = vtanh.pop %v2315
      %v2332 = vtanh.pop %v2316
      %v2333 = vtanh.pop %v2317
      %v2334 = vtanh.pop %v2318
      %2351 = vrot.lane.b32.xlu0 %v2319, 64
      %v2352 = vpop.permute.xlu0 %2351
      %2353 = vrot.lane.b32.xlu0 %v2320, 64
      %v2354 = vpop.permute.xlu0 %2353
      %2355 = vrot.lane.b32.xlu0 %v2321, 64
      %v2356 = vpop.permute.xlu0 %2355
      %2357 = vrot.lane.b32.xlu0 %v2322, 64
      %v2358 = vpop.permute.xlu0 %2357
      %2359 = vrot.lane.b32.xlu0 %v2323, 64
      %v2360 = vpop.permute.xlu0 %2359
      %2361 = vrot.lane.b32.xlu0 %v2324, 64
      %v2362 = vpop.permute.xlu0 %2361
      %2363 = vrot.lane.b32.xlu0 %v2325, 64
      %v2364 = vpop.permute.xlu0 %2363
      %2365 = vrot.lane.b32.xlu0 %v2326, 64
      %v2366 = vpop.permute.xlu0 %2365
      %2367 = vrot.lane.b32.xlu0 %v2327, 64
      %v2368 = vpop.permute.xlu0 %2367
      %2369 = vrot.lane.b32.xlu0 %v2328, 64
      %v2370 = vpop.permute.xlu0 %2369
      %2371 = vrot.lane.b32.xlu0 %v2329, 64
      %v2372 = vpop.permute.xlu0 %2371
      %2373 = vrot.lane.b32.xlu0 %v2330, 64
      %v2374 = vpop.permute.xlu0 %2373
      %2375 = vrot.lane.b32.xlu0 %v2331, 64
      %v2376 = vpop.permute.xlu0 %2375
      %2377 = vrot.lane.b32.xlu0 %v2332, 64
      %v2378 = vpop.permute.xlu0 %2377
      %2379 = vrot.lane.b32.xlu0 %v2333, 64
      %v2380 = vpop.permute.xlu0 %2379
      %2381 = vrot.lane.b32.xlu0 %v2334, 64
      %v2382 = vpop.permute.xlu0 %2381
      %v2399 = vmul.f32 %v2096, %v2352
      %v2400 = vmul.f32 %v2098, %v2354
      %v2401 = vmul.f32 %v2100, %v2356
      %v2402 = vmul.f32 %v2102, %v2358
      %v2403 = vmul.f32 %v2104, %v2360
      %v2404 = vmul.f32 %v2106, %v2362
      %v2405 = vmul.f32 %v2108, %v2364
      %v2406 = vmul.f32 %v2110, %v2366
      %v2407 = vmul.f32 %v2112, %v2368
      %v2408 = vmul.f32 %v2114, %v2370
      %v2409 = vmul.f32 %v2116, %v2372
      %v2410 = vmul.f32 %v2118, %v2374
      %v2411 = vmul.f32 %v2120, %v2376
      %v2412 = vmul.f32 %v2122, %v2378
      %v2413 = vmul.f32 %v2124, %v2380
      %v2414 = vmul.f32 %v2126, %v2382
      %v2415 = vmul.f32 %v2399, 0.999995
      %v2416 = vmul.f32 %v2400, 0.999995
      %v2417 = vmul.f32 %v2401, 0.999995
      %v2418 = vmul.f32 %v2402, 0.999995
      %v2419 = vmul.f32 %v2403, 0.999995
      %v2420 = vmul.f32 %v2404, 0.999995
      %v2421 = vmul.f32 %v2405, 0.999995
      %v2422 = vmul.f32 %v2406, 0.999995
      %v2423 = vmul.f32 %v2407, 0.999995
      %v2424 = vmul.f32 %v2408, 0.999995
      %v2425 = vmul.f32 %v2409, 0.999995
      %v2426 = vmul.f32 %v2410, 0.999995
      %v2427 = vmul.f32 %v2411, 0.999995
      %v2428 = vmul.f32 %v2412, 0.999995
      %v2429 = vmul.f32 %v2413, 0.999995
      %v2430 = vmul.f32 %v2414, 0.999995
      %v2431 = vmax.f32 %v2415, 0.0
      %v2432 = vmax.f32 %v2416, 0.0
      %v2433 = vmax.f32 %v2417, 0.0
      %v2434 = vmax.f32 %v2418, 0.0
      %v2435 = vmax.f32 %v2419, 0.0
      %v2436 = vmax.f32 %v2420, 0.0
      %v2437 = vmax.f32 %v2421, 0.0
      %v2438 = vmax.f32 %v2422, 0.0
      %v2439 = vmax.f32 %v2423, 0.0
      %v2440 = vmax.f32 %v2424, 0.0
      %v2441 = vmax.f32 %v2425, 0.0
      %v2442 = vmax.f32 %v2426, 0.0
      %v2443 = vmax.f32 %v2427, 0.0
      %v2444 = vmax.f32 %v2428, 0.0
      %v2445 = vmax.f32 %v2429, 0.0
      %v2446 = vmax.f32 %v2430, 0.0
      %v2447 = vld [vmem:[%s4 + $0x50] sm:$0xff]
      %v2448 = vld [vmem:[%s4 + $0x58] sm:$0xff]
      %v2449 = vld [vmem:[%s4 + $0x60] sm:$0xff]
      %v2450 = vld [vmem:[%s4 + $0x68] sm:$0xff]
      %v2451 = vld [vmem:[%s4 + $0xf] sm:$0x1]
      %v2452 = vld [vmem:[%s4 + $0x70] sm:$0xff]
      %v2453 = vld [vmem:[%s4 + $0x78] sm:$0xff]
      %v2454 = vld [vmem:[%s4 + $0x80] sm:$0xff]
      %v2455 = vld [vmem:[%s4 + $0x88] sm:$0xff]
      %v2456 = vld [vmem:[%s4 + $0x90] sm:$0x1]
      %2457 = vmatprep.subr.mxu0 0.0
      %2458 = vmatpush1.msra.mxu0 %v813
      %2459 = vmatprep.subr.mxu0 0.0
      %2460 = vmatpush1.msra.mxu0 %v812
      %2461 = vmatprep.subr.mxu0 0.0
      %2462 = vmatpush1.msra.mxu0 %v811
      %2463 = vmatprep.subr.mxu0 0.0
      %2464 = vmatpush1.msra.mxu0 %v810
      %2465 = vmatprep.subr.mxu0 0.0
      %2466 = vmatpush1.msra.mxu0 %v809
      %2467 = vmatprep.subr.mxu0 0.0
      %2468 = vmatpush1.msra.mxu0 %v808
      %2469 = vmatprep.subr.mxu0 0.0
      %2470 = vmatpush1.msra.mxu0 %v807
      %2471 = vmatprep.subr.mxu0 0.0
      %2472 = vmatpush1.msra.mxu0 %v806
      %2473 = vmatprep.subr.mxu0 0.0
      %2474 = vmatpush1.msra.mxu0 %v805
      %2475 = vmatprep.subr.mxu0 0.0
      %2476 = vmatpush1.msra.mxu0 %v804
      %2477 = vmatprep.subr.mxu0 0.0
      %2478 = vmatpush1.msra.mxu0 %v803
      %2479 = vmatprep.subr.mxu0 0.0
      %2480 = vmatpush1.msra.mxu0 %v802
      %2481 = vmatprep.subr.mxu0 0.0
      %2482 = vmatpush1.msra.mxu0 %v801
      %2483 = vmatprep.subr.mxu0 0.0
      %2484 = vmatpush1.msra.mxu0 %v800
      %2485 = vmatprep.subr.mxu0 0.0
      %2486 = vmatpush1.msra.mxu0 %v799
      %2487 = vmatprep.subr.mxu0 0.0
      %2488 = vmatpush1.msra.mxu0 %v798
      %2489 = vmatprep.subr.mxu0 0.0
      %2490 = vmatpush2.msra.mxu0 0.0
      %2491 = vmatprep.subr.mxu0 0.0
      %2492 = vmatpush2.msra.mxu0 0.0
      %2493 = vmatprep.subr.mxu0 0.0
      %2494 = vmatpush2.msra.mxu0 0.0
      %2495 = vmatprep.subr.mxu0 0.0
      %2496 = vmatpush2.msra.mxu0 0.0
      %2497 = vmatprep.subr.mxu0 0.0
      %2498 = vmatpush2.msra.mxu0 0.0
      %2499 = vmatprep.subr.mxu0 0.0
      %2500 = vmatpush2.msra.mxu0 0.0
      %2501 = vmatprep.subr.mxu0 0.0
      %2502 = vmatpush2.msra.mxu0 0.0
      %2503 = vmatprep.subr.mxu0 0.0
      %2504 = vmatpush2.msra.mxu0 0.0
      %2505 = vmatprep.subr.mxu0 0.0
      %2506 = vmatpush2.msra.mxu0 0.0
      %2507 = vmatprep.subr.mxu0 0.0
      %2508 = vmatpush2.msra.mxu0 0.0
      %2509 = vmatprep.subr.mxu0 0.0
      %2510 = vmatpush2.msra.mxu0 0.0
      %2511 = vmatprep.subr.mxu0 0.0
      %2512 = vmatpush2.msra.mxu0 0.0
      %2513 = vmatprep.subr.mxu0 0.0
      %2514 = vmatpush2.msra.mxu0 0.0
      %2515 = vmatprep.subr.mxu0 0.0
      %2516 = vmatpush2.msra.mxu0 0.0
      %2517 = vmatprep.subr.mxu0 0.0
      %2518 = vmatpush2.msra.mxu0 0.0
      %2519 = vmatprep.subr.mxu0 0.0
      %2520 = vmatpush2.msra.mxu0 0.0
      %2521 = vmatprep.mubr.f32.mxu0 0.0
      %2522 = vmatmul.mubr.f32.gmra.mxu0 %v356
      %v2523 = vpop.f32.mrf.mxu0
      %v2524 = vadd.f32 0.0, %v2523
      %v2525 = vpop.f32.mrf.mxu0
      %2526 = vdwg.mxu0
      %v2527 = vlaneseq
      %v2528 = vshrl.u32 %v2527, 7
      %v2529 = vsub.s32 0, %v2528
      %v2530 = vrot.slane %v2451, %v2529
      %v2532 = vsel %vm837, %v2524, 0
      %2534 = vmatprep.subr.mxu0 0.0
      %2535 = vmatpush1.msra.mxu0 0.0
      %2536 = vmatprep.subr.mxu0 0.0
      %2537 = vmatpush1.msra.mxu0 0.0
      %2538 = vmatprep.subr.mxu0 0.0
      %2539 = vmatpush1.msra.mxu0 0.0
      %2540 = vmatprep.subr.mxu0 0.0
      %2541 = vmatpush1.msra.mxu0 0.0
      %2542 = vmatprep.subr.mxu0 0.0
      %2543 = vmatpush1.msra.mxu0 0.0
      %2544 = vmatprep.subr.mxu0 0.0
      %2545 = vmatpush1.msra.mxu0 0.0
      %2546 = vmatprep.subr.mxu0 0.0
      %2547 = vmatpush1.msra.mxu0 0.0
      %2548 = vmatprep.subr.mxu0 0.0
      %2549 = vmatpush1.msra.mxu0 0.0
      %2550 = vmatprep.subr.mxu0 0.0
      %2551 = vmatpush1.msra.mxu0 0.0
      %2552 = vmatprep.subr.mxu0 0.0
      %2553 = vmatpush1.msra.mxu0 0.0
      %2554 = vmatprep.subr.mxu0 0.0
      %2555 = vmatpush1.msra.mxu0 0.0
      %2556 = vmatprep.subr.mxu0 0.0
      %2557 = vmatpush1.msra.mxu0 0.0
      %2558 = vmatprep.subr.mxu0 0.0
      %2559 = vmatpush1.msra.mxu0 %v2450
      %2560 = vmatprep.subr.mxu0 0.0
      %2561 = vmatpush1.msra.mxu0 %v2449
      %2562 = vmatprep.subr.mxu0 0.0
      %2563 = vmatpush1.msra.mxu0 %v2448
      %2564 = vmatprep.subr.mxu0 0.0
      %2565 = vmatpush1.msra.mxu0 %v2447
      %2566 = vmatprep.subr.mxu0 0.0
      %2567 = vmatpush2.msra.mxu0 0.0
      %2568 = vmatprep.subr.mxu0 0.0
      %2569 = vmatpush2.msra.mxu0 0.0
      %2570 = vmatprep.subr.mxu0 0.0
      %2571 = vmatpush2.msra.mxu0 0.0
      %2572 = vmatprep.subr.mxu0 0.0
      %2573 = vmatpush2.msra.mxu0 0.0
      %2574 = vmatprep.subr.mxu0 0.0
      %2575 = vmatpush2.msra.mxu0 0.0
      %2576 = vmatprep.subr.mxu0 0.0
      %2577 = vmatpush2.msra.mxu0 0.0
      %2578 = vmatprep.subr.mxu0 0.0
      %2579 = vmatpush2.msra.mxu0 0.0
      %2580 = vmatprep.subr.mxu0 0.0
      %2581 = vmatpush2.msra.mxu0 0.0
      %2582 = vmatprep.subr.mxu0 0.0
      %2583 = vmatpush2.msra.mxu0 0.0
      %2584 = vmatprep.subr.mxu0 0.0
      %2585 = vmatpush2.msra.mxu0 0.0
      %2586 = vmatprep.subr.mxu0 0.0
      %2587 = vmatpush2.msra.mxu0 0.0
      %2588 = vmatprep.subr.mxu0 0.0
      %2589 = vmatpush2.msra.mxu0 0.0
      %2590 = vmatprep.subr.mxu0 0.0
      %2591 = vmatpush2.msra.mxu0 0.0
      %2592 = vmatprep.subr.mxu0 0.0
      %2593 = vmatpush2.msra.mxu0 0.0
      %2594 = vmatprep.subr.mxu0 0.0
      %2595 = vmatpush2.msra.mxu0 0.0
      %2596 = vmatprep.subr.mxu0 0.0
      %2597 = vmatpush2.msra.mxu0 0.0
      %2598 = vmatprep.mubr.f32.mxu0 0.0
      %2599 = vmatmul.mubr.f32.gmra.mxu0 %v2532
      %v2600 = vpop.f32.mrf.mxu0
      %v2601 = vadd.f32 %v2530, %v2600
      %v2602 = vpop.f32.mrf.mxu0
      %2603 = vdwg.mxu0
      %v2604 = vmul.f32 %v2601, 0.999995
      %v2605 = vmax.f32 %v2604, 0.0
      %v2606 = vlaneseq
      %v2607 = vshrl.u32 %v2606, 7
      %v2608 = vsub.s32 0, %v2607
      %v2609 = vrot.slane %v2456, %v2608
      %v2611 = vsel %vm837, %v2605, 0
      %2613 = vmatprep.subr.mxu0 0.0
      %2614 = vmatpush1.msra.mxu0 0.0
      %2615 = vmatprep.subr.mxu0 0.0
      %2616 = vmatpush1.msra.mxu0 0.0
      %2617 = vmatprep.subr.mxu0 0.0
      %2618 = vmatpush1.msra.mxu0 0.0
      %2619 = vmatprep.subr.mxu0 0.0
      %2620 = vmatpush1.msra.mxu0 0.0
      %2621 = vmatprep.subr.mxu0 0.0
      %2622 = vmatpush1.msra.mxu0 0.0
      %2623 = vmatprep.subr.mxu0 0.0
      %2624 = vmatpush1.msra.mxu0 0.0
      %2625 = vmatprep.subr.mxu0 0.0
      %2626 = vmatpush1.msra.mxu0 0.0
      %2627 = vmatprep.subr.mxu0 0.0
      %2628 = vmatpush1.msra.mxu0 0.0
      %2629 = vmatprep.subr.mxu0 0.0
      %2630 = vmatpush1.msra.mxu0 0.0
      %2631 = vmatprep.subr.mxu0 0.0
      %2632 = vmatpush1.msra.mxu0 0.0
      %2633 = vmatprep.subr.mxu0 0.0
      %2634 = vmatpush1.msra.mxu0 0.0
      %2635 = vmatprep.subr.mxu0 0.0
      %2636 = vmatpush1.msra.mxu0 0.0
      %2637 = vmatprep.subr.mxu0 0.0
      %2638 = vmatpush1.msra.mxu0 %v2455
      %2639 = vmatprep.subr.mxu0 0.0
      %2640 = vmatpush1.msra.mxu0 %v2454
      %2641 = vmatprep.subr.mxu0 0.0
      %2642 = vmatpush1.msra.mxu0 %v2453
      %2643 = vmatprep.subr.mxu0 0.0
      %2644 = vmatpush1.msra.mxu0 %v2452
      %2645 = vmatprep.subr.mxu0 0.0
      %2646 = vmatpush2.msra.mxu0 0.0
      %2647 = vmatprep.subr.mxu0 0.0
      %2648 = vmatpush2.msra.mxu0 0.0
      %2649 = vmatprep.subr.mxu0 0.0
      %2650 = vmatpush2.msra.mxu0 0.0
      %2651 = vmatprep.subr.mxu0 0.0
      %2652 = vmatpush2.msra.mxu0 0.0
      %2653 = vmatprep.subr.mxu0 0.0
      %2654 = vmatpush2.msra.mxu0 0.0
      %2655 = vmatprep.subr.mxu0 0.0
      %2656 = vmatpush2.msra.mxu0 0.0
      %2657 = vmatprep.subr.mxu0 0.0
      %2658 = vmatpush2.msra.mxu0 0.0
      %2659 = vmatprep.subr.mxu0 0.0
      %2660 = vmatpush2.msra.mxu0 0.0
      %2661 = vmatprep.subr.mxu0 0.0
      %2662 = vmatpush2.msra.mxu0 0.0
      %2663 = vmatprep.subr.mxu0 0.0
      %2664 = vmatpush2.msra.mxu0 0.0
      %2665 = vmatprep.subr.mxu0 0.0
      %2666 = vmatpush2.msra.mxu0 0.0
      %2667 = vmatprep.subr.mxu0 0.0
      %2668 = vmatpush2.msra.mxu0 0.0
      %2669 = vmatprep.subr.mxu0 0.0
      %2670 = vmatpush2.msra.mxu0 0.0
      %2671 = vmatprep.subr.mxu0 0.0
      %2672 = vmatpush2.msra.mxu0 0.0
      %2673 = vmatprep.subr.mxu0 0.0
      %2674 = vmatpush2.msra.mxu0 0.0
      %2675 = vmatprep.subr.mxu0 0.0
      %2676 = vmatpush2.msra.mxu0 0.0
      %2677 = vmatprep.mubr.f32.mxu0 0.0
      %2678 = vmatmul.mubr.f32.gmra.mxu0 %v2611
      %v2679 = vpop.f32.mrf.mxu0
      %v2680 = vadd.f32 %v2609, %v2679
      %v2681 = vpop.f32.mrf.mxu0
      %2682 = vdwg.mxu0
      %v2683 = vmul.f32 %v2680, 0.999995
      %v2684 = vmax.f32 %v2683, 0.0
      %2685 = vmatprep.subr.mxu0 0.0
      %2686 = vmatpush1.msra.mxu0 0.0
      %2687 = vmatprep.subr.mxu0 0.0
      %2688 = vmatpush1.msra.mxu0 0.0
      %2689 = vmatprep.subr.mxu0 0.0
      %2690 = vmatpush1.msra.mxu0 0.0
      %2691 = vmatprep.subr.mxu0 0.0
      %2692 = vmatpush1.msra.mxu0 0.0
      %2693 = vmatprep.subr.mxu0 0.0
      %2694 = vmatpush1.msra.mxu0 0.0
      %2695 = vmatprep.subr.mxu0 0.0
      %2696 = vmatpush1.msra.mxu0 0.0
      %2697 = vmatprep.subr.mxu0 0.0
      %2698 = vmatpush1.msra.mxu0 0.0
      %2699 = vmatprep.subr.mxu0 0.0
      %2700 = vmatpush1.msra.mxu0 0.0
      %2701 = vmatprep.subr.mxu0 0.0
      %2702 = vmatpush1.msra.mxu0 0.0
      %2703 = vmatprep.subr.mxu0 0.0
      %2704 = vmatpush1.msra.mxu0 0.0
      %2705 = vmatprep.subr.mxu0 0.0
      %2706 = vmatpush1.msra.mxu0 0.0
      %2707 = vmatprep.subr.mxu0 0.0
      %2708 = vmatpush1.msra.mxu0 0.0
      %2709 = vmatprep.subr.mxu0 0.0
      %2710 = vmatpush1.msra.mxu0 0.0
      %2711 = vmatprep.subr.mxu0 0.0
      %2712 = vmatpush1.msra.mxu0 0.0
      %2713 = vmatprep.subr.mxu0 0.0
      %2714 = vmatpush1.msra.mxu0 0.0
      %2715 = vmatprep.subr.mxu0 0.0
      %2716 = vmatpush1.msra.mxu0 %v2684
      %2717 = vmatprep.subr.mxu0 0.0
      %2718 = vmatpush2.msra.mxu0 0.0
      %2719 = vmatprep.subr.mxu0 0.0
      %2720 = vmatpush2.msra.mxu0 0.0
      %2721 = vmatprep.subr.mxu0 0.0
      %2722 = vmatpush2.msra.mxu0 0.0
      %2723 = vmatprep.subr.mxu0 0.0
      %2724 = vmatpush2.msra.mxu0 0.0
      %2725 = vmatprep.subr.mxu0 0.0
      %2726 = vmatpush2.msra.mxu0 0.0
      %2727 = vmatprep.subr.mxu0 0.0
      %2728 = vmatpush2.msra.mxu0 0.0
      %2729 = vmatprep.subr.mxu0 0.0
      %2730 = vmatpush2.msra.mxu0 0.0
      %2731 = vmatprep.subr.mxu0 0.0
      %2732 = vmatpush2.msra.mxu0 0.0
      %2733 = vmatprep.subr.mxu0 0.0
      %2734 = vmatpush2.msra.mxu0 0.0
      %2735 = vmatprep.subr.mxu0 0.0
      %2736 = vmatpush2.msra.mxu0 0.0
      %2737 = vmatprep.subr.mxu0 0.0
      %2738 = vmatpush2.msra.mxu0 0.0
      %2739 = vmatprep.subr.mxu0 0.0
      %2740 = vmatpush2.msra.mxu0 0.0
      %2741 = vmatprep.subr.mxu0 0.0
      %2742 = vmatpush2.msra.mxu0 0.0
      %2743 = vmatprep.subr.mxu0 0.0
      %2744 = vmatpush2.msra.mxu0 0.0
      %2745 = vmatprep.subr.mxu0 0.0
      %2746 = vmatpush2.msra.mxu0 0.0
      %2747 = vmatprep.subr.mxu0 0.0
      %2748 = vmatpush2.msra.mxu0 0.0
      %2749 = vmatprep.mubr.f32.mxu0 0.0
      %2750 = vmatmul.mubr.f32.gmra.mxu0 %v606
      %v2751 = vpop.f32.mrf.mxu0
      %v2752 = vadd.f32 0.0, %v2751
      %v2753 = vpop.f32.mrf.mxu0
      %2754 = vmatprep.mubr.f32.mxu0 0.0
      %2755 = vmatmul.mubr.f32.gmra.mxu0 %v609
      %v2756 = vpop.f32.mrf.mxu0
      %v2757 = vadd.f32 0.0, %v2756
      %v2758 = vpop.f32.mrf.mxu0
      %2759 = vmatprep.mubr.f32.mxu0 0.0
      %2760 = vmatmul.mubr.f32.gmra.mxu0 %v612
      %v2761 = vpop.f32.mrf.mxu0
      %v2762 = vadd.f32 0.0, %v2761
      %v2763 = vpop.f32.mrf.mxu0
      %2764 = vmatprep.mubr.f32.mxu0 0.0
      %2765 = vmatmul.mubr.f32.gmra.mxu0 %v615
      %v2766 = vpop.f32.mrf.mxu0
      %v2767 = vadd.f32 0.0, %v2766
      %v2768 = vpop.f32.mrf.mxu0
      %2769 = vmatprep.mubr.f32.mxu0 0.0
      %2770 = vmatmul.mubr.f32.gmra.mxu0 %v618
      %v2771 = vpop.f32.mrf.mxu0
      %v2772 = vadd.f32 0.0, %v2771
      %v2773 = vpop.f32.mrf.mxu0
      %2774 = vmatprep.mubr.f32.mxu0 0.0
      %2775 = vmatmul.mubr.f32.gmra.mxu0 %v621
      %v2776 = vpop.f32.mrf.mxu0
      %v2777 = vadd.f32 0.0, %v2776
      %v2778 = vpop.f32.mrf.mxu0
      %2779 = vmatprep.mubr.f32.mxu0 0.0
      %2780 = vmatmul.mubr.f32.gmra.mxu0 %v624
      %v2781 = vpop.f32.mrf.mxu0
      %v2782 = vadd.f32 0.0, %v2781
      %v2783 = vpop.f32.mrf.mxu0
      %2784 = vmatprep.mubr.f32.mxu0 0.0
      %2785 = vmatmul.mubr.f32.gmra.mxu0 %v627
      %v2786 = vpop.f32.mrf.mxu0
      %v2787 = vadd.f32 0.0, %v2786
      %v2788 = vpop.f32.mrf.mxu0
      %2789 = vmatprep.mubr.f32.mxu0 0.0
      %2790 = vmatmul.mubr.f32.gmra.mxu0 %v630
      %v2791 = vpop.f32.mrf.mxu0
      %v2792 = vadd.f32 0.0, %v2791
      %v2793 = vpop.f32.mrf.mxu0
      %2794 = vmatprep.mubr.f32.mxu0 0.0
      %2795 = vmatmul.mubr.f32.gmra.mxu0 %v633
      %v2796 = vpop.f32.mrf.mxu0
      %v2797 = vadd.f32 0.0, %v2796
      %v2798 = vpop.f32.mrf.mxu0
      %2799 = vmatprep.mubr.f32.mxu0 0.0
      %2800 = vmatmul.mubr.f32.gmra.mxu0 %v636
      %v2801 = vpop.f32.mrf.mxu0
      %v2802 = vadd.f32 0.0, %v2801
      %v2803 = vpop.f32.mrf.mxu0
      %2804 = vmatprep.mubr.f32.mxu0 0.0
      %2805 = vmatmul.mubr.f32.gmra.mxu0 %v639
      %v2806 = vpop.f32.mrf.mxu0
      %v2807 = vadd.f32 0.0, %v2806
      %v2808 = vpop.f32.mrf.mxu0
      %2809 = vmatprep.mubr.f32.mxu0 0.0
      %2810 = vmatmul.mubr.f32.gmra.mxu0 %v642
      %v2811 = vpop.f32.mrf.mxu0
      %v2812 = vadd.f32 0.0, %v2811
      %v2813 = vpop.f32.mrf.mxu0
      %2814 = vmatprep.mubr.f32.mxu0 0.0
      %2815 = vmatmul.mubr.f32.gmra.mxu0 %v645
      %v2816 = vpop.f32.mrf.mxu0
      %v2817 = vadd.f32 0.0, %v2816
      %v2818 = vpop.f32.mrf.mxu0
      %2819 = vmatprep.mubr.f32.mxu0 0.0
      %2820 = vmatmul.mubr.f32.gmra.mxu0 %v648
      %v2821 = vpop.f32.mrf.mxu0
      %v2822 = vadd.f32 0.0, %v2821
      %v2823 = vpop.f32.mrf.mxu0
      %2824 = vmatprep.mubr.f32.mxu0 0.0
      %2825 = vmatmul.mubr.f32.gmra.mxu0 %v651
      %v2826 = vpop.f32.mrf.mxu0
      %v2827 = vadd.f32 0.0, %v2826
      %v2828 = vpop.f32.mrf.mxu0
      %2829 = vdwg.mxu0
      %2846 = vrot.lane.b32.xlu0 %v2752, 96
      %v2847 = vpop.permute.xlu0 %2846
      %2848 = vrot.lane.b32.xlu0 %v2757, 96
      %v2849 = vpop.permute.xlu0 %2848
      %2850 = vrot.lane.b32.xlu0 %v2762, 96
      %v2851 = vpop.permute.xlu0 %2850
      %2852 = vrot.lane.b32.xlu0 %v2767, 96
      %v2853 = vpop.permute.xlu0 %2852
      %2854 = vrot.lane.b32.xlu0 %v2772, 96
      %v2855 = vpop.permute.xlu0 %2854
      %2856 = vrot.lane.b32.xlu0 %v2777, 96
      %v2857 = vpop.permute.xlu0 %2856
      %2858 = vrot.lane.b32.xlu0 %v2782, 96
      %v2859 = vpop.permute.xlu0 %2858
      %2860 = vrot.lane.b32.xlu0 %v2787, 96
      %v2861 = vpop.permute.xlu0 %2860
      %2862 = vrot.lane.b32.xlu0 %v2792, 96
      %v2863 = vpop.permute.xlu0 %2862
      %2864 = vrot.lane.b32.xlu0 %v2797, 96
      %v2865 = vpop.permute.xlu0 %2864
      %2866 = vrot.lane.b32.xlu0 %v2802, 96
      %v2867 = vpop.permute.xlu0 %2866
      %2868 = vrot.lane.b32.xlu0 %v2807, 96
      %v2869 = vpop.permute.xlu0 %2868
      %2870 = vrot.lane.b32.xlu0 %v2812, 96
      %v2871 = vpop.permute.xlu0 %2870
      %2872 = vrot.lane.b32.xlu0 %v2817, 96
      %v2873 = vpop.permute.xlu0 %2872
      %2874 = vrot.lane.b32.xlu0 %v2822, 96
      %v2875 = vpop.permute.xlu0 %2874
      %2876 = vrot.lane.b32.xlu0 %v2827, 96
      %v2877 = vpop.permute.xlu0 %2876
      %v2894 = vadd.f32 %v2431, %v2847
      %v2895 = vadd.f32 %v2432, %v2849
      %v2896 = vadd.f32 %v2433, %v2851
      %v2897 = vadd.f32 %v2434, %v2853
      %v2898 = vadd.f32 %v2435, %v2855
      %v2899 = vadd.f32 %v2436, %v2857
      %v2900 = vadd.f32 %v2437, %v2859
      %v2901 = vadd.f32 %v2438, %v2861
      %v2902 = vadd.f32 %v2439, %v2863
      %v2903 = vadd.f32 %v2440, %v2865
      %v2904 = vadd.f32 %v2441, %v2867
      %v2905 = vadd.f32 %v2442, %v2869
      %v2906 = vadd.f32 %v2443, %v2871
      %v2907 = vadd.f32 %v2444, %v2873
      %v2908 = vadd.f32 %v2445, %v2875
      %v2909 = vadd.f32 %v2446, %v2877
      %2926 = vrot.lane.b32.xlu0 %v2894, 32
      %v2927 = vpop.permute.xlu0 %2926
      %2928 = vrot.lane.b32.xlu0 %v2895, 32
      %v2929 = vpop.permute.xlu0 %2928
      %2930 = vrot.lane.b32.xlu0 %v2896, 32
      %v2931 = vpop.permute.xlu0 %2930
      %2932 = vrot.lane.b32.xlu0 %v2897, 32
      %v2933 = vpop.permute.xlu0 %2932
      %2934 = vrot.lane.b32.xlu0 %v2898, 32
      %v2935 = vpop.permute.xlu0 %2934
      %2936 = vrot.lane.b32.xlu0 %v2899, 32
      %v2937 = vpop.permute.xlu0 %2936
      %2938 = vrot.lane.b32.xlu0 %v2900, 32
      %v2939 = vpop.permute.xlu0 %2938
      %2940 = vrot.lane.b32.xlu0 %v2901, 32
      %v2941 = vpop.permute.xlu0 %2940
      %2942 = vrot.lane.b32.xlu0 %v2902, 32
      %v2943 = vpop.permute.xlu0 %2942
      %2944 = vrot.lane.b32.xlu0 %v2903, 32
      %v2945 = vpop.permute.xlu0 %2944
      %2946 = vrot.lane.b32.xlu0 %v2904, 32
      %v2947 = vpop.permute.xlu0 %2946
      %2948 = vrot.lane.b32.xlu0 %v2905, 32
      %v2949 = vpop.permute.xlu0 %2948
      %2950 = vrot.lane.b32.xlu0 %v2906, 32
      %v2951 = vpop.permute.xlu0 %2950
      %2952 = vrot.lane.b32.xlu0 %v2907, 32
      %v2953 = vpop.permute.xlu0 %2952
      %2954 = vrot.lane.b32.xlu0 %v2908, 32
      %v2955 = vpop.permute.xlu0 %2954
      %2956 = vrot.lane.b32.xlu0 %v2909, 32
      %v2957 = vpop.permute.xlu0 %2956
      %v2974 = vadd.f32 %v814, %v2927
      %v2975 = vadd.f32 %v815, %v2929
      %v2976 = vadd.f32 %v816, %v2931
      %v2977 = vadd.f32 %v817, %v2933
      %v2978 = vadd.f32 %v818, %v2935
      %v2979 = vadd.f32 %v819, %v2937
      %v2980 = vadd.f32 %v820, %v2939
      %v2981 = vadd.f32 %v821, %v2941
      %v2982 = vadd.f32 %v822, %v2943
      %v2983 = vadd.f32 %v823, %v2945
      %v2984 = vadd.f32 %v824, %v2947
      %v2985 = vadd.f32 %v825, %v2949
      %v2986 = vadd.f32 %v826, %v2951
      %v2987 = vadd.f32 %v827, %v2953
      %v2988 = vadd.f32 %v828, %v2955
      %v2989 = vadd.f32 %v829, %v2957
      %2990 = vmatprep.subr.mxu0 0.0
      %2991 = vmatpush1.msra.mxu0 %v2989
      %2992 = vmatprep.subr.mxu0 0.0
      %2993 = vmatpush1.msra.mxu0 %v2988
      %2994 = vmatprep.subr.mxu0 0.0
      %2995 = vmatpush1.msra.mxu0 %v2987
      %2996 = vmatprep.subr.mxu0 0.0
      %2997 = vmatpush1.msra.mxu0 %v2986
      %2998 = vmatprep.subr.mxu0 0.0
      %2999 = vmatpush1.msra.mxu0 %v2985
      %3000 = vmatprep.subr.mxu0 0.0
      %3001 = vmatpush1.msra.mxu0 %v2984
      %3002 = vmatprep.subr.mxu0 0.0
      %3003 = vmatpush1.msra.mxu0 %v2983
      %3004 = vmatprep.subr.mxu0 0.0
      %3005 = vmatpush1.msra.mxu0 %v2982
      %3006 = vmatprep.subr.mxu0 0.0
      %3007 = vmatpush1.msra.mxu0 %v2981
      %3008 = vmatprep.subr.mxu0 0.0
      %3009 = vmatpush1.msra.mxu0 %v2980
      %3010 = vmatprep.subr.mxu0 0.0
      %3011 = vmatpush1.msra.mxu0 %v2979
      %3012 = vmatprep.subr.mxu0 0.0
      %3013 = vmatpush1.msra.mxu0 %v2978
      %3014 = vmatprep.subr.mxu0 0.0
      %3015 = vmatpush1.msra.mxu0 %v2977
      %3016 = vmatprep.subr.mxu0 0.0
      %3017 = vmatpush1.msra.mxu0 %v2976
      %3018 = vmatprep.subr.mxu0 0.0
      %3019 = vmatpush1.msra.mxu0 %v2975
      %3020 = vmatprep.subr.mxu0 0.0
      %3021 = vmatpush1.msra.mxu0 %v2974
      %3022 = vmatprep.subr.mxu0 0.0
      %3023 = vmatpush2.msra.mxu0 0.0
      %3024 = vmatprep.subr.mxu0 0.0
      %3025 = vmatpush2.msra.mxu0 0.0
      %3026 = vmatprep.subr.mxu0 0.0
      %3027 = vmatpush2.msra.mxu0 0.0
      %3028 = vmatprep.subr.mxu0 0.0
      %3029 = vmatpush2.msra.mxu0 0.0
      %3030 = vmatprep.subr.mxu0 0.0
      %3031 = vmatpush2.msra.mxu0 0.0
      %3032 = vmatprep.subr.mxu0 0.0
      %3033 = vmatpush2.msra.mxu0 0.0
      %3034 = vmatprep.subr.mxu0 0.0
      %3035 = vmatpush2.msra.mxu0 0.0
      %3036 = vmatprep.subr.mxu0 0.0
      %3037 = vmatpush2.msra.mxu0 0.0
      %3038 = vmatprep.subr.mxu0 0.0
      %3039 = vmatpush2.msra.mxu0 0.0
      %3040 = vmatprep.subr.mxu0 0.0
      %3041 = vmatpush2.msra.mxu0 0.0
      %3042 = vmatprep.subr.mxu0 0.0
      %3043 = vmatpush2.msra.mxu0 0.0
      %3044 = vmatprep.subr.mxu0 0.0
      %3045 = vmatpush2.msra.mxu0 0.0
      %3046 = vmatprep.subr.mxu0 0.0
      %3047 = vmatpush2.msra.mxu0 0.0
      %3048 = vmatprep.subr.mxu0 0.0
      %3049 = vmatpush2.msra.mxu0 0.0
      %3050 = vmatprep.subr.mxu0 0.0
      %3051 = vmatpush2.msra.mxu0 0.0
      %3052 = vmatprep.subr.mxu0 0.0
      %3053 = vmatpush2.msra.mxu0 0.0
      %3054 = vmatprep.mubr.f32.mxu0 0.0
      %3055 = vmatmul.mubr.f32.gmra.mxu0 %v356
      %v3056 = vpop.f32.mrf.mxu0
      %v3057 = vadd.f32 0.0, %v3056
      %v3058 = vpop.f32.mrf.mxu0
      %3059 = vdwg.mxu0
      %v3060 = vld [vmem:[%s4 + $0x91] sm:$0x1]
      %v3061 = vld [vmem:[%s4 + $0x92] sm:$0x1]
      %v3062 = vlaneseq
      %v3063 = vshrl.u32 %v3062, 7
      %v3064 = vsub.s32 0, %v3063
      %v3065 = vrot.slane %v3060, %v3064
      %v3066 = vmul.f32 %v3057, %v3065
      %v3067 = vsel %vm837, %v3066, 0.0
      %3068 = vadd.xlane.f32.xlu0 %v3067
      %v3069 = vpop.xlane.xlu0 %3068
      %v3070 = vlaneseq
      %v3071 = vshrl.u32 %v3070, 7
      %v3072 = vsub.s32 0, %v3071
      %v3073 = vrot.slane %v3061, %v3072
      %v3074 = vadd.f32 %v3069, %v3073
      %v3075 = vlaneseq
      %v3076 = vand.u32 %v3075, 127
      %v3077 = vmax.f32 %v3074, 0.0
      %v3078 = vmin.f32 %v3077, 5000.0
      %vm3079 = vcmp.eq.s32.totalorder %v3076, 0
      %vm3080 = vcmp.eq.s32.totalorder %v3076, 1
      %3082 = vset.pattern.permute.xlu0 0
      %3083 = vperm.xlu0 %3082, %v3074
      %v3084 = vpop.permute.xlu0 %3083
      %v3086 = vsel %vm3080, %v3084, 0.0
      %3088 = vset.pattern.permute.xlu0 0
      %3089 = vperm.xlu0 %3088, %v3078
      %v3090 = vpop.permute.xlu0 %3089
      %v3092 = vsel %vm3079, %v3090, %v3086
      %3093 = vst [vmem:[%s306] sm:$0xff] %v3092
      %p3094 = scmp.lt.s32.totalorder %s17, 1
      %s3095 = scalar_select %p3094, %s17, 1
      %s3096 = smul.addr %s3095, 8
      %s3097 = scalar_lea.vmem %s6, %s3096
      // Predicated region
      $region45: #{tess_forward.1} parent=43 // pred_check
        %p3098 = pneg %p181
      $region46: #{tess_forward.1} parent=43 // pred_check_branch
        %3100 = sbr.rel (%p3098) target = $region48
      $region47: #{tess_forward.1} parent=43 // pred_region
        _
      $region48: #{tess_forward.1} parent=43 // pred_fallthru
        _
    $region44: #{tess_forward.1} parent=5 // pred_fallthru
      _
    %p3101 = scmp.le.s32.totalorder 2, %s12
    // Predicated region
    $region49: #{tess_forward.1} parent=5 // pred_check
      %p3102 = pneg %p3101
    $region50: #{tess_forward.1} parent=5 // pred_check_branch
      %3104 = sbr.rel (%p3102) target = $region52
    $region51: #{tess_forward.1} parent=5 // pred_region
      %s3105 = ssub.s32 %s12, 2
      // Predicated region
      $region53: #{tess_forward.1} parent=51 // pred_check
        %p3106 = pneg %p187
      $region54: #{tess_forward.1} parent=51 // pred_check_branch
        %3108 = sbr.rel (%p3106) target = $region56
      $region55: #{tess_forward.1} parent=51 // pred_region
        %p3109 = scmp.lt.s32.totalorder %s18, 1
        %s3110 = scalar_select %p3109, %s18, 1
        %s3111 = smul.addr %s3110, 8
        %s3112 = scalar_lea.vmem %s6, %s3111
      $region56: #{tess_forward.1} parent=51 // pred_fallthru
        _
    $region52: #{tess_forward.1} parent=5 // pred_fallthru
      _
  $region6: #{tess_forward.1} parent=0 // loop_footer
    %s16 = sadd.s32 1, %s12
  $region7: #{tess_forward.1} parent=0 // loop_footer_branch
    %11 = sbr.rel target = $region3
  $region8: #{tess_forward.1} parent=0 // loop_exit
    _

</llo_original>
